<compile_context>
chip_gen: v5e
topology: v5e:2x2
jax: 0.10.0
libtpu: 0.0.40
codegen_flags: <defaults>
</compile_context>

<pallas_src>
import jax
import jax.numpy as jnp
from jax.experimental import pallas as pl
from jax.experimental.pallas import tpu as pltpu

# ---------------------------------------------------------------------------
# Hyper-parameters implied by the module (lin3 in_features = 3840 forces L=128)
# ---------------------------------------------------------------------------
L_IN = 128
K = 5
C_HID = 64
L1 = L_IN - (K - 1)          # 124
L2 = L1 - (K - 1)            # 120
LP = L2 // 2                 # 60
FLAT = C_HID * LP            # 3840
HIDDEN = 100
HPAD = 128                   # lin3 hidden zero-padded to a full lane tile
Q = 4                        # positions packed per row ("quad packing")
NQ0 = L_IN // Q              # 32 packed input rows
NQ1 = L1 // Q                # 31 packed conv1 rows
NQ2 = L2 // Q                # 30 packed conv2 rows (== pooled pair rows)
MAX_BB = 8                   # samples per grid step


# ---------------------------------------------------------------------------
# Fused kernel
# ---------------------------------------------------------------------------
def cnn2_fused_kernel(xq_ref, u0_ref, u1_ref, b1_ref, v0_ref, v1_ref, b2_ref,
                      w3_ref, b3_ref, w4_ref, b4_ref, o_ref, flat_s):
    """One batch block: conv1/conv2/pool/flatten per sample, then batched MLP.

    xq_ref : (BB, 32, 4*Cin)      quad-packed input
    u0/u1  : (4*Cin, 256)         packed conv1 weights
    v0/v1  : (256, 256)           packed conv2 weights
    b1/b2  : (1, 256)             biases tiled x4
    w3     : (3840, 128)          lin3, length-major columns, hidden padded
    b3     : (1, 128)
    w4     : (128, n_classes)
    b4     : (1, n_classes)
    o_ref  : (BB, n_classes)
    flat_s : (BB, 3840) VMEM      staging buffer so lin3 runs with M = BB
    """
    bb = o_ref.shape[0]
    u0 = u0_ref[...]
    u1 = u1_ref[...]
    v0 = v0_ref[...]
    v1 = v1_ref[...]
    b1q = b1_ref[...]
    b2q = b2_ref[...]

    for b in range(bb):                                   # static unroll, bb <= 8
        xq = xq_ref[b]                                    # (32, 4*Cin)

        # conv1 + relu (quad packed): two matmuls, 256-wide output
        a1 = jnp.maximum(
            jnp.dot(xq[0:NQ1, :], u0, preferred_element_type=jnp.float32)
            + jnp.dot(xq[1:NQ1 + 1, :], u1, preferred_element_type=jnp.float32)
            + b1q, 0.0)                                   # (31, 256)

        # conv2 + relu (quad packed): two (30,256)x(256,256) matmuls
        a2 = jnp.maximum(
            jnp.dot(a1[0:NQ2, :], v0, preferred_element_type=jnp.float32)
            + jnp.dot(a1[1:NQ2 + 1, :], v1, preferred_element_type=jnp.float32)
            + b2q, 0.0)                                   # (30, 256)

        # maxpool(kernel=2, stride=2): partners are adjacent 64-lane groups
        m0 = jnp.maximum(a2[:, 0:C_HID], a2[:, C_HID:2 * C_HID])           # rows 2r
        m1 = jnp.maximum(a2[:, 2 * C_HID:3 * C_HID], a2[:, 3 * C_HID:])    # rows 2r+1
        pp = jnp.concatenate([m0, m1], axis=1)            # (30, 128), length-major pairs

        # flatten (length-major; lin3 columns were pre-permuted to match):
        # flat[b, r*128 : (r+1)*128] = pp[r, :]
        for r in range(NQ2):
            flat_s[b:b + 1, r * 128:(r + 1) * 128] = pp[r:r + 1, :]

    flat = flat_s[...]                                    # (bb, 3840)
    h = jnp.maximum(
        jnp.dot(flat, w3_ref[...], preferred_element_type=jnp.float32)
        + b3_ref[...], 0.0)                               # (bb, 128)
    o_ref[...] = jnp.maximum(
        jnp.dot(h, w4_ref[...], preferred_element_type=jnp.float32)
        + b4_ref[...], 0.0)


# ---------------------------------------------------------------------------
# Glue: one-time weight packing (layout plumbing only, runs under jit)
# ---------------------------------------------------------------------------
def _pack_conv1(w1):
    """U[d][g*Cin+i, f*64+co] = w1[co, i, 4d+g-f] when 0 <= 4d+g-f < K."""
    c_in = w1.shape[1]
    packed = []
    for d in range(2):
        u = jnp.zeros((Q * c_in, Q * C_HID), jnp.float32)
        for g in range(Q):
            for f in range(Q):
                k = Q * d + g - f
                if 0 <= k < K:
                    u = u.at[g * c_in:(g + 1) * c_in,
                             f * C_HID:(f + 1) * C_HID].set(w1[:, :, k].T)
        packed.append(u)
    return packed


def _pack_conv2(w2):
    """V[d][e*64+ci, q*64+co] = w2[co, ci, 4d+e-q] when 0 <= 4d+e-q < K."""
    packed = []
    for d in range(2):
        v = jnp.zeros((Q * C_HID, Q * C_HID), jnp.float32)
        for e in range(Q):
            for q in range(Q):
                k = Q * d + e - q
                if 0 <= k < K:
                    v = v.at[e * C_HID:(e + 1) * C_HID,
                             q * C_HID:(q + 1) * C_HID].set(w2[:, :, k].T)
        packed.append(v)
    return packed


def cnn2_forward(x_ncl, params):
    """x_ncl: (B, Cin, 128) float32, PyTorch NCL layout."""
    w1, b1, w2, b2, w3, b3, w4, b4 = params
    B, c_in, length = x_ncl.shape
    assert length == L_IN, "lin3 in_features=3840 forces L == 128"
    n_classes = w4.shape[0]

    # --- weight packing / padding (one-time, weights only) ---
    u0, u1 = _pack_conv1(w1)                               # (4*Cin, 256) x 2
    v0, v1 = _pack_conv2(w2)                               # (256, 256)  x 2
    b1q = jnp.tile(b1, Q).reshape(1, Q * C_HID)
    b2q = jnp.tile(b2, Q).reshape(1, Q * C_HID)
    # PyTorch channel-major flatten -> length-major column permutation of w3,
    # then zero-pad hidden 100 -> 128 (exact: padded h entries are relu(0)=0
    # and the matching w4 rows are zero).
    w3_lm = w3.reshape(HIDDEN, C_HID, LP).transpose(2, 1, 0).reshape(FLAT, HIDDEN)
    w3_p = jnp.pad(w3_lm, ((0, 0), (0, HPAD - HIDDEN)))    # (3840, 128)
    b3_p = jnp.pad(b3, (0, HPAD - HIDDEN)).reshape(1, HPAD)
    w4_p = jnp.pad(w4.T, ((0, HPAD - HIDDEN), (0, 0)))     # (128, n_classes)
    b4_r = b4.reshape(1, n_classes)

    # --- input: NCL -> (B, L, Cin) -> quad packed (B, 32, 4*Cin) ---
    xq = jnp.transpose(x_ncl, (0, 2, 1)).reshape(B, NQ0, Q * c_in)

    # --- batch blocking: whole batch per step when small, else blocks of 8 ---
    bb = min(B, MAX_BB)
    b_pad = -(-B // bb) * bb
    if b_pad != B:
        xq = jnp.pad(xq, ((0, b_pad - B), (0, 0), (0, 0)))

    out = pl.pallas_call(
        cnn2_fused_kernel,
        out_shape=jax.ShapeDtypeStruct((b_pad, n_classes), jnp.float32),
        grid=(b_pad // bb,),
        in_specs=[
            pl.BlockSpec((bb, NQ0, Q * c_in), lambda i: (i, 0, 0)),
            pl.BlockSpec((Q * c_in, Q * C_HID), lambda i: (0, 0)),
            pl.BlockSpec((Q * c_in, Q * C_HID), lambda i: (0, 0)),
            pl.BlockSpec((1, Q * C_HID), lambda i: (0, 0)),
            pl.BlockSpec((Q * C_HID, Q * C_HID), lambda i: (0, 0)),
            pl.BlockSpec((Q * C_HID, Q * C_HID), lambda i: (0, 0)),
            pl.BlockSpec((1, Q * C_HID), lambda i: (0, 0)),
            pl.BlockSpec((FLAT, HPAD), lambda i: (0, 0)),
            pl.BlockSpec((1, HPAD), lambda i: (0, 0)),
            pl.BlockSpec((HPAD, n_classes), lambda i: (0, 0)),
            pl.BlockSpec((1, n_classes), lambda i: (0, 0)),
        ],
        out_specs=pl.BlockSpec((bb, n_classes), lambda i: (i, 0)),
        scratch_shapes=[pltpu.VMEM((bb, FLAT), jnp.float32)],
        compiler_params=pltpu.CompilerParams(
            dimension_semantics=("parallel",)),
    )(xq, u0, u1, b1q, v0, v1, b2q, w3_p, b3_p, w4_p, b4_r)

    return out[:B]


# ---------------------------------------------------------------------------
# Pure-JAX reference (for a correctness check) and synthetic params
# ---------------------------------------------------------------------------
def _conv1d_valid(x, w, b):
    """x: (B, Cin, L), w: (Cout, Cin, K), b: (Cout,) -> (B, Cout, L-K+1)."""
    lout = x.shape[-1] - w.shape[-1] + 1
    y = b[None, :, None]
    for k in range(w.shape[-1]):
        y = y + jnp.einsum('bil,oi->bol', x[:, :, k:k + lout], w[:, :, k])
    return y


def cnn2_reference(x_ncl, params):
    w1, b1, w2, b2, w3, b3, w4, b4 = params
    a = jnp.maximum(_conv1d_valid(x_ncl, w1, b1), 0.0)
    a = jnp.maximum(_conv1d_valid(a, w2, b2), 0.0)
    # dropout p=0.6 is identity in eval mode
    Bn, Cn, Ln = a.shape
    a = a[:, :, :2 * (Ln // 2)].reshape(Bn, Cn, Ln // 2, 2).max(axis=-1)
    flat = a.reshape(Bn, -1)                       # PyTorch channel-major flatten
    h = jnp.maximum(flat @ w3.T + b3, 0.0)
    return jnp.maximum(h @ w4.T + b4, 0.0)


def init_params(key, c_in, n_classes):
    """Deterministic synthetic parameters, PyTorch nn.Module shapes."""
    ks = jax.random.split(key, 8)

    def u(k, shape, fan_in):
        bound = 1.0 / jnp.sqrt(jnp.float32(fan_in))
        return jax.random.uniform(k, shape, jnp.float32, -bound, bound)

    w1 = u(ks[0], (C_HID, c_in, K), c_in * K)      # Conv1d weight (out, in, k)
    b1 = u(ks[1], (C_HID,), c_in * K)
    w2 = u(ks[2], (C_HID, C_HID, K), C_HID * K)
    b2 = u(ks[3], (C_HID,), C_HID * K)
    w3 = u(ks[4], (HIDDEN, FLAT), FLAT)            # Linear weight (out, in)
    b3 = u(ks[5], (HIDDEN,), FLAT)
    w4 = u(ks[6], (n_classes, HIDDEN), HIDDEN)
    b4 = u(ks[7], (n_classes,), HIDDEN)
    return (w1, b1, w2, b2, w3, b3, w4, b4)


if __name__ == "__main__":
    key = jax.random.PRNGKey(0)
    k_x, k_p = jax.random.split(key)

    batch, c_in, n_classes = 2, 4, 6
    # L must be 128 so that 64 * ((L - 8) // 2) == 3840 (lin3 in_features).
    x = jax.random.normal(k_x, (batch, c_in, L_IN), jnp.float32)
    params = init_params(k_p, c_in, n_classes)

    out = jax.jit(cnn2_forward)(x, params)
    out = jax.block_until_ready(out)
    assert out.shape == (batch, n_classes)
    assert bool(jnp.all(jnp.isfinite(out)))

    with jax.default_matmul_precision("highest"):
        ref = cnn2_reference(x, params)
    max_err = float(jnp.max(jnp.abs(out - ref)))
    assert bool(jnp.allclose(out, ref, atol=2e-2, rtol=2e-2)), (
        f"mismatch vs reference, max abs err {max_err}")

    print("KERNEL_OK")
</pallas_src>

<mosaic_0001>
module attributes {stable_mosaic.version = 11 : i64} {
  func.func @cnn2_fused_kernel(%arg0: i32, %arg1: memref<2x32x16xf32, #tpu.memory_space<vmem>>, %arg2: memref<16x256xf32, #tpu.memory_space<vmem>>, %arg3: memref<16x256xf32, #tpu.memory_space<vmem>>, %arg4: memref<1x256xf32, #tpu.memory_space<vmem>>, %arg5: memref<256x256xf32, #tpu.memory_space<vmem>>, %arg6: memref<256x256xf32, #tpu.memory_space<vmem>>, %arg7: memref<1x256xf32, #tpu.memory_space<vmem>>, %arg8: memref<3840x128xf32, #tpu.memory_space<vmem>>, %arg9: memref<1x128xf32, #tpu.memory_space<vmem>>, %arg10: memref<128x6xf32, #tpu.memory_space<vmem>>, %arg11: memref<1x6xf32, #tpu.memory_space<vmem>>, %arg12: memref<2x6xf32, #tpu.memory_space<vmem>>, %arg13: memref<2x3840xf32, #tpu.memory_space<vmem>>) attributes {dimension_semantics = [#tpu.dimension_semantics<parallel>], iteration_bounds = array<i64: 1>, scalar_prefetch = 0 : i64, scratch_operands = 1 : i64, tpu.core_type = #tpu.core_type<tc>, window_params = [{transform_indices = @transform_0, window_bounds = array<i64: 2, 32, 16>}, {pipeline_mode = #tpu.pipeline_mode<synchronous>, transform_indices = @transform_1, window_bounds = array<i64: 16, 256>}, {pipeline_mode = #tpu.pipeline_mode<synchronous>, transform_indices = @transform_2, window_bounds = array<i64: 16, 256>}, {pipeline_mode = #tpu.pipeline_mode<synchronous>, transform_indices = @transform_3, window_bounds = array<i64: 1, 256>}, {pipeline_mode = #tpu.pipeline_mode<synchronous>, transform_indices = @transform_4, window_bounds = array<i64: 256, 256>}, {pipeline_mode = #tpu.pipeline_mode<synchronous>, transform_indices = @transform_5, window_bounds = array<i64: 256, 256>}, {pipeline_mode = #tpu.pipeline_mode<synchronous>, transform_indices = @transform_6, window_bounds = array<i64: 1, 256>}, {pipeline_mode = #tpu.pipeline_mode<synchronous>, transform_indices = @transform_7, window_bounds = array<i64: 3840, 128>}, {pipeline_mode = #tpu.pipeline_mode<synchronous>, transform_indices = @transform_8, window_bounds = array<i64: 1, 128>}, {pipeline_mode = #tpu.pipeline_mode<synchronous>, transform_indices = @transform_9, window_bounds = array<i64: 128, 6>}, {pipeline_mode = #tpu.pipeline_mode<synchronous>, transform_indices = @transform_10, window_bounds = array<i64: 1, 6>}, {transform_indices = @transform_11, window_bounds = array<i64: 2, 6>}]} {
    %c0 = arith.constant 0 : index
    %c0_0 = arith.constant 0 : index
    %0 = vector.load %arg2[%c0, %c0_0] : memref<16x256xf32, #tpu.memory_space<vmem>>, vector<16x256xf32>
    %c0_1 = arith.constant 0 : index
    %c0_2 = arith.constant 0 : index
    %1 = vector.load %arg3[%c0_1, %c0_2] : memref<16x256xf32, #tpu.memory_space<vmem>>, vector<16x256xf32>
    %c0_3 = arith.constant 0 : index
    %c0_4 = arith.constant 0 : index
    %2 = vector.load %arg5[%c0_3, %c0_4] : memref<256x256xf32, #tpu.memory_space<vmem>>, vector<256x256xf32>
    %c0_5 = arith.constant 0 : index
    %c0_6 = arith.constant 0 : index
    %3 = vector.load %arg6[%c0_5, %c0_6] : memref<256x256xf32, #tpu.memory_space<vmem>>, vector<256x256xf32>
    %c0_7 = arith.constant 0 : index
    %c0_8 = arith.constant 0 : index
    %4 = vector.load %arg4[%c0_7, %c0_8] : memref<1x256xf32, #tpu.memory_space<vmem>>, vector<1x256xf32>
    %c0_9 = arith.constant 0 : index
    %c0_10 = arith.constant 0 : index
    %5 = vector.load %arg7[%c0_9, %c0_10] : memref<1x256xf32, #tpu.memory_space<vmem>>, vector<1x256xf32>
    %c0_11 = arith.constant 0 : index
    %c0_12 = arith.constant 0 : index
    %c0_13 = arith.constant 0 : index
    %6 = vector.load %arg1[%c0_11, %c0_12, %c0_13] : memref<2x32x16xf32, #tpu.memory_space<vmem>>, vector<1x32x16xf32>
    %7 = vector.shape_cast %6 : vector<1x32x16xf32> to vector<32x16xf32>
    %8 = vector.extract_strided_slice %7 {offsets = [0, 0], sizes = [31, 16], strides = [1, 1]} : vector<32x16xf32> to vector<31x16xf32>
    %cst = arith.constant dense<0.000000e+00> : vector<31x256xf32>
    %9 = tpu.matmul %8, %0, %cst {dimension_numbers = #tpu.dot_dimension_numbers<[1], [0], [0], [1], [0, 0, 1, 1], [], []>} : vector<31x16xf32>, vector<16x256xf32>, vector<31x256xf32> -> vector<31x256xf32>
    %10 = vector.extract_strided_slice %7 {offsets = [1, 0], sizes = [31, 16], strides = [1, 1]} : vector<32x16xf32> to vector<31x16xf32>
    %cst_14 = arith.constant dense<0.000000e+00> : vector<31x256xf32>
    %11 = tpu.matmul %10, %1, %cst_14 {dimension_numbers = #tpu.dot_dimension_numbers<[1], [0], [0], [1], [0, 0, 1, 1], [], []>} : vector<31x16xf32>, vector<16x256xf32>, vector<31x256xf32> -> vector<31x256xf32>
    %12 = arith.addf %9, %11 : vector<31x256xf32>
    %13 = vector.broadcast %4 : vector<1x256xf32> to vector<31x256xf32>
    %14 = arith.addf %12, %13 : vector<31x256xf32>
    %cst_15 = arith.constant 0.000000e+00 : f32
    %15 = vector.broadcast %cst_15 : f32 to vector<31x256xf32>
    %16 = arith.maximumf %14, %15 : vector<31x256xf32>
    %17 = vector.extract_strided_slice %16 {offsets = [0, 0], sizes = [30, 256], strides = [1, 1]} : vector<31x256xf32> to vector<30x256xf32>
    %cst_16 = arith.constant dense<0.000000e+00> : vector<30x256xf32>
    %18 = tpu.matmul %17, %2, %cst_16 {dimension_numbers = #tpu.dot_dimension_numbers<[1], [0], [0], [1], [0, 0, 1, 1], [], []>} : vector<30x256xf32>, vector<256x256xf32>, vector<30x256xf32> -> vector<30x256xf32>
    %19 = vector.extract_strided_slice %16 {offsets = [1, 0], sizes = [30, 256], strides = [1, 1]} : vector<31x256xf32> to vector<30x256xf32>
    %cst_17 = arith.constant dense<0.000000e+00> : vector<30x256xf32>
    %20 = tpu.matmul %19, %3, %cst_17 {dimension_numbers = #tpu.dot_dimension_numbers<[1], [0], [0], [1], [0, 0, 1, 1], [], []>} : vector<30x256xf32>, vector<256x256xf32>, vector<30x256xf32> -> vector<30x256xf32>
    %21 = arith.addf %18, %20 : vector<30x256xf32>
    %22 = vector.broadcast %5 : vector<1x256xf32> to vector<30x256xf32>
    %23 = arith.addf %21, %22 : vector<30x256xf32>
    %cst_18 = arith.constant 0.000000e+00 : f32
    %24 = vector.broadcast %cst_18 : f32 to vector<30x256xf32>
    %25 = arith.maximumf %23, %24 : vector<30x256xf32>
    %26 = vector.extract_strided_slice %25 {offsets = [0, 0], sizes = [30, 64], strides = [1, 1]} : vector<30x256xf32> to vector<30x64xf32>
    %27 = vector.extract_strided_slice %25 {offsets = [0, 64], sizes = [30, 64], strides = [1, 1]} : vector<30x256xf32> to vector<30x64xf32>
    %28 = arith.maximumf %26, %27 : vector<30x64xf32>
    %29 = vector.extract_strided_slice %25 {offsets = [0, 128], sizes = [30, 64], strides = [1, 1]} : vector<30x256xf32> to vector<30x64xf32>
    %30 = vector.extract_strided_slice %25 {offsets = [0, 192], sizes = [30, 64], strides = [1, 1]} : vector<30x256xf32> to vector<30x64xf32>
    %31 = arith.maximumf %29, %30 : vector<30x64xf32>
    %32 = tpu.concatenate %28, %31 in 1 : vector<30x64xf32>, vector<30x64xf32> -> vector<30x128xf32>
    %33 = vector.extract_strided_slice %32 {offsets = [0, 0], sizes = [1, 128], strides = [1, 1]} : vector<30x128xf32> to vector<1x128xf32>
    %c0_19 = arith.constant 0 : index
    %c0_20 = arith.constant 0 : index
    %34 = vector.load %arg13[%c0_19, %c0_20] : memref<2x3840xf32, #tpu.memory_space<vmem>>, vector<1x128xf32>
    tpu.vector_store %arg13[%c0_19, %c0_20], %33 {strides = array<i32>} : memref<2x3840xf32, #tpu.memory_space<vmem>>, vector<1x128xf32>,
    %35 = vector.extract_strided_slice %32 {offsets = [1, 0], sizes = [1, 128], strides = [1, 1]} : vector<30x128xf32> to vector<1x128xf32>
    %c0_21 = arith.constant 0 : index
    %c128 = arith.constant 128 : index
    %36 = vector.load %arg13[%c0_21, %c128] : memref<2x3840xf32, #tpu.memory_space<vmem>>, vector<1x128xf32>
    tpu.vector_store %arg13[%c0_21, %c128], %35 {strides = array<i32>} : memref<2x3840xf32, #tpu.memory_space<vmem>>, vector<1x128xf32>,
    %37 = vector.extract_strided_slice %32 {offsets = [2, 0], sizes = [1, 128], strides = [1, 1]} : vector<30x128xf32> to vector<1x128xf32>
    %c0_22 = arith.constant 0 : index
    %c256 = arith.constant 256 : index
    %38 = vector.load %arg13[%c0_22, %c256] : memref<2x3840xf32, #tpu.memory_space<vmem>>, vector<1x128xf32>
    tpu.vector_store %arg13[%c0_22, %c256], %37 {strides = array<i32>} : memref<2x3840xf32, #tpu.memory_space<vmem>>, vector<1x128xf32>,
    %39 = vector.extract_strided_slice %32 {offsets = [3, 0], sizes = [1, 128], strides = [1, 1]} : vector<30x128xf32> to vector<1x128xf32>
    %c0_23 = arith.constant 0 : index
    %c384 = arith.constant 384 : index
    %40 = vector.load %arg13[%c0_23, %c384] : memref<2x3840xf32, #tpu.memory_space<vmem>>, vector<1x128xf32>
    tpu.vector_store %arg13[%c0_23, %c384], %39 {strides = array<i32>} : memref<2x3840xf32, #tpu.memory_space<vmem>>, vector<1x128xf32>,
    %41 = vector.extract_strided_slice %32 {offsets = [4, 0], sizes = [1, 128], strides = [1, 1]} : vector<30x128xf32> to vector<1x128xf32>
    %c0_24 = arith.constant 0 : index
    %c512 = arith.constant 512 : index
    %42 = vector.load %arg13[%c0_24, %c512] : memref<2x3840xf32, #tpu.memory_space<vmem>>, vector<1x128xf32>
    tpu.vector_store %arg13[%c0_24, %c512], %41 {strides = array<i32>} : memref<2x3840xf32, #tpu.memory_space<vmem>>, vector<1x128xf32>,
    %43 = vector.extract_strided_slice %32 {offsets = [5, 0], sizes = [1, 128], strides = [1, 1]} : vector<30x128xf32> to vector<1x128xf32>
    %c0_25 = arith.constant 0 : index
    %c640 = arith.constant 640 : index
    %44 = vector.load %arg13[%c0_25, %c640] : memref<2x3840xf32, #tpu.memory_space<vmem>>, vector<1x128xf32>
    tpu.vector_store %arg13[%c0_25, %c640], %43 {strides = array<i32>} : memref<2x3840xf32, #tpu.memory_space<vmem>>, vector<1x128xf32>,
    %45 = vector.extract_strided_slice %32 {offsets = [6, 0], sizes = [1, 128], strides = [1, 1]} : vector<30x128xf32> to vector<1x128xf32>
    %c0_26 = arith.constant 0 : index
    %c768 = arith.constant 768 : index
    %46 = vector.load %arg13[%c0_26, %c768] : memref<2x3840xf32, #tpu.memory_space<vmem>>, vector<1x128xf32>
    tpu.vector_store %arg13[%c0_26, %c768], %45 {strides = array<i32>} : memref<2x3840xf32, #tpu.memory_space<vmem>>, vector<1x128xf32>,
    %47 = vector.extract_strided_slice %32 {offsets = [7, 0], sizes = [1, 128], strides = [1, 1]} : vector<30x128xf32> to vector<1x128xf32>
    %c0_27 = arith.constant 0 : index
    %c896 = arith.constant 896 : index
    %48 = vector.load %arg13[%c0_27, %c896] : memref<2x3840xf32, #tpu.memory_space<vmem>>, vector<1x128xf32>
    tpu.vector_store %arg13[%c0_27, %c896], %47 {strides = array<i32>} : memref<2x3840xf32, #tpu.memory_space<vmem>>, vector<1x128xf32>,
    %49 = vector.extract_strided_slice %32 {offsets = [8, 0], sizes = [1, 128], strides = [1, 1]} : vector<30x128xf32> to vector<1x128xf32>
    %c0_28 = arith.constant 0 : index
    %c1024 = arith.constant 1024 : index
    %50 = vector.load %arg13[%c0_28, %c1024] : memref<2x3840xf32, #tpu.memory_space<vmem>>, vector<1x128xf32>
    tpu.vector_store %arg13[%c0_28, %c1024], %49 {strides = array<i32>} : memref<2x3840xf32, #tpu.memory_space<vmem>>, vector<1x128xf32>,
    %51 = vector.extract_strided_slice %32 {offsets = [9, 0], sizes = [1, 128], strides = [1, 1]} : vector<30x128xf32> to vector<1x128xf32>
    %c0_29 = arith.constant 0 : index
    %c1152 = arith.constant 1152 : index
    %52 = vector.load %arg13[%c0_29, %c1152] : memref<2x3840xf32, #tpu.memory_space<vmem>>, vector<1x128xf32>
    tpu.vector_store %arg13[%c0_29, %c1152], %51 {strides = array<i32>} : memref<2x3840xf32, #tpu.memory_space<vmem>>, vector<1x128xf32>,
    %53 = vector.extract_strided_slice %32 {offsets = [10, 0], sizes = [1, 128], strides = [1, 1]} : vector<30x128xf32> to vector<1x128xf32>
    %c0_30 = arith.constant 0 : index
    %c1280 = arith.constant 1280 : index
    %54 = vector.load %arg13[%c0_30, %c1280] : memref<2x3840xf32, #tpu.memory_space<vmem>>, vector<1x128xf32>
    tpu.vector_store %arg13[%c0_30, %c1280], %53 {strides = array<i32>} : memref<2x3840xf32, #tpu.memory_space<vmem>>, vector<1x128xf32>,
    %55 = vector.extract_strided_slice %32 {offsets = [11, 0], sizes = [1, 128], strides = [1, 1]} : vector<30x128xf32> to vector<1x128xf32>
    %c0_31 = arith.constant 0 : index
    %c1408 = arith.constant 1408 : index
    %56 = vector.load %arg13[%c0_31, %c1408] : memref<2x3840xf32, #tpu.memory_space<vmem>>, vector<1x128xf32>
    tpu.vector_store %arg13[%c0_31, %c1408], %55 {strides = array<i32>} : memref<2x3840xf32, #tpu.memory_space<vmem>>, vector<1x128xf32>,
    %57 = vector.extract_strided_slice %32 {offsets = [12, 0], sizes = [1, 128], strides = [1, 1]} : vector<30x128xf32> to vector<1x128xf32>
    %c0_32 = arith.constant 0 : index
    %c1536 = arith.constant 1536 : index
    %58 = vector.load %arg13[%c0_32, %c1536] : memref<2x3840xf32, #tpu.memory_space<vmem>>, vector<1x128xf32>
    tpu.vector_store %arg13[%c0_32, %c1536], %57 {strides = array<i32>} : memref<2x3840xf32, #tpu.memory_space<vmem>>, vector<1x128xf32>,
    %59 = vector.extract_strided_slice %32 {offsets = [13, 0], sizes = [1, 128], strides = [1, 1]} : vector<30x128xf32> to vector<1x128xf32>
    %c0_33 = arith.constant 0 : index
    %c1664 = arith.constant 1664 : index
    %60 = vector.load %arg13[%c0_33, %c1664] : memref<2x3840xf32, #tpu.memory_space<vmem>>, vector<1x128xf32>
    tpu.vector_store %arg13[%c0_33, %c1664], %59 {strides = array<i32>} : memref<2x3840xf32, #tpu.memory_space<vmem>>, vector<1x128xf32>,
    %61 = vector.extract_strided_slice %32 {offsets = [14, 0], sizes = [1, 128], strides = [1, 1]} : vector<30x128xf32> to vector<1x128xf32>
    %c0_34 = arith.constant 0 : index
    %c1792 = arith.constant 1792 : index
    %62 = vector.load %arg13[%c0_34, %c1792] : memref<2x3840xf32, #tpu.memory_space<vmem>>, vector<1x128xf32>
    tpu.vector_store %arg13[%c0_34, %c1792], %61 {strides = array<i32>} : memref<2x3840xf32, #tpu.memory_space<vmem>>, vector<1x128xf32>,
    %63 = vector.extract_strided_slice %32 {offsets = [15, 0], sizes = [1, 128], strides = [1, 1]} : vector<30x128xf32> to vector<1x128xf32>
    %c0_35 = arith.constant 0 : index
    %c1920 = arith.constant 1920 : index
    %64 = vector.load %arg13[%c0_35, %c1920] : memref<2x3840xf32, #tpu.memory_space<vmem>>, vector<1x128xf32>
    tpu.vector_store %arg13[%c0_35, %c1920], %63 {strides = array<i32>} : memref<2x3840xf32, #tpu.memory_space<vmem>>, vector<1x128xf32>,
    %65 = vector.extract_strided_slice %32 {offsets = [16, 0], sizes = [1, 128], strides = [1, 1]} : vector<30x128xf32> to vector<1x128xf32>
    %c0_36 = arith.constant 0 : index
    %c2048 = arith.constant 2048 : index
    %66 = vector.load %arg13[%c0_36, %c2048] : memref<2x3840xf32, #tpu.memory_space<vmem>>, vector<1x128xf32>
    tpu.vector_store %arg13[%c0_36, %c2048], %65 {strides = array<i32>} : memref<2x3840xf32, #tpu.memory_space<vmem>>, vector<1x128xf32>,
    %67 = vector.extract_strided_slice %32 {offsets = [17, 0], sizes = [1, 128], strides = [1, 1]} : vector<30x128xf32> to vector<1x128xf32>
    %c0_37 = arith.constant 0 : index
    %c2176 = arith.constant 2176 : index
    %68 = vector.load %arg13[%c0_37, %c2176] : memref<2x3840xf32, #tpu.memory_space<vmem>>, vector<1x128xf32>
    tpu.vector_store %arg13[%c0_37, %c2176], %67 {strides = array<i32>} : memref<2x3840xf32, #tpu.memory_space<vmem>>, vector<1x128xf32>,
    %69 = vector.extract_strided_slice %32 {offsets = [18, 0], sizes = [1, 128], strides = [1, 1]} : vector<30x128xf32> to vector<1x128xf32>
    %c0_38 = arith.constant 0 : index
    %c2304 = arith.constant 2304 : index
    %70 = vector.load %arg13[%c0_38, %c2304] : memref<2x3840xf32, #tpu.memory_space<vmem>>, vector<1x128xf32>
    tpu.vector_store %arg13[%c0_38, %c2304], %69 {strides = array<i32>} : memref<2x3840xf32, #tpu.memory_space<vmem>>, vector<1x128xf32>,
    %71 = vector.extract_strided_slice %32 {offsets = [19, 0], sizes = [1, 128], strides = [1, 1]} : vector<30x128xf32> to vector<1x128xf32>
    %c0_39 = arith.constant 0 : index
    %c2432 = arith.constant 2432 : index
    %72 = vector.load %arg13[%c0_39, %c2432] : memref<2x3840xf32, #tpu.memory_space<vmem>>, vector<1x128xf32>
    tpu.vector_store %arg13[%c0_39, %c2432], %71 {strides = array<i32>} : memref<2x3840xf32, #tpu.memory_space<vmem>>, vector<1x128xf32>,
    %73 = vector.extract_strided_slice %32 {offsets = [20, 0], sizes = [1, 128], strides = [1, 1]} : vector<30x128xf32> to vector<1x128xf32>
    %c0_40 = arith.constant 0 : index
    %c2560 = arith.constant 2560 : index
    %74 = vector.load %arg13[%c0_40, %c2560] : memref<2x3840xf32, #tpu.memory_space<vmem>>, vector<1x128xf32>
    tpu.vector_store %arg13[%c0_40, %c2560], %73 {strides = array<i32>} : memref<2x3840xf32, #tpu.memory_space<vmem>>, vector<1x128xf32>,
    %75 = vector.extract_strided_slice %32 {offsets = [21, 0], sizes = [1, 128], strides = [1, 1]} : vector<30x128xf32> to vector<1x128xf32>
    %c0_41 = arith.constant 0 : index
    %c2688 = arith.constant 2688 : index
    %76 = vector.load %arg13[%c0_41, %c2688] : memref<2x3840xf32, #tpu.memory_space<vmem>>, vector<1x128xf32>
    tpu.vector_store %arg13[%c0_41, %c2688], %75 {strides = array<i32>} : memref<2x3840xf32, #tpu.memory_space<vmem>>, vector<1x128xf32>,
    %77 = vector.extract_strided_slice %32 {offsets = [22, 0], sizes = [1, 128], strides = [1, 1]} : vector<30x128xf32> to vector<1x128xf32>
    %c0_42 = arith.constant 0 : index
    %c2816 = arith.constant 2816 : index
    %78 = vector.load %arg13[%c0_42, %c2816] : memref<2x3840xf32, #tpu.memory_space<vmem>>, vector<1x128xf32>
    tpu.vector_store %arg13[%c0_42, %c2816], %77 {strides = array<i32>} : memref<2x3840xf32, #tpu.memory_space<vmem>>, vector<1x128xf32>,
    %79 = vector.extract_strided_slice %32 {offsets = [23, 0], sizes = [1, 128], strides = [1, 1]} : vector<30x128xf32> to vector<1x128xf32>
    %c0_43 = arith.constant 0 : index
    %c2944 = arith.constant 2944 : index
    %80 = vector.load %arg13[%c0_43, %c2944] : memref<2x3840xf32, #tpu.memory_space<vmem>>, vector<1x128xf32>
    tpu.vector_store %arg13[%c0_43, %c2944], %79 {strides = array<i32>} : memref<2x3840xf32, #tpu.memory_space<vmem>>, vector<1x128xf32>,
    %81 = vector.extract_strided_slice %32 {offsets = [24, 0], sizes = [1, 128], strides = [1, 1]} : vector<30x128xf32> to vector<1x128xf32>
    %c0_44 = arith.constant 0 : index
    %c3072 = arith.constant 3072 : index
    %82 = vector.load %arg13[%c0_44, %c3072] : memref<2x3840xf32, #tpu.memory_space<vmem>>, vector<1x128xf32>
    tpu.vector_store %arg13[%c0_44, %c3072], %81 {strides = array<i32>} : memref<2x3840xf32, #tpu.memory_space<vmem>>, vector<1x128xf32>,
    %83 = vector.extract_strided_slice %32 {offsets = [25, 0], sizes = [1, 128], strides = [1, 1]} : vector<30x128xf32> to vector<1x128xf32>
    %c0_45 = arith.constant 0 : index
    %c3200 = arith.constant 3200 : index
    %84 = vector.load %arg13[%c0_45, %c3200] : memref<2x3840xf32, #tpu.memory_space<vmem>>, vector<1x128xf32>
    tpu.vector_store %arg13[%c0_45, %c3200], %83 {strides = array<i32>} : memref<2x3840xf32, #tpu.memory_space<vmem>>, vector<1x128xf32>,
    %85 = vector.extract_strided_slice %32 {offsets = [26, 0], sizes = [1, 128], strides = [1, 1]} : vector<30x128xf32> to vector<1x128xf32>
    %c0_46 = arith.constant 0 : index
    %c3328 = arith.constant 3328 : index
    %86 = vector.load %arg13[%c0_46, %c3328] : memref<2x3840xf32, #tpu.memory_space<vmem>>, vector<1x128xf32>
    tpu.vector_store %arg13[%c0_46, %c3328], %85 {strides = array<i32>} : memref<2x3840xf32, #tpu.memory_space<vmem>>, vector<1x128xf32>,
    %87 = vector.extract_strided_slice %32 {offsets = [27, 0], sizes = [1, 128], strides = [1, 1]} : vector<30x128xf32> to vector<1x128xf32>
    %c0_47 = arith.constant 0 : index
    %c3456 = arith.constant 3456 : index
    %88 = vector.load %arg13[%c0_47, %c3456] : memref<2x3840xf32, #tpu.memory_space<vmem>>, vector<1x128xf32>
    tpu.vector_store %arg13[%c0_47, %c3456], %87 {strides = array<i32>} : memref<2x3840xf32, #tpu.memory_space<vmem>>, vector<1x128xf32>,
    %89 = vector.extract_strided_slice %32 {offsets = [28, 0], sizes = [1, 128], strides = [1, 1]} : vector<30x128xf32> to vector<1x128xf32>
    %c0_48 = arith.constant 0 : index
    %c3584 = arith.constant 3584 : index
    %90 = vector.load %arg13[%c0_48, %c3584] : memref<2x3840xf32, #tpu.memory_space<vmem>>, vector<1x128xf32>
    tpu.vector_store %arg13[%c0_48, %c3584], %89 {strides = array<i32>} : memref<2x3840xf32, #tpu.memory_space<vmem>>, vector<1x128xf32>,
    %91 = vector.extract_strided_slice %32 {offsets = [29, 0], sizes = [1, 128], strides = [1, 1]} : vector<30x128xf32> to vector<1x128xf32>
    %c0_49 = arith.constant 0 : index
    %c3712 = arith.constant 3712 : index
    %92 = vector.load %arg13[%c0_49, %c3712] : memref<2x3840xf32, #tpu.memory_space<vmem>>, vector<1x128xf32>
    tpu.vector_store %arg13[%c0_49, %c3712], %91 {strides = array<i32>} : memref<2x3840xf32, #tpu.memory_space<vmem>>, vector<1x128xf32>,
    %c1 = arith.constant 1 : index
    %c0_50 = arith.constant 0 : index
    %c0_51 = arith.constant 0 : index
    %93 = vector.load %arg1[%c1, %c0_50, %c0_51] : memref<2x32x16xf32, #tpu.memory_space<vmem>>, vector<1x32x16xf32>
    %94 = vector.shape_cast %93 : vector<1x32x16xf32> to vector<32x16xf32>
    %95 = vector.extract_strided_slice %94 {offsets = [0, 0], sizes = [31, 16], strides = [1, 1]} : vector<32x16xf32> to vector<31x16xf32>
    %cst_52 = arith.constant dense<0.000000e+00> : vector<31x256xf32>
    %96 = tpu.matmul %95, %0, %cst_52 {dimension_numbers = #tpu.dot_dimension_numbers<[1], [0], [0], [1], [0, 0, 1, 1], [], []>} : vector<31x16xf32>, vector<16x256xf32>, vector<31x256xf32> -> vector<31x256xf32>
    %97 = vector.extract_strided_slice %94 {offsets = [1, 0], sizes = [31, 16], strides = [1, 1]} : vector<32x16xf32> to vector<31x16xf32>
    %cst_53 = arith.constant dense<0.000000e+00> : vector<31x256xf32>
    %98 = tpu.matmul %97, %1, %cst_53 {dimension_numbers = #tpu.dot_dimension_numbers<[1], [0], [0], [1], [0, 0, 1, 1], [], []>} : vector<31x16xf32>, vector<16x256xf32>, vector<31x256xf32> -> vector<31x256xf32>
    %99 = arith.addf %96, %98 : vector<31x256xf32>
    %100 = vector.broadcast %4 : vector<1x256xf32> to vector<31x256xf32>
    %101 = arith.addf %99, %100 : vector<31x256xf32>
    %cst_54 = arith.constant 0.000000e+00 : f32
    %102 = vector.broadcast %cst_54 : f32 to vector<31x256xf32>
    %103 = arith.maximumf %101, %102 : vector<31x256xf32>
    %104 = vector.extract_strided_slice %103 {offsets = [0, 0], sizes = [30, 256], strides = [1, 1]} : vector<31x256xf32> to vector<30x256xf32>
    %cst_55 = arith.constant dense<0.000000e+00> : vector<30x256xf32>
    %105 = tpu.matmul %104, %2, %cst_55 {dimension_numbers = #tpu.dot_dimension_numbers<[1], [0], [0], [1], [0, 0, 1, 1], [], []>} : vector<30x256xf32>, vector<256x256xf32>, vector<30x256xf32> -> vector<30x256xf32>
    %106 = vector.extract_strided_slice %103 {offsets = [1, 0], sizes = [30, 256], strides = [1, 1]} : vector<31x256xf32> to vector<30x256xf32>
    %cst_56 = arith.constant dense<0.000000e+00> : vector<30x256xf32>
    %107 = tpu.matmul %106, %3, %cst_56 {dimension_numbers = #tpu.dot_dimension_numbers<[1], [0], [0], [1], [0, 0, 1, 1], [], []>} : vector<30x256xf32>, vector<256x256xf32>, vector<30x256xf32> -> vector<30x256xf32>
    %108 = arith.addf %105, %107 : vector<30x256xf32>
    %109 = vector.broadcast %5 : vector<1x256xf32> to vector<30x256xf32>
    %110 = arith.addf %108, %109 : vector<30x256xf32>
    %cst_57 = arith.constant 0.000000e+00 : f32
    %111 = vector.broadcast %cst_57 : f32 to vector<30x256xf32>
    %112 = arith.maximumf %110, %111 : vector<30x256xf32>
    %113 = vector.extract_strided_slice %112 {offsets = [0, 0], sizes = [30, 64], strides = [1, 1]} : vector<30x256xf32> to vector<30x64xf32>
    %114 = vector.extract_strided_slice %112 {offsets = [0, 64], sizes = [30, 64], strides = [1, 1]} : vector<30x256xf32> to vector<30x64xf32>
    %115 = arith.maximumf %113, %114 : vector<30x64xf32>
    %116 = vector.extract_strided_slice %112 {offsets = [0, 128], sizes = [30, 64], strides = [1, 1]} : vector<30x256xf32> to vector<30x64xf32>
    %117 = vector.extract_strided_slice %112 {offsets = [0, 192], sizes = [30, 64], strides = [1, 1]} : vector<30x256xf32> to vector<30x64xf32>
    %118 = arith.maximumf %116, %117 : vector<30x64xf32>
    %119 = tpu.concatenate %115, %118 in 1 : vector<30x64xf32>, vector<30x64xf32> -> vector<30x128xf32>
    %120 = vector.extract_strided_slice %119 {offsets = [0, 0], sizes = [1, 128], strides = [1, 1]} : vector<30x128xf32> to vector<1x128xf32>
    %c1_58 = arith.constant 1 : index
    %c0_59 = arith.constant 0 : index
    %121 = vector.load %arg13[%c1_58, %c0_59] : memref<2x3840xf32, #tpu.memory_space<vmem>>, vector<1x128xf32>
    tpu.vector_store %arg13[%c1_58, %c0_59], %120 {strides = array<i32>} : memref<2x3840xf32, #tpu.memory_space<vmem>>, vector<1x128xf32>,
    %122 = vector.extract_strided_slice %119 {offsets = [1, 0], sizes = [1, 128], strides = [1, 1]} : vector<30x128xf32> to vector<1x128xf32>
    %c1_60 = arith.constant 1 : index
    %c128_61 = arith.constant 128 : index
    %123 = vector.load %arg13[%c1_60, %c128_61] : memref<2x3840xf32, #tpu.memory_space<vmem>>, vector<1x128xf32>
    tpu.vector_store %arg13[%c1_60, %c128_61], %122 {strides = array<i32>} : memref<2x3840xf32, #tpu.memory_space<vmem>>, vector<1x128xf32>,
    %124 = vector.extract_strided_slice %119 {offsets = [2, 0], sizes = [1, 128], strides = [1, 1]} : vector<30x128xf32> to vector<1x128xf32>
    %c1_62 = arith.constant 1 : index
    %c256_63 = arith.constant 256 : index
    %125 = vector.load %arg13[%c1_62, %c256_63] : memref<2x3840xf32, #tpu.memory_space<vmem>>, vector<1x128xf32>
    tpu.vector_store %arg13[%c1_62, %c256_63], %124 {strides = array<i32>} : memref<2x3840xf32, #tpu.memory_space<vmem>>, vector<1x128xf32>,
    %126 = vector.extract_strided_slice %119 {offsets = [3, 0], sizes = [1, 128], strides = [1, 1]} : vector<30x128xf32> to vector<1x128xf32>
    %c1_64 = arith.constant 1 : index
    %c384_65 = arith.constant 384 : index
    %127 = vector.load %arg13[%c1_64, %c384_65] : memref<2x3840xf32, #tpu.memory_space<vmem>>, vector<1x128xf32>
    tpu.vector_store %arg13[%c1_64, %c384_65], %126 {strides = array<i32>} : memref<2x3840xf32, #tpu.memory_space<vmem>>, vector<1x128xf32>,
    %128 = vector.extract_strided_slice %119 {offsets = [4, 0], sizes = [1, 128], strides = [1, 1]} : vector<30x128xf32> to vector<1x128xf32>
    %c1_66 = arith.constant 1 : index
    %c512_67 = arith.constant 512 : index
    %129 = vector.load %arg13[%c1_66, %c512_67] : memref<2x3840xf32, #tpu.memory_space<vmem>>, vector<1x128xf32>
    tpu.vector_store %arg13[%c1_66, %c512_67], %128 {strides = array<i32>} : memref<2x3840xf32, #tpu.memory_space<vmem>>, vector<1x128xf32>,
    %130 = vector.extract_strided_slice %119 {offsets = [5, 0], sizes = [1, 128], strides = [1, 1]} : vector<30x128xf32> to vector<1x128xf32>
    %c1_68 = arith.constant 1 : index
    %c640_69 = arith.constant 640 : index
    %131 = vector.load %arg13[%c1_68, %c640_69] : memref<2x3840xf32, #tpu.memory_space<vmem>>, vector<1x128xf32>
    tpu.vector_store %arg13[%c1_68, %c640_69], %130 {strides = array<i32>} : memref<2x3840xf32, #tpu.memory_space<vmem>>, vector<1x128xf32>,
    %132 = vector.extract_strided_slice %119 {offsets = [6, 0], sizes = [1, 128], strides = [1, 1]} : vector<30x128xf32> to vector<1x128xf32>
    %c1_70 = arith.constant 1 : index
    %c768_71 = arith.constant 768 : index
    %133 = vector.load %arg13[%c1_70, %c768_71] : memref<2x3840xf32, #tpu.memory_space<vmem>>, vector<1x128xf32>
    tpu.vector_store %arg13[%c1_70, %c768_71], %132 {strides = array<i32>} : memref<2x3840xf32, #tpu.memory_space<vmem>>, vector<1x128xf32>,
    %134 = vector.extract_strided_slice %119 {offsets = [7, 0], sizes = [1, 128], strides = [1, 1]} : vector<30x128xf32> to vector<1x128xf32>
    %c1_72 = arith.constant 1 : index
    %c896_73 = arith.constant 896 : index
    %135 = vector.load %arg13[%c1_72, %c896_73] : memref<2x3840xf32, #tpu.memory_space<vmem>>, vector<1x128xf32>
    tpu.vector_store %arg13[%c1_72, %c896_73], %134 {strides = array<i32>} : memref<2x3840xf32, #tpu.memory_space<vmem>>, vector<1x128xf32>,
    %136 = vector.extract_strided_slice %119 {offsets = [8, 0], sizes = [1, 128], strides = [1, 1]} : vector<30x128xf32> to vector<1x128xf32>
    %c1_74 = arith.constant 1 : index
    %c1024_75 = arith.constant 1024 : index
    %137 = vector.load %arg13[%c1_74, %c1024_75] : memref<2x3840xf32, #tpu.memory_space<vmem>>, vector<1x128xf32>
    tpu.vector_store %arg13[%c1_74, %c1024_75], %136 {strides = array<i32>} : memref<2x3840xf32, #tpu.memory_space<vmem>>, vector<1x128xf32>,
    %138 = vector.extract_strided_slice %119 {offsets = [9, 0], sizes = [1, 128], strides = [1, 1]} : vector<30x128xf32> to vector<1x128xf32>
    %c1_76 = arith.constant 1 : index
    %c1152_77 = arith.constant 1152 : index
    %139 = vector.load %arg13[%c1_76, %c1152_77] : memref<2x3840xf32, #tpu.memory_space<vmem>>, vector<1x128xf32>
    tpu.vector_store %arg13[%c1_76, %c1152_77], %138 {strides = array<i32>} : memref<2x3840xf32, #tpu.memory_space<vmem>>, vector<1x128xf32>,
    %140 = vector.extract_strided_slice %119 {offsets = [10, 0], sizes = [1, 128], strides = [1, 1]} : vector<30x128xf32> to vector<1x128xf32>
    %c1_78 = arith.constant 1 : index
    %c1280_79 = arith.constant 1280 : index
    %141 = vector.load %arg13[%c1_78, %c1280_79] : memref<2x3840xf32, #tpu.memory_space<vmem>>, vector<1x128xf32>
    tpu.vector_store %arg13[%c1_78, %c1280_79], %140 {strides = array<i32>} : memref<2x3840xf32, #tpu.memory_space<vmem>>, vector<1x128xf32>,
    %142 = vector.extract_strided_slice %119 {offsets = [11, 0], sizes = [1, 128], strides = [1, 1]} : vector<30x128xf32> to vector<1x128xf32>
    %c1_80 = arith.constant 1 : index
    %c1408_81 = arith.constant 1408 : index
    %143 = vector.load %arg13[%c1_80, %c1408_81] : memref<2x3840xf32, #tpu.memory_space<vmem>>, vector<1x128xf32>
    tpu.vector_store %arg13[%c1_80, %c1408_81], %142 {strides = array<i32>} : memref<2x3840xf32, #tpu.memory_space<vmem>>, vector<1x128xf32>,
    %144 = vector.extract_strided_slice %119 {offsets = [12, 0], sizes = [1, 128], strides = [1, 1]} : vector<30x128xf32> to vector<1x128xf32>
    %c1_82 = arith.constant 1 : index
    %c1536_83 = arith.constant 1536 : index
    %145 = vector.load %arg13[%c1_82, %c1536_83] : memref<2x3840xf32, #tpu.memory_space<vmem>>, vector<1x128xf32>
    tpu.vector_store %arg13[%c1_82, %c1536_83], %144 {strides = array<i32>} : memref<2x3840xf32, #tpu.memory_space<vmem>>, vector<1x128xf32>,
    %146 = vector.extract_strided_slice %119 {offsets = [13, 0], sizes = [1, 128], strides = [1, 1]} : vector<30x128xf32> to vector<1x128xf32>
    %c1_84 = arith.constant 1 : index
    %c1664_85 = arith.constant 1664 : index
    %147 = vector.load %arg13[%c1_84, %c1664_85] : memref<2x3840xf32, #tpu.memory_space<vmem>>, vector<1x128xf32>
    tpu.vector_store %arg13[%c1_84, %c1664_85], %146 {strides = array<i32>} : memref<2x3840xf32, #tpu.memory_space<vmem>>, vector<1x128xf32>,
    %148 = vector.extract_strided_slice %119 {offsets = [14, 0], sizes = [1, 128], strides = [1, 1]} : vector<30x128xf32> to vector<1x128xf32>
    %c1_86 = arith.constant 1 : index
    %c1792_87 = arith.constant 1792 : index
    %149 = vector.load %arg13[%c1_86, %c1792_87] : memref<2x3840xf32, #tpu.memory_space<vmem>>, vector<1x128xf32>
    tpu.vector_store %arg13[%c1_86, %c1792_87], %148 {strides = array<i32>} : memref<2x3840xf32, #tpu.memory_space<vmem>>, vector<1x128xf32>,
    %150 = vector.extract_strided_slice %119 {offsets = [15, 0], sizes = [1, 128], strides = [1, 1]} : vector<30x128xf32> to vector<1x128xf32>
    %c1_88 = arith.constant 1 : index
    %c1920_89 = arith.constant 1920 : index
    %151 = vector.load %arg13[%c1_88, %c1920_89] : memref<2x3840xf32, #tpu.memory_space<vmem>>, vector<1x128xf32>
    tpu.vector_store %arg13[%c1_88, %c1920_89], %150 {strides = array<i32>} : memref<2x3840xf32, #tpu.memory_space<vmem>>, vector<1x128xf32>,
    %152 = vector.extract_strided_slice %119 {offsets = [16, 0], sizes = [1, 128], strides = [1, 1]} : vector<30x128xf32> to vector<1x128xf32>
    %c1_90 = arith.constant 1 : index
    %c2048_91 = arith.constant 2048 : index
    %153 = vector.load %arg13[%c1_90, %c2048_91] : memref<2x3840xf32, #tpu.memory_space<vmem>>, vector<1x128xf32>
    tpu.vector_store %arg13[%c1_90, %c2048_91], %152 {strides = array<i32>} : memref<2x3840xf32, #tpu.memory_space<vmem>>, vector<1x128xf32>,
    %154 = vector.extract_strided_slice %119 {offsets = [17, 0], sizes = [1, 128], strides = [1, 1]} : vector<30x128xf32> to vector<1x128xf32>
    %c1_92 = arith.constant 1 : index
    %c2176_93 = arith.constant 2176 : index
    %155 = vector.load %arg13[%c1_92, %c2176_93] : memref<2x3840xf32, #tpu.memory_space<vmem>>, vector<1x128xf32>
    tpu.vector_store %arg13[%c1_92, %c2176_93], %154 {strides = array<i32>} : memref<2x3840xf32, #tpu.memory_space<vmem>>, vector<1x128xf32>,
    %156 = vector.extract_strided_slice %119 {offsets = [18, 0], sizes = [1, 128], strides = [1, 1]} : vector<30x128xf32> to vector<1x128xf32>
    %c1_94 = arith.constant 1 : index
    %c2304_95 = arith.constant 2304 : index
    %157 = vector.load %arg13[%c1_94, %c2304_95] : memref<2x3840xf32, #tpu.memory_space<vmem>>, vector<1x128xf32>
    tpu.vector_store %arg13[%c1_94, %c2304_95], %156 {strides = array<i32>} : memref<2x3840xf32, #tpu.memory_space<vmem>>, vector<1x128xf32>,
    %158 = vector.extract_strided_slice %119 {offsets = [19, 0], sizes = [1, 128], strides = [1, 1]} : vector<30x128xf32> to vector<1x128xf32>
    %c1_96 = arith.constant 1 : index
    %c2432_97 = arith.constant 2432 : index
    %159 = vector.load %arg13[%c1_96, %c2432_97] : memref<2x3840xf32, #tpu.memory_space<vmem>>, vector<1x128xf32>
    tpu.vector_store %arg13[%c1_96, %c2432_97], %158 {strides = array<i32>} : memref<2x3840xf32, #tpu.memory_space<vmem>>, vector<1x128xf32>,
    %160 = vector.extract_strided_slice %119 {offsets = [20, 0], sizes = [1, 128], strides = [1, 1]} : vector<30x128xf32> to vector<1x128xf32>
    %c1_98 = arith.constant 1 : index
    %c2560_99 = arith.constant 2560 : index
    %161 = vector.load %arg13[%c1_98, %c2560_99] : memref<2x3840xf32, #tpu.memory_space<vmem>>, vector<1x128xf32>
    tpu.vector_store %arg13[%c1_98, %c2560_99], %160 {strides = array<i32>} : memref<2x3840xf32, #tpu.memory_space<vmem>>, vector<1x128xf32>,
    %162 = vector.extract_strided_slice %119 {offsets = [21, 0], sizes = [1, 128], strides = [1, 1]} : vector<30x128xf32> to vector<1x128xf32>
    %c1_100 = arith.constant 1 : index
    %c2688_101 = arith.constant 2688 : index
    %163 = vector.load %arg13[%c1_100, %c2688_101] : memref<2x3840xf32, #tpu.memory_space<vmem>>, vector<1x128xf32>
    tpu.vector_store %arg13[%c1_100, %c2688_101], %162 {strides = array<i32>} : memref<2x3840xf32, #tpu.memory_space<vmem>>, vector<1x128xf32>,
    %164 = vector.extract_strided_slice %119 {offsets = [22, 0], sizes = [1, 128], strides = [1, 1]} : vector<30x128xf32> to vector<1x128xf32>
    %c1_102 = arith.constant 1 : index
    %c2816_103 = arith.constant 2816 : index
    %165 = vector.load %arg13[%c1_102, %c2816_103] : memref<2x3840xf32, #tpu.memory_space<vmem>>, vector<1x128xf32>
    tpu.vector_store %arg13[%c1_102, %c2816_103], %164 {strides = array<i32>} : memref<2x3840xf32, #tpu.memory_space<vmem>>, vector<1x128xf32>,
    %166 = vector.extract_strided_slice %119 {offsets = [23, 0], sizes = [1, 128], strides = [1, 1]} : vector<30x128xf32> to vector<1x128xf32>
    %c1_104 = arith.constant 1 : index
    %c2944_105 = arith.constant 2944 : index
    %167 = vector.load %arg13[%c1_104, %c2944_105] : memref<2x3840xf32, #tpu.memory_space<vmem>>, vector<1x128xf32>
    tpu.vector_store %arg13[%c1_104, %c2944_105], %166 {strides = array<i32>} : memref<2x3840xf32, #tpu.memory_space<vmem>>, vector<1x128xf32>,
    %168 = vector.extract_strided_slice %119 {offsets = [24, 0], sizes = [1, 128], strides = [1, 1]} : vector<30x128xf32> to vector<1x128xf32>
    %c1_106 = arith.constant 1 : index
    %c3072_107 = arith.constant 3072 : index
    %169 = vector.load %arg13[%c1_106, %c3072_107] : memref<2x3840xf32, #tpu.memory_space<vmem>>, vector<1x128xf32>
    tpu.vector_store %arg13[%c1_106, %c3072_107], %168 {strides = array<i32>} : memref<2x3840xf32, #tpu.memory_space<vmem>>, vector<1x128xf32>,
    %170 = vector.extract_strided_slice %119 {offsets = [25, 0], sizes = [1, 128], strides = [1, 1]} : vector<30x128xf32> to vector<1x128xf32>
    %c1_108 = arith.constant 1 : index
    %c3200_109 = arith.constant 3200 : index
    %171 = vector.load %arg13[%c1_108, %c3200_109] : memref<2x3840xf32, #tpu.memory_space<vmem>>, vector<1x128xf32>
    tpu.vector_store %arg13[%c1_108, %c3200_109], %170 {strides = array<i32>} : memref<2x3840xf32, #tpu.memory_space<vmem>>, vector<1x128xf32>,
    %172 = vector.extract_strided_slice %119 {offsets = [26, 0], sizes = [1, 128], strides = [1, 1]} : vector<30x128xf32> to vector<1x128xf32>
    %c1_110 = arith.constant 1 : index
    %c3328_111 = arith.constant 3328 : index
    %173 = vector.load %arg13[%c1_110, %c3328_111] : memref<2x3840xf32, #tpu.memory_space<vmem>>, vector<1x128xf32>
    tpu.vector_store %arg13[%c1_110, %c3328_111], %172 {strides = array<i32>} : memref<2x3840xf32, #tpu.memory_space<vmem>>, vector<1x128xf32>,
    %174 = vector.extract_strided_slice %119 {offsets = [27, 0], sizes = [1, 128], strides = [1, 1]} : vector<30x128xf32> to vector<1x128xf32>
    %c1_112 = arith.constant 1 : index
    %c3456_113 = arith.constant 3456 : index
    %175 = vector.load %arg13[%c1_112, %c3456_113] : memref<2x3840xf32, #tpu.memory_space<vmem>>, vector<1x128xf32>
    tpu.vector_store %arg13[%c1_112, %c3456_113], %174 {strides = array<i32>} : memref<2x3840xf32, #tpu.memory_space<vmem>>, vector<1x128xf32>,
    %176 = vector.extract_strided_slice %119 {offsets = [28, 0], sizes = [1, 128], strides = [1, 1]} : vector<30x128xf32> to vector<1x128xf32>
    %c1_114 = arith.constant 1 : index
    %c3584_115 = arith.constant 3584 : index
    %177 = vector.load %arg13[%c1_114, %c3584_115] : memref<2x3840xf32, #tpu.memory_space<vmem>>, vector<1x128xf32>
    tpu.vector_store %arg13[%c1_114, %c3584_115], %176 {strides = array<i32>} : memref<2x3840xf32, #tpu.memory_space<vmem>>, vector<1x128xf32>,
    %178 = vector.extract_strided_slice %119 {offsets = [29, 0], sizes = [1, 128], strides = [1, 1]} : vector<30x128xf32> to vector<1x128xf32>
    %c1_116 = arith.constant 1 : index
    %c3712_117 = arith.constant 3712 : index
    %179 = vector.load %arg13[%c1_116, %c3712_117] : memref<2x3840xf32, #tpu.memory_space<vmem>>, vector<1x128xf32>
    tpu.vector_store %arg13[%c1_116, %c3712_117], %178 {strides = array<i32>} : memref<2x3840xf32, #tpu.memory_space<vmem>>, vector<1x128xf32>,
    %c0_118 = arith.constant 0 : index
    %c0_119 = arith.constant 0 : index
    %180 = vector.load %arg13[%c0_118, %c0_119] : memref<2x3840xf32, #tpu.memory_space<vmem>>, vector<2x3840xf32>
    %c0_120 = arith.constant 0 : index
    %c0_121 = arith.constant 0 : index
    %181 = vector.load %arg8[%c0_120, %c0_121] : memref<3840x128xf32, #tpu.memory_space<vmem>>, vector<3840x128xf32>
    %cst_122 = arith.constant dense<0.000000e+00> : vector<2x128xf32>
    %182 = tpu.matmul %180, %181, %cst_122 {dimension_numbers = #tpu.dot_dimension_numbers<[1], [0], [0], [1], [0, 0, 1, 1], [], []>} : vector<2x3840xf32>, vector<3840x128xf32>, vector<2x128xf32> -> vector<2x128xf32>
    %c0_123 = arith.constant 0 : index
    %c0_124 = arith.constant 0 : index
    %183 = vector.load %arg9[%c0_123, %c0_124] : memref<1x128xf32, #tpu.memory_space<vmem>>, vector<1x128xf32>
    %184 = vector.broadcast %183 : vector<1x128xf32> to vector<2x128xf32>
    %185 = arith.addf %182, %184 : vector<2x128xf32>
    %cst_125 = arith.constant 0.000000e+00 : f32
    %186 = vector.broadcast %cst_125 : f32 to vector<2x128xf32>
    %187 = arith.maximumf %185, %186 : vector<2x128xf32>
    %c0_126 = arith.constant 0 : index
    %c0_127 = arith.constant 0 : index
    %188 = vector.load %arg10[%c0_126, %c0_127] : memref<128x6xf32, #tpu.memory_space<vmem>>, vector<128x6xf32>
    %cst_128 = arith.constant dense<0.000000e+00> : vector<2x6xf32>
    %189 = tpu.matmul %187, %188, %cst_128 {dimension_numbers = #tpu.dot_dimension_numbers<[1], [0], [0], [1], [0, 0, 1, 1], [], []>} : vector<2x128xf32>, vector<128x6xf32>, vector<2x6xf32> -> vector<2x6xf32>
    %c0_129 = arith.constant 0 : index
    %c0_130 = arith.constant 0 : index
    %190 = vector.load %arg11[%c0_129, %c0_130] : memref<1x6xf32, #tpu.memory_space<vmem>>, vector<1x6xf32>
    %191 = vector.broadcast %190 : vector<1x6xf32> to vector<2x6xf32>
    %192 = arith.addf %189, %191 : vector<2x6xf32>
    %cst_131 = arith.constant 0.000000e+00 : f32
    %193 = vector.broadcast %cst_131 : f32 to vector<2x6xf32>
    %194 = arith.maximumf %192, %193 : vector<2x6xf32>
    %c0_132 = arith.constant 0 : index
    %c0_133 = arith.constant 0 : index
    %195 = vector.load %arg12[%c0_132, %c0_133] : memref<2x6xf32, #tpu.memory_space<vmem>>, vector<2x6xf32>
    tpu.vector_store %arg12[%c0_132, %c0_133], %194 {strides = array<i32>} : memref<2x6xf32, #tpu.memory_space<vmem>>, vector<2x6xf32>,
    return
  }
  func.func @transform_0(%arg0: i32) -> (i32, i32, i32) {
    %c0_i32 = arith.constant 0 : i32
    %c0_i32_0 = arith.constant 0 : i32
    %c0_i32_1 = arith.constant 0 : i32
    return %arg0, %c0_i32, %c0_i32_0 : i32, i32, i32
  }
  func.func @transform_1(%arg0: i32) -> (i32, i32) {
    %c0_i32 = arith.constant 0 : i32
    %c0_i32_0 = arith.constant 0 : i32
    %c0_i32_1 = arith.constant 0 : i32
    return %c0_i32, %c0_i32_0 : i32, i32
  }
  func.func @transform_2(%arg0: i32) -> (i32, i32) {
    %c0_i32 = arith.constant 0 : i32
    %c0_i32_0 = arith.constant 0 : i32
    %c0_i32_1 = arith.constant 0 : i32
    return %c0_i32, %c0_i32_0 : i32, i32
  }
  func.func @transform_3(%arg0: i32) -> (i32, i32) {
    %c0_i32 = arith.constant 0 : i32
    %c0_i32_0 = arith.constant 0 : i32
    %c0_i32_1 = arith.constant 0 : i32
    return %c0_i32, %c0_i32_0 : i32, i32
  }
  func.func @transform_4(%arg0: i32) -> (i32, i32) {
    %c0_i32 = arith.constant 0 : i32
    %c0_i32_0 = arith.constant 0 : i32
    %c0_i32_1 = arith.constant 0 : i32
    return %c0_i32, %c0_i32_0 : i32, i32
  }
  func.func @transform_5(%arg0: i32) -> (i32, i32) {
    %c0_i32 = arith.constant 0 : i32
    %c0_i32_0 = arith.constant 0 : i32
    %c0_i32_1 = arith.constant 0 : i32
    return %c0_i32, %c0_i32_0 : i32, i32
  }
  func.func @transform_6(%arg0: i32) -> (i32, i32) {
    %c0_i32 = arith.constant 0 : i32
    %c0_i32_0 = arith.constant 0 : i32
    %c0_i32_1 = arith.constant 0 : i32
    return %c0_i32, %c0_i32_0 : i32, i32
  }
  func.func @transform_7(%arg0: i32) -> (i32, i32) {
    %c0_i32 = arith.constant 0 : i32
    %c0_i32_0 = arith.constant 0 : i32
    %c0_i32_1 = arith.constant 0 : i32
    return %c0_i32, %c0_i32_0 : i32, i32
  }
  func.func @transform_8(%arg0: i32) -> (i32, i32) {
    %c0_i32 = arith.constant 0 : i32
    %c0_i32_0 = arith.constant 0 : i32
    %c0_i32_1 = arith.constant 0 : i32
    return %c0_i32, %c0_i32_0 : i32, i32
  }
  func.func @transform_9(%arg0: i32) -> (i32, i32) {
    %c0_i32 = arith.constant 0 : i32
    %c0_i32_0 = arith.constant 0 : i32
    %c0_i32_1 = arith.constant 0 : i32
    return %c0_i32, %c0_i32_0 : i32, i32
  }
  func.func @transform_10(%arg0: i32) -> (i32, i32) {
    %c0_i32 = arith.constant 0 : i32
    %c0_i32_0 = arith.constant 0 : i32
    %c0_i32_1 = arith.constant 0 : i32
    return %c0_i32, %c0_i32_0 : i32, i32
  }
  func.func @transform_11(%arg0: i32) -> (i32, i32) {
    %c0_i32 = arith.constant 0 : i32
    %c0_i32_0 = arith.constant 0 : i32
    return %arg0, %c0_i32 : i32, i32
  }
}

</mosaic_0001>

<llo_original>
// kernel: tile.13
$region0: #{tile.13}
  #allocation0 [shape = 's32[1]{0}', space=sflag, size = 0x4, scoped, tag = 'scoped memory for tile.13']
  %s0 = inlined_call_operand.vmem [shape: f32[64], index: 0, kind: input, shape index: {}]
  %s1 = inlined_call_operand.vmem [shape: f32[4,64], index: 1, kind: output, shape index: {}]
  // Predicated region
  $region2: #{tile.13} parent=0 // pred_check
    _
  $region3: #{tile.13} parent=0 // pred_check_branch
    %3 = sbr.rel (0) target = $region5
  $region4: #{tile.13} parent=0 // pred_region
    _
  $region5: #{tile.13} parent=0 // pred_fallthru
    _
  %v4 = vld [vmem:[%s0] ss:$0 sm:$0xff]
  %5 = vst [vmem:[%s1] sm:$0xf] %v4

// kernel: tile.14
$region0: #{tile.14}
  %s0 = inlined_call_operand.vmem [shape: f32[4,64], index: 0, kind: input, shape index: {}]
  %s1 = inlined_call_operand.vmem [shape: f32[1,256], index: 1, kind: output, shape index: {}]
  $region1: #{tile.14} parent=0
    #allocation0 [shape = 'u8[8192]{0}', space=vmem, size = 0x2000, scoped, tag = 'scoped mem for output reshape']
    #allocation1 [shape = 'u8[4096]{0}', space=vmem, size = 0x1000, scoped, tag = 'scoped mem for input reshape']
    %s3 = ssub.s32 16, 1
    %v4 = vld [vmem:[%s0] sm:%s3]
    %5 = vst [vmem:[#allocation1] sm:%s3] %v4
    %s6 = smov 3
    %v7 = vld [vmem:[#allocation1] ss:$2 sm:%s6]
    %vm8 = vcmask 523264
    %9 = vst.msk [vmem:[#allocation0] ss:$8 sm:$0x3] %vm8, %v7
    %s10 = scalar_lea.vmem [#allocation1], 1
    %s11 = smov 3
    %v12 = vld [vmem:[%s10] ss:$2 sm:%s11]
    %13 = vrot.lane.b32.xlu0 %v12, 64
    %v14 = vpop.permute.xlu0 %13
    %vm15 = vcmask 1048064
    %16 = vst.msk [vmem:[#allocation0] ss:$8 sm:$0x3] %vm15, %v14
    %s18 = ssub.s32 2, 1
    %v19 = vld [vmem:[#allocation0] sm:%s18]
    %s21 = ssub.s32 2, 1
    %22 = vst [vmem:[%s1] sm:%s21] %v19
    %s23 = scalar_lea.vmem [#allocation0], 8
    %v24 = vld [vmem:[%s23] sm:%s18]
    %s26 = ssub.s32 2, 1
    %s27 = scalar_lea.vmem %s1, 1
    %28 = vst [vmem:[%s27] sm:%s26] %v24

// kernel: cnn2_forward.1
$region0: #{cnn2_forward.1}
  #allocation0 [shape = 'u32[]', space=smem, size = 0x4, offset = 0x4, fixed_abs, tag = 'smem constant byte address 0x4 - core index']
  #allocation1 [shape = 'u32[72,128]{1,0:T(1,128)}', space=vmem, size = 0x9000, scoped, tag = 'internal scratch']
  #allocation2 [shape = 'f32[2,3840]{1,0:T(2,128)}', space=vmem, size = 0x7800, scoped, tag = 'scratch operand']
  %s0 = inlined_call_operand.vmem [shape: f32[2,32,16], index: 0, kind: input, shape index: {}]
  %s1 = inlined_call_operand.vmem [shape: f32[16,256], index: 1, kind: input, shape index: {}]
  %s2 = inlined_call_operand.vmem [shape: f32[16,256], index: 2, kind: input, shape index: {}]
  %s3 = inlined_call_operand.vmem [shape: f32[1,256], index: 3, kind: input, shape index: {}]
  %s4 = inlined_call_operand.vmem [shape: f32[256,256], index: 4, kind: input, shape index: {}]
  %s5 = inlined_call_operand.vmem [shape: f32[256,256], index: 5, kind: input, shape index: {}]
  %s6 = inlined_call_operand.vmem [shape: f32[1,256], index: 6, kind: input, shape index: {}]
  %s7 = inlined_call_operand.vmem [shape: f32[3840,128], index: 7, kind: input, shape index: {}]
  %s8 = inlined_call_operand.vmem [shape: f32[1,128], index: 8, kind: input, shape index: {}]
  %s9 = inlined_call_operand.vmem [shape: f32[128,6], index: 9, kind: input, shape index: {}]
  %s10 = inlined_call_operand.vmem [shape: f32[1,6], index: 10, kind: input, shape index: {}]
  %s11 = inlined_call_operand.hbm [shape: f32[2,6], index: 11, kind: output, shape index: {}]
  %s12 = sld [smem:[#allocation0]]
  $region54: #{cnn2_forward.1} parent=0
    _
  %s14 = ssub.s32 1, %s12
  %s15 = scalar_select 0, %s14, %s12
  $region1: #{cnn2_forward.1} parent=0
    #allocation3 [shape = 'u8[1024]{0}', space=vmem, size = 0x400, scoped, tag = 'output window, operand 0, single buffered']
    #allocation4 [shape = 's32[1]{0}', space=sflag, size = 0x4, scoped, tag = 'scoped memory for cnn2_forward.1']
    %16 = vsyncpa [#allocation4], 0
    // Predicated region
    $region2: #{cnn2_forward.1} parent=1 // pred_check
      _
    $region3: #{cnn2_forward.1} parent=1 // pred_check_branch
      %18 = sbr.rel (0) target = $region5
    $region4: #{cnn2_forward.1} parent=1 // pred_region
      _
    $region5: #{cnn2_forward.1} parent=1 // pred_fallthru
      _
    // Predicated region
    $region6: #{cnn2_forward.1} parent=1 // pred_check
      _
    $region7: #{cnn2_forward.1} parent=1 // pred_check_branch
      %20 = sbr.rel (0) target = $region9
    $region8: #{cnn2_forward.1} parent=1 // pred_region
      _
    $region9: #{cnn2_forward.1} parent=1 // pred_fallthru
      _
    // Predicated region
    $region10: #{cnn2_forward.1} parent=1 // pred_check
      _
    $region11: #{cnn2_forward.1} parent=1 // pred_check_branch
      %22 = sbr.rel (0) target = $region13
    $region12: #{cnn2_forward.1} parent=1 // pred_region
      _
    $region13: #{cnn2_forward.1} parent=1 // pred_fallthru
      _
    // Predicated region
    $region14: #{cnn2_forward.1} parent=1 // pred_check
      _
    $region15: #{cnn2_forward.1} parent=1 // pred_check_branch
      %24 = sbr.rel (0) target = $region17
    $region16: #{cnn2_forward.1} parent=1 // pred_region
      _
    $region17: #{cnn2_forward.1} parent=1 // pred_fallthru
      _
    // Predicated region
    $region18: #{cnn2_forward.1} parent=1 // pred_check
      _
    $region19: #{cnn2_forward.1} parent=1 // pred_check_branch
      %26 = sbr.rel (0) target = $region21
    $region20: #{cnn2_forward.1} parent=1 // pred_region
      _
    $region21: #{cnn2_forward.1} parent=1 // pred_fallthru
      _
    // Predicated region
    $region22: #{cnn2_forward.1} parent=1 // pred_check
      _
    $region23: #{cnn2_forward.1} parent=1 // pred_check_branch
      %28 = sbr.rel (0) target = $region25
    $region24: #{cnn2_forward.1} parent=1 // pred_region
      _
    $region25: #{cnn2_forward.1} parent=1 // pred_fallthru
      _
    // Predicated region
    $region26: #{cnn2_forward.1} parent=1 // pred_check
      _
    $region27: #{cnn2_forward.1} parent=1 // pred_check_branch
      %30 = sbr.rel (0) target = $region29
    $region28: #{cnn2_forward.1} parent=1 // pred_region
      _
    $region29: #{cnn2_forward.1} parent=1 // pred_fallthru
      _
    // Predicated region
    $region30: #{cnn2_forward.1} parent=1 // pred_check
      _
    $region31: #{cnn2_forward.1} parent=1 // pred_check_branch
      %32 = sbr.rel (0) target = $region33
    $region32: #{cnn2_forward.1} parent=1 // pred_region
      _
    $region33: #{cnn2_forward.1} parent=1 // pred_fallthru
      _
    // Predicated region
    $region34: #{cnn2_forward.1} parent=1 // pred_check
      _
    $region35: #{cnn2_forward.1} parent=1 // pred_check_branch
      %34 = sbr.rel (0) target = $region37
    $region36: #{cnn2_forward.1} parent=1 // pred_region
      _
    $region37: #{cnn2_forward.1} parent=1 // pred_fallthru
      _
    // Predicated region
    $region38: #{cnn2_forward.1} parent=1 // pred_check
      _
    $region39: #{cnn2_forward.1} parent=1 // pred_check_branch
      %36 = sbr.rel (0) target = $region41
    $region40: #{cnn2_forward.1} parent=1 // pred_region
      _
    $region41: #{cnn2_forward.1} parent=1 // pred_fallthru
      _
    // Predicated region
    $region42: #{cnn2_forward.1} parent=1 // pred_check
      _
    $region43: #{cnn2_forward.1} parent=1 // pred_check_branch
      %38 = sbr.rel (0) target = $region45
    $region44: #{cnn2_forward.1} parent=1 // pred_region
      _
    $region45: #{cnn2_forward.1} parent=1 // pred_fallthru
      _
    %v39 = vld [vmem:[%s1] sm:$0xff]
    %v40 = vld [vmem:[%s1 + $0x8] sm:$0xff]
    %v41 = vld [vmem:[%s1 + $0x10] sm:$0xff]
    %v42 = vld [vmem:[%s1 + $0x18] sm:$0xff]
    %v43 = vld [vmem:[%s2] sm:$0xff]
    %v44 = vld [vmem:[%s2 + $0x8] sm:$0xff]
    %v45 = vld [vmem:[%s2 + $0x10] sm:$0xff]
    %v46 = vld [vmem:[%s2 + $0x18] sm:$0xff]
    %v47 = vld [vmem:[%s4] sm:$0xff]
    %v48 = vld [vmem:[%s4 + $0x8] sm:$0xff]
    %v49 = vld [vmem:[%s4 + $0x10] sm:$0xff]
    %v50 = vld [vmem:[%s4 + $0x18] sm:$0xff]
    %v51 = vld [vmem:[%s4 + $0x20] sm:$0xff]
    %v52 = vld [vmem:[%s4 + $0x28] sm:$0xff]
    %v53 = vld [vmem:[%s4 + $0x30] sm:$0xff]
    %v54 = vld [vmem:[%s4 + $0x38] sm:$0xff]
    %v55 = vld [vmem:[%s4 + $0x40] sm:$0xff]
    %v56 = vld [vmem:[%s4 + $0x48] sm:$0xff]
    %v57 = vld [vmem:[%s4 + $0x50] sm:$0xff]
    %v58 = vld [vmem:[%s4 + $0x58] sm:$0xff]
    %v59 = vld [vmem:[%s4 + $0x60] sm:$0xff]
    %v60 = vld [vmem:[%s4 + $0x68] sm:$0xff]
    %v61 = vld [vmem:[%s4 + $0x70] sm:$0xff]
    %v62 = vld [vmem:[%s4 + $0x78] sm:$0xff]
    %v63 = vld [vmem:[%s4 + $0x80] sm:$0xff]
    %v64 = vld [vmem:[%s4 + $0x88] sm:$0xff]
    %v65 = vld [vmem:[%s4 + $0x90] sm:$0xff]
    %v66 = vld [vmem:[%s4 + $0x98] sm:$0xff]
    %v67 = vld [vmem:[%s4 + $0xa0] sm:$0xff]
    %v68 = vld [vmem:[%s4 + $0xa8] sm:$0xff]
    %v69 = vld [vmem:[%s4 + $0xb0] sm:$0xff]
    %v70 = vld [vmem:[%s4 + $0xb8] sm:$0xff]
    %v71 = vld [vmem:[%s4 + $0xc0] sm:$0xff]
    %v72 = vld [vmem:[%s4 + $0xc8] sm:$0xff]
    %v73 = vld [vmem:[%s4 + $0xd0] sm:$0xff]
    %v74 = vld [vmem:[%s4 + $0xd8] sm:$0xff]
    %v75 = vld [vmem:[%s4 + $0xe0] sm:$0xff]
    %v76 = vld [vmem:[%s4 + $0xe8] sm:$0xff]
    %v77 = vld [vmem:[%s4 + $0xf0] sm:$0xff]
    %v78 = vld [vmem:[%s4 + $0xf8] sm:$0xff]
    %v79 = vld [vmem:[%s4 + $0x100] sm:$0xff]
    %v80 = vld [vmem:[%s4 + $0x108] sm:$0xff]
    %v81 = vld [vmem:[%s4 + $0x110] sm:$0xff]
    %v82 = vld [vmem:[%s4 + $0x118] sm:$0xff]
    %v83 = vld [vmem:[%s4 + $0x120] sm:$0xff]
    %v84 = vld [vmem:[%s4 + $0x128] sm:$0xff]
    %v85 = vld [vmem:[%s4 + $0x130] sm:$0xff]
    %v86 = vld [vmem:[%s4 + $0x138] sm:$0xff]
    %v87 = vld [vmem:[%s4 + $0x140] sm:$0xff]
    %v88 = vld [vmem:[%s4 + $0x148] sm:$0xff]
    %v89 = vld [vmem:[%s4 + $0x150] sm:$0xff]
    %v90 = vld [vmem:[%s4 + $0x158] sm:$0xff]
    %v91 = vld [vmem:[%s4 + $0x160] sm:$0xff]
    %v92 = vld [vmem:[%s4 + $0x168] sm:$0xff]
    %v93 = vld [vmem:[%s4 + $0x170] sm:$0xff]
    %v94 = vld [vmem:[%s4 + $0x178] sm:$0xff]
    %v95 = vld [vmem:[%s4 + $0x180] sm:$0xff]
    %v96 = vld [vmem:[%s4 + $0x188] sm:$0xff]
    %v97 = vld [vmem:[%s4 + $0x190] sm:$0xff]
    %v98 = vld [vmem:[%s4 + $0x198] sm:$0xff]
    %v99 = vld [vmem:[%s4 + $0x1a0] sm:$0xff]
    %v100 = vld [vmem:[%s4 + $0x1a8] sm:$0xff]
    %v101 = vld [vmem:[%s4 + $0x1b0] sm:$0xff]
    %v102 = vld [vmem:[%s4 + $0x1b8] sm:$0xff]
    %v103 = vld [vmem:[%s4 + $0x1c0] sm:$0xff]
    %v104 = vld [vmem:[%s4 + $0x1c8] sm:$0xff]
    %v105 = vld [vmem:[%s4 + $0x1d0] sm:$0xff]
    %v106 = vld [vmem:[%s4 + $0x1d8] sm:$0xff]
    %v107 = vld [vmem:[%s4 + $0x1e0] sm:$0xff]
    %v108 = vld [vmem:[%s4 + $0x1e8] sm:$0xff]
    %v109 = vld [vmem:[%s4 + $0x1f0] sm:$0xff]
    %v110 = vld [vmem:[%s4 + $0x1f8] sm:$0xff]
    %v111 = vld [vmem:[%s5] sm:$0xff]
    %v112 = vld [vmem:[%s5 + $0x8] sm:$0xff]
    %v113 = vld [vmem:[%s5 + $0x10] sm:$0xff]
    %v114 = vld [vmem:[%s5 + $0x18] sm:$0xff]
    %v115 = vld [vmem:[%s5 + $0x20] sm:$0xff]
    %v116 = vld [vmem:[%s5 + $0x28] sm:$0xff]
    %v117 = vld [vmem:[%s5 + $0x30] sm:$0xff]
    %v118 = vld [vmem:[%s5 + $0x38] sm:$0xff]
    %v119 = vld [vmem:[%s5 + $0x40] sm:$0xff]
    %v120 = vld [vmem:[%s5 + $0x48] sm:$0xff]
    %v121 = vld [vmem:[%s5 + $0x50] sm:$0xff]
    %v122 = vld [vmem:[%s5 + $0x58] sm:$0xff]
    %v123 = vld [vmem:[%s5 + $0x60] sm:$0xff]
    %v124 = vld [vmem:[%s5 + $0x68] sm:$0xff]
    %v125 = vld [vmem:[%s5 + $0x70] sm:$0xff]
    %v126 = vld [vmem:[%s5 + $0x78] sm:$0xff]
    %v127 = vld [vmem:[%s5 + $0x80] sm:$0xff]
    %v128 = vld [vmem:[%s5 + $0x88] sm:$0xff]
    %v129 = vld [vmem:[%s5 + $0x90] sm:$0xff]
    %v130 = vld [vmem:[%s5 + $0x98] sm:$0xff]
    %v131 = vld [vmem:[%s5 + $0xa0] sm:$0xff]
    %v132 = vld [vmem:[%s5 + $0xa8] sm:$0xff]
    %v133 = vld [vmem:[%s5 + $0xb0] sm:$0xff]
    %v134 = vld [vmem:[%s5 + $0xb8] sm:$0xff]
    %v135 = vld [vmem:[%s5 + $0xc0] sm:$0xff]
    %v136 = vld [vmem:[%s5 + $0xc8] sm:$0xff]
    %v137 = vld [vmem:[%s5 + $0xd0] sm:$0xff]
    %v138 = vld [vmem:[%s5 + $0xd8] sm:$0xff]
    %v139 = vld [vmem:[%s5 + $0xe0] sm:$0xff]
    %v140 = vld [vmem:[%s5 + $0xe8] sm:$0xff]
    %v141 = vld [vmem:[%s5 + $0xf0] sm:$0xff]
    %v142 = vld [vmem:[%s5 + $0xf8] sm:$0xff]
    %v143 = vld [vmem:[%s5 + $0x100] sm:$0xff]
    %v144 = vld [vmem:[%s5 + $0x108] sm:$0xff]
    %v145 = vld [vmem:[%s5 + $0x110] sm:$0xff]
    %v146 = vld [vmem:[%s5 + $0x118] sm:$0xff]
    %v147 = vld [vmem:[%s5 + $0x120] sm:$0xff]
    %v148 = vld [vmem:[%s5 + $0x128] sm:$0xff]
    %v149 = vld [vmem:[%s5 + $0x130] sm:$0xff]
    %v150 = vld [vmem:[%s5 + $0x138] sm:$0xff]
    %v151 = vld [vmem:[%s5 + $0x140] sm:$0xff]
    %v152 = vld [vmem:[%s5 + $0x148] sm:$0xff]
    %v153 = vld [vmem:[%s5 + $0x150] sm:$0xff]
    %v154 = vld [vmem:[%s5 + $0x158] sm:$0xff]
    %v155 = vld [vmem:[%s5 + $0x160] sm:$0xff]
    %v156 = vld [vmem:[%s5 + $0x168] sm:$0xff]
    %v157 = vld [vmem:[%s5 + $0x170] sm:$0xff]
    %v158 = vld [vmem:[%s5 + $0x178] sm:$0xff]
    %v159 = vld [vmem:[%s5 + $0x180] sm:$0xff]
    %v160 = vld [vmem:[%s5 + $0x188] sm:$0xff]
    %v161 = vld [vmem:[%s5 + $0x190] sm:$0xff]
    %v162 = vld [vmem:[%s5 + $0x198] sm:$0xff]
    %v163 = vld [vmem:[%s5 + $0x1a0] sm:$0xff]
    %v164 = vld [vmem:[%s5 + $0x1a8] sm:$0xff]
    %v165 = vld [vmem:[%s5 + $0x1b0] sm:$0xff]
    %v166 = vld [vmem:[%s5 + $0x1b8] sm:$0xff]
    %v167 = vld [vmem:[%s5 + $0x1c0] sm:$0xff]
    %v168 = vld [vmem:[%s5 + $0x1c8] sm:$0xff]
    %v169 = vld [vmem:[%s5 + $0x1d0] sm:$0xff]
    %v170 = vld [vmem:[%s5 + $0x1d8] sm:$0xff]
    %v171 = vld [vmem:[%s5 + $0x1e0] sm:$0xff]
    %v172 = vld [vmem:[%s5 + $0x1e8] sm:$0xff]
    %v173 = vld [vmem:[%s5 + $0x1f0] sm:$0xff]
    %v174 = vld [vmem:[%s5 + $0x1f8] sm:$0xff]
    %v175 = vld [vmem:[%s3] sm:$0x3]
    %v176 = vld [vmem:[%s6] sm:$0x3]
    %v177 = vld [vmem:[%s0] sm:$0xff]
    %v178 = vld [vmem:[%s0 + $0x8] sm:$0xff]
    %v179 = vld [vmem:[%s0 + $0x10] sm:$0xff]
    %v180 = vld [vmem:[%s0 + $0x18] sm:$0xff]
    %vm185 = vcmask 1046528
    %v186 = vrot.slane %v177, 1
    %v187 = vrot.slane %v178, 1
    %v188 = vsel %vm185, %v186, %v187
    %v189 = vrot.slane %v179, 1
    %v190 = vsel %vm185, %v187, %v189
    %v191 = vrot.slane %v180, 1
    %v192 = vsel %vm185, %v189, %v191
    %vm193 = vcmask 130048
    %v194 = vsel %vm193, %v188, 0
    %v196 = vsel %vm193, %v190, 0
    %v198 = vsel %vm193, %v192, 0
    %v200 = vsel %vm193, %v191, 0
    %202 = vmatpush.msra.mxu0 0.0
    %203 = vmatpush.msra.mxu0 0.0
    %204 = vmatpush.msra.mxu0 0.0
    %205 = vmatpush.msra.mxu0 0.0
    %206 = vmatpush.msra.mxu0 0.0
    %207 = vmatpush.msra.mxu0 0.0
    %208 = vmatpush.msra.mxu0 0.0
    %209 = vmatpush.msra.mxu0 0.0
    %210 = vmatpush.msra.mxu0 0.0
    %211 = vmatpush.msra.mxu0 0.0
    %212 = vmatpush.msra.mxu0 0.0
    %213 = vmatpush.msra.mxu0 0.0
    %214 = vmatpush.msra.mxu0 0.0
    %215 = vmatpush.msra.mxu0 0.0
    %216 = vmatpush.msra.mxu0 %v45
    %217 = vmatpush.msra.mxu0 %v43
    %218 = vmatmul.f32.gmra.mxu0 %v194
    %v219 = vpop.f32.mrf.mxu0
    %v220 = vadd.f32 0.0, %v219
    %221 = vmatmul.f32.gmra.mxu0 %v196
    %v222 = vpop.f32.mrf.mxu0
    %v223 = vadd.f32 0.0, %v222
    %224 = vmatmul.f32.gmra.mxu0 %v198
    %v225 = vpop.f32.mrf.mxu0
    %v226 = vadd.f32 0.0, %v225
    %227 = vmatmul.f32.gmra.mxu0 %v200
    %v228 = vpop.f32.mrf.mxu0
    %v229 = vadd.f32 0.0, %v228
    %230 = vdwg.mxu0
    %231 = vmatpush.msra.mxu0 0.0
    %232 = vmatpush.msra.mxu0 0.0
    %233 = vmatpush.msra.mxu0 0.0
    %234 = vmatpush.msra.mxu0 0.0
    %235 = vmatpush.msra.mxu0 0.0
    %236 = vmatpush.msra.mxu0 0.0
    %237 = vmatpush.msra.mxu0 0.0
    %238 = vmatpush.msra.mxu0 0.0
    %239 = vmatpush.msra.mxu0 0.0
    %240 = vmatpush.msra.mxu0 0.0
    %241 = vmatpush.msra.mxu0 0.0
    %242 = vmatpush.msra.mxu0 0.0
    %243 = vmatpush.msra.mxu0 0.0
    %244 = vmatpush.msra.mxu0 0.0
    %245 = vmatpush.msra.mxu0 %v46
    %246 = vmatpush.msra.mxu0 %v44
    %247 = vmatmul.f32.gmra.mxu0 %v194
    %v248 = vpop.f32.mrf.mxu0
    %v249 = vadd.f32 0.0, %v248
    %250 = vmatmul.f32.gmra.mxu0 %v196
    %v251 = vpop.f32.mrf.mxu0
    %v252 = vadd.f32 0.0, %v251
    %253 = vmatmul.f32.gmra.mxu0 %v198
    %v254 = vpop.f32.mrf.mxu0
    %v255 = vadd.f32 0.0, %v254
    %256 = vmatmul.f32.gmra.mxu0 %v200
    %v257 = vpop.f32.mrf.mxu0
    %v258 = vadd.f32 0.0, %v257
    %259 = vdwg.mxu0
    %v260 = vsel %vm193, %v177, 0
    %v262 = vsel %vm193, %v178, 0
    %v264 = vsel %vm193, %v179, 0
    %v266 = vsel %vm193, %v180, 0
    %268 = vmatpush.msra.mxu0 0.0
    %269 = vmatpush.msra.mxu0 0.0
    %270 = vmatpush.msra.mxu0 0.0
    %271 = vmatpush.msra.mxu0 0.0
    %272 = vmatpush.msra.mxu0 0.0
    %273 = vmatpush.msra.mxu0 0.0
    %274 = vmatpush.msra.mxu0 0.0
    %275 = vmatpush.msra.mxu0 0.0
    %276 = vmatpush.msra.mxu0 0.0
    %277 = vmatpush.msra.mxu0 0.0
    %278 = vmatpush.msra.mxu0 0.0
    %279 = vmatpush.msra.mxu0 0.0
    %280 = vmatpush.msra.mxu0 0.0
    %281 = vmatpush.msra.mxu0 0.0
    %282 = vmatpush.msra.mxu0 %v41
    %283 = vmatpush.msra.mxu0 %v39
    %284 = vmatmul.f32.gmra.mxu0 %v260
    %v285 = vpop.f32.mrf.mxu0
    %v286 = vadd.f32 %v220, %v285
    %287 = vmatmul.f32.gmra.mxu0 %v262
    %v288 = vpop.f32.mrf.mxu0
    %v289 = vadd.f32 %v223, %v288
    %290 = vmatmul.f32.gmra.mxu0 %v264
    %v291 = vpop.f32.mrf.mxu0
    %v292 = vadd.f32 %v226, %v291
    %293 = vmatmul.f32.gmra.mxu0 %v266
    %v294 = vpop.f32.mrf.mxu0
    %v295 = vadd.f32 %v229, %v294
    %296 = vdwg.mxu0
    %297 = vmatpush.msra.mxu0 0.0
    %298 = vmatpush.msra.mxu0 0.0
    %299 = vmatpush.msra.mxu0 0.0
    %300 = vmatpush.msra.mxu0 0.0
    %301 = vmatpush.msra.mxu0 0.0
    %302 = vmatpush.msra.mxu0 0.0
    %303 = vmatpush.msra.mxu0 0.0
    %304 = vmatpush.msra.mxu0 0.0
    %305 = vmatpush.msra.mxu0 0.0
    %306 = vmatpush.msra.mxu0 0.0
    %307 = vmatpush.msra.mxu0 0.0
    %308 = vmatpush.msra.mxu0 0.0
    %309 = vmatpush.msra.mxu0 0.0
    %310 = vmatpush.msra.mxu0 0.0
    %311 = vmatpush.msra.mxu0 %v42
    %312 = vmatpush.msra.mxu0 %v40
    %313 = vmatmul.f32.gmra.mxu0 %v260
    %v314 = vpop.f32.mrf.mxu0
    %v315 = vadd.f32 %v249, %v314
    %316 = vmatmul.f32.gmra.mxu0 %v262
    %v317 = vpop.f32.mrf.mxu0
    %v318 = vadd.f32 %v252, %v317
    %319 = vmatmul.f32.gmra.mxu0 %v264
    %v320 = vpop.f32.mrf.mxu0
    %v321 = vadd.f32 %v255, %v320
    %322 = vmatmul.f32.gmra.mxu0 %v266
    %v323 = vpop.f32.mrf.mxu0
    %v324 = vadd.f32 %v258, %v323
    %325 = vdwg.mxu0
    %v327 = vperm.slane %v175, 0
    %v328 = vperm.slane %v175, 1
    %v331 = vadd.f32 %v286, %v327
    %v332 = vadd.f32 %v315, %v328
    %v333 = vadd.f32 %v289, %v327
    %v334 = vadd.f32 %v318, %v328
    %v335 = vadd.f32 %v292, %v327
    %v336 = vadd.f32 %v321, %v328
    %v337 = vadd.f32 %v295, %v327
    %v338 = vadd.f32 %v324, %v328
    %v339 = vmax.f32 %v331, 0.0
    %v340 = vmax.f32 %v332, 0.0
    %v341 = vmax.f32 %v333, 0.0
    %v342 = vmax.f32 %v334, 0.0
    %v343 = vmax.f32 %v335, 0.0
    %v344 = vmax.f32 %v336, 0.0
    %v345 = vmax.f32 %v337, 0.0
    %v346 = vmax.f32 %v338, 0.0
    %v355 = vrot.slane %v339, 1
    %v356 = vrot.slane %v341, 1
    %v357 = vsel %vm185, %v355, %v356
    %v358 = vrot.slane %v340, 1
    %v359 = vrot.slane %v342, 1
    %v360 = vsel %vm185, %v358, %v359
    %v361 = vrot.slane %v343, 1
    %v362 = vsel %vm185, %v356, %v361
    %v363 = vrot.slane %v344, 1
    %v364 = vsel %vm185, %v359, %v363
    %v365 = vrot.slane %v345, 1
    %v366 = vsel %vm185, %v361, %v365
    %v367 = vrot.slane %v346, 1
    %v368 = vsel %vm185, %v363, %v367
    %377 = vmatpush.msra.mxu0 %v141
    %378 = vmatpush.msra.mxu0 %v139
    %379 = vmatpush.msra.mxu0 %v137
    %380 = vmatpush.msra.mxu0 %v135
    %381 = vmatpush.msra.mxu0 %v133
    %382 = vmatpush.msra.mxu0 %v131
    %383 = vmatpush.msra.mxu0 %v129
    %384 = vmatpush.msra.mxu0 %v127
    %385 = vmatpush.msra.mxu0 %v125
    %386 = vmatpush.msra.mxu0 %v123
    %387 = vmatpush.msra.mxu0 %v121
    %388 = vmatpush.msra.mxu0 %v119
    %389 = vmatpush.msra.mxu0 %v117
    %390 = vmatpush.msra.mxu0 %v115
    %391 = vmatpush.msra.mxu0 %v113
    %392 = vmatpush.msra.mxu0 %v111
    %393 = vmatmul.f32.gmra.mxu0 %v357
    %v394 = vpop.f32.mrf.mxu0
    %v395 = vadd.f32 0.0, %v394
    %396 = vmatmul.f32.gmra.mxu0 %v362
    %v397 = vpop.f32.mrf.mxu0
    %v398 = vadd.f32 0.0, %v397
    %399 = vmatmul.f32.gmra.mxu0 %v366
    %v400 = vpop.f32.mrf.mxu0
    %v401 = vadd.f32 0.0, %v400
    %402 = vmatmul.f32.gmra.mxu0 %v365
    %v403 = vpop.f32.mrf.mxu0
    %v404 = vadd.f32 0.0, %v403
    %405 = vdwg.mxu0
    %406 = vmatpush.msra.mxu0 %v173
    %407 = vmatpush.msra.mxu0 %v171
    %408 = vmatpush.msra.mxu0 %v169
    %409 = vmatpush.msra.mxu0 %v167
    %410 = vmatpush.msra.mxu0 %v165
    %411 = vmatpush.msra.mxu0 %v163
    %412 = vmatpush.msra.mxu0 %v161
    %413 = vmatpush.msra.mxu0 %v159
    %414 = vmatpush.msra.mxu0 %v157
    %415 = vmatpush.msra.mxu0 %v155
    %416 = vmatpush.msra.mxu0 %v153
    %417 = vmatpush.msra.mxu0 %v151
    %418 = vmatpush.msra.mxu0 %v149
    %419 = vmatpush.msra.mxu0 %v147
    %420 = vmatpush.msra.mxu0 %v145
    %421 = vmatpush.msra.mxu0 %v143
    %422 = vmatmul.f32.gmra.mxu0 %v360
    %v423 = vpop.f32.mrf.mxu0
    %v424 = vadd.f32 %v395, %v423
    %425 = vmatmul.f32.gmra.mxu0 %v364
    %v426 = vpop.f32.mrf.mxu0
    %v427 = vadd.f32 %v398, %v426
    %428 = vmatmul.f32.gmra.mxu0 %v368
    %v429 = vpop.f32.mrf.mxu0
    %v430 = vadd.f32 %v401, %v429
    %431 = vmatmul.f32.gmra.mxu0 %v367
    %v432 = vpop.f32.mrf.mxu0
    %v433 = vadd.f32 %v404, %v432
    %434 = vdwg.mxu0
    %435 = vmatpush.msra.mxu0 %v142
    %436 = vmatpush.msra.mxu0 %v140
    %437 = vmatpush.msra.mxu0 %v138
    %438 = vmatpush.msra.mxu0 %v136
    %439 = vmatpush.msra.mxu0 %v134
    %440 = vmatpush.msra.mxu0 %v132
    %441 = vmatpush.msra.mxu0 %v130
    %442 = vmatpush.msra.mxu0 %v128
    %443 = vmatpush.msra.mxu0 %v126
    %444 = vmatpush.msra.mxu0 %v124
    %445 = vmatpush.msra.mxu0 %v122
    %446 = vmatpush.msra.mxu0 %v120
    %447 = vmatpush.msra.mxu0 %v118
    %448 = vmatpush.msra.mxu0 %v116
    %449 = vmatpush.msra.mxu0 %v114
    %450 = vmatpush.msra.mxu0 %v112
    %451 = vmatmul.f32.gmra.mxu0 %v357
    %v452 = vpop.f32.mrf.mxu0
    %v453 = vadd.f32 0.0, %v452
    %454 = vmatmul.f32.gmra.mxu0 %v362
    %v455 = vpop.f32.mrf.mxu0
    %v456 = vadd.f32 0.0, %v455
    %457 = vmatmul.f32.gmra.mxu0 %v366
    %v458 = vpop.f32.mrf.mxu0
    %v459 = vadd.f32 0.0, %v458
    %460 = vmatmul.f32.gmra.mxu0 %v365
    %v461 = vpop.f32.mrf.mxu0
    %v462 = vadd.f32 0.0, %v461
    %463 = vdwg.mxu0
    %464 = vmatpush.msra.mxu0 %v174
    %465 = vmatpush.msra.mxu0 %v172
    %466 = vmatpush.msra.mxu0 %v170
    %467 = vmatpush.msra.mxu0 %v168
    %468 = vmatpush.msra.mxu0 %v166
    %469 = vmatpush.msra.mxu0 %v164
    %470 = vmatpush.msra.mxu0 %v162
    %471 = vmatpush.msra.mxu0 %v160
    %472 = vmatpush.msra.mxu0 %v158
    %473 = vmatpush.msra.mxu0 %v156
    %474 = vmatpush.msra.mxu0 %v154
    %475 = vmatpush.msra.mxu0 %v152
    %476 = vmatpush.msra.mxu0 %v150
    %477 = vmatpush.msra.mxu0 %v148
    %478 = vmatpush.msra.mxu0 %v146
    %479 = vmatpush.msra.mxu0 %v144
    %480 = vmatmul.f32.gmra.mxu0 %v360
    %v481 = vpop.f32.mrf.mxu0
    %v482 = vadd.f32 %v453, %v481
    %483 = vmatmul.f32.gmra.mxu0 %v364
    %v484 = vpop.f32.mrf.mxu0
    %v485 = vadd.f32 %v456, %v484
    %486 = vmatmul.f32.gmra.mxu0 %v368
    %v487 = vpop.f32.mrf.mxu0
    %v488 = vadd.f32 %v459, %v487
    %489 = vmatmul.f32.gmra.mxu0 %v367
    %v490 = vpop.f32.mrf.mxu0
    %v491 = vadd.f32 %v462, %v490
    %492 = vdwg.mxu0
    %493 = vmatpush.msra.mxu0 %v77
    %494 = vmatpush.msra.mxu0 %v75
    %495 = vmatpush.msra.mxu0 %v73
    %496 = vmatpush.msra.mxu0 %v71
    %497 = vmatpush.msra.mxu0 %v69
    %498 = vmatpush.msra.mxu0 %v67
    %499 = vmatpush.msra.mxu0 %v65
    %500 = vmatpush.msra.mxu0 %v63
    %501 = vmatpush.msra.mxu0 %v61
    %502 = vmatpush.msra.mxu0 %v59
    %503 = vmatpush.msra.mxu0 %v57
    %504 = vmatpush.msra.mxu0 %v55
    %505 = vmatpush.msra.mxu0 %v53
    %506 = vmatpush.msra.mxu0 %v51
    %507 = vmatpush.msra.mxu0 %v49
    %508 = vmatpush.msra.mxu0 %v47
    %509 = vmatmul.f32.gmra.mxu0 %v339
    %v510 = vpop.f32.mrf.mxu0
    %v511 = vadd.f32 %v424, %v510
    %512 = vmatmul.f32.gmra.mxu0 %v341
    %v513 = vpop.f32.mrf.mxu0
    %v514 = vadd.f32 %v427, %v513
    %515 = vmatmul.f32.gmra.mxu0 %v343
    %v516 = vpop.f32.mrf.mxu0
    %v517 = vadd.f32 %v430, %v516
    %518 = vmatmul.f32.gmra.mxu0 %v345
    %v519 = vpop.f32.mrf.mxu0
    %v520 = vadd.f32 %v433, %v519
    %521 = vdwg.mxu0
    %522 = vmatpush.msra.mxu0 %v109
    %523 = vmatpush.msra.mxu0 %v107
    %524 = vmatpush.msra.mxu0 %v105
    %525 = vmatpush.msra.mxu0 %v103
    %526 = vmatpush.msra.mxu0 %v101
    %527 = vmatpush.msra.mxu0 %v99
    %528 = vmatpush.msra.mxu0 %v97
    %529 = vmatpush.msra.mxu0 %v95
    %530 = vmatpush.msra.mxu0 %v93
    %531 = vmatpush.msra.mxu0 %v91
    %532 = vmatpush.msra.mxu0 %v89
    %533 = vmatpush.msra.mxu0 %v87
    %534 = vmatpush.msra.mxu0 %v85
    %535 = vmatpush.msra.mxu0 %v83
    %536 = vmatpush.msra.mxu0 %v81
    %537 = vmatpush.msra.mxu0 %v79
    %538 = vmatmul.f32.gmra.mxu0 %v340
    %v539 = vpop.f32.mrf.mxu0
    %v540 = vadd.f32 %v511, %v539
    %541 = vmatmul.f32.gmra.mxu0 %v342
    %v542 = vpop.f32.mrf.mxu0
    %v543 = vadd.f32 %v514, %v542
    %544 = vmatmul.f32.gmra.mxu0 %v344
    %v545 = vpop.f32.mrf.mxu0
    %v546 = vadd.f32 %v517, %v545
    %547 = vmatmul.f32.gmra.mxu0 %v346
    %v548 = vpop.f32.mrf.mxu0
    %v549 = vadd.f32 %v520, %v548
    %550 = vdwg.mxu0
    %551 = vmatpush.msra.mxu0 %v78
    %552 = vmatpush.msra.mxu0 %v76
    %553 = vmatpush.msra.mxu0 %v74
    %554 = vmatpush.msra.mxu0 %v72
    %555 = vmatpush.msra.mxu0 %v70
    %556 = vmatpush.msra.mxu0 %v68
    %557 = vmatpush.msra.mxu0 %v66
    %558 = vmatpush.msra.mxu0 %v64
    %559 = vmatpush.msra.mxu0 %v62
    %560 = vmatpush.msra.mxu0 %v60
    %561 = vmatpush.msra.mxu0 %v58
    %562 = vmatpush.msra.mxu0 %v56
    %563 = vmatpush.msra.mxu0 %v54
    %564 = vmatpush.msra.mxu0 %v52
    %565 = vmatpush.msra.mxu0 %v50
    %566 = vmatpush.msra.mxu0 %v48
    %567 = vmatmul.f32.gmra.mxu0 %v339
    %v568 = vpop.f32.mrf.mxu0
    %v569 = vadd.f32 %v482, %v568
    %570 = vmatmul.f32.gmra.mxu0 %v341
    %v571 = vpop.f32.mrf.mxu0
    %v572 = vadd.f32 %v485, %v571
    %573 = vmatmul.f32.gmra.mxu0 %v343
    %v574 = vpop.f32.mrf.mxu0
    %v575 = vadd.f32 %v488, %v574
    %576 = vmatmul.f32.gmra.mxu0 %v345
    %v577 = vpop.f32.mrf.mxu0
    %v578 = vadd.f32 %v491, %v577
    %579 = vdwg.mxu0
    %580 = vmatpush.msra.mxu0 %v110
    %581 = vmatpush.msra.mxu0 %v108
    %582 = vmatpush.msra.mxu0 %v106
    %583 = vmatpush.msra.mxu0 %v104
    %584 = vmatpush.msra.mxu0 %v102
    %585 = vmatpush.msra.mxu0 %v100
    %586 = vmatpush.msra.mxu0 %v98
    %587 = vmatpush.msra.mxu0 %v96
    %588 = vmatpush.msra.mxu0 %v94
    %589 = vmatpush.msra.mxu0 %v92
    %590 = vmatpush.msra.mxu0 %v90
    %591 = vmatpush.msra.mxu0 %v88
    %592 = vmatpush.msra.mxu0 %v86
    %593 = vmatpush.msra.mxu0 %v84
    %594 = vmatpush.msra.mxu0 %v82
    %595 = vmatpush.msra.mxu0 %v80
    %596 = vmatmul.f32.gmra.mxu0 %v340
    %v597 = vpop.f32.mrf.mxu0
    %v598 = vadd.f32 %v569, %v597
    %599 = vmatmul.f32.gmra.mxu0 %v342
    %v600 = vpop.f32.mrf.mxu0
    %v601 = vadd.f32 %v572, %v600
    %602 = vmatmul.f32.gmra.mxu0 %v344
    %v603 = vpop.f32.mrf.mxu0
    %v604 = vadd.f32 %v575, %v603
    %605 = vmatmul.f32.gmra.mxu0 %v346
    %v606 = vpop.f32.mrf.mxu0
    %v607 = vadd.f32 %v578, %v606
    %608 = vdwg.mxu0
    %v610 = vperm.slane %v176, 0
    %v611 = vperm.slane %v176, 1
    %v614 = vadd.f32 %v540, %v610
    %v615 = vadd.f32 %v598, %v611
    %v616 = vadd.f32 %v543, %v610
    %v617 = vadd.f32 %v601, %v611
    %v618 = vadd.f32 %v546, %v610
    %v619 = vadd.f32 %v604, %v611
    %v620 = vadd.f32 %v549, %v610
    %v621 = vadd.f32 %v607, %v611
    %v622 = vmax.f32 %v614, 0.0
    %v623 = vmax.f32 %v615, 0.0
    %v624 = vmax.f32 %v616, 0.0
    %v625 = vmax.f32 %v617, 0.0
    %v626 = vmax.f32 %v618, 0.0
    %v627 = vmax.f32 %v619, 0.0
    %v628 = vmax.f32 %v620, 0.0
    %v629 = vmax.f32 %v621, 0.0
    %634 = vrot.lane.b32.xlu0 %v622, 64
    %v635 = vpop.permute.xlu0 %634
    %636 = vrot.lane.b32.xlu0 %v624, 64
    %v637 = vpop.permute.xlu0 %636
    %638 = vrot.lane.b32.xlu0 %v626, 64
    %v639 = vpop.permute.xlu0 %638
    %640 = vrot.lane.b32.xlu0 %v628, 64
    %v641 = vpop.permute.xlu0 %640
    %v646 = vmax.f32 %v622, %v635
    %v647 = vmax.f32 %v624, %v637
    %v648 = vmax.f32 %v626, %v639
    %v649 = vmax.f32 %v628, %v641
    %654 = vrot.lane.b32.xlu0 %v623, 64
    %v655 = vpop.permute.xlu0 %654
    %656 = vrot.lane.b32.xlu0 %v625, 64
    %v657 = vpop.permute.xlu0 %656
    %658 = vrot.lane.b32.xlu0 %v627, 64
    %v659 = vpop.permute.xlu0 %658
    %660 = vrot.lane.b32.xlu0 %v629, 64
    %v661 = vpop.permute.xlu0 %660
    %v666 = vmax.f32 %v623, %v655
    %v667 = vmax.f32 %v625, %v657
    %v668 = vmax.f32 %v627, %v659
    %v669 = vmax.f32 %v629, %v661
    %674 = vrot.lane.b32.xlu0 %v666, 64
    %v675 = vpop.permute.xlu0 %674
    %676 = vrot.lane.b32.xlu0 %v667, 64
    %v677 = vpop.permute.xlu0 %676
    %678 = vrot.lane.b32.xlu0 %v668, 64
    %v679 = vpop.permute.xlu0 %678
    %680 = vrot.lane.b32.xlu0 %v669, 64
    %v681 = vpop.permute.xlu0 %680
    %vm686 = vcmask 523264
    %v687 = vsel %vm686, %v646, %v675
    %v688 = vsel %vm686, %v647, %v677
    %v689 = vsel %vm686, %v648, %v679
    %v690 = vsel %vm686, %v649, %v681
    %691 = vst [vmem:[#allocation2] sm:$0x1] %v687
    %v693 = vrot.slane %v687, 7
    %v694 = vrot.slane %v693, 2
    %696 = vst [vmem:[#allocation2 + $0x2] sm:$0x1] %v694
    %697 = vst.sshfl [vmem:[#allocation1] sm:$0xff pattern:$0x73625140] %v687
    %s698 = scalar_lea.vmem [#allocation1], 1
    %v699 = vld [vmem:[%s698] ss:$4 sm:$0xff]
    %701 = vst [vmem:[#allocation2 + $0x4] sm:$0x1] %v699
    %702 = vst.sshfl [vmem:[#allocation1] sm:$0xff pattern:$0x73625140] %v687
    %s703 = scalar_lea.vmem [#allocation1], 1
    %v704 = vld [vmem:[%s703] ss:$4 sm:$0xff]
    %v705 = vrot.slane %v704, 7
    %v706 = vrot.slane %v705, 2
    %708 = vst [vmem:[#allocation2 + $0x6] sm:$0x1] %v706
    %709 = vst.sshfl [vmem:[#allocation1] sm:$0xff pattern:$0x73625140] %v687
    %s710 = scalar_lea.vmem [#allocation1], 2
    %v711 = vld [vmem:[%s710] ss:$4 sm:$0xff]
    %713 = vst [vmem:[#allocation2 + $0x8] sm:$0x1] %v711
    %714 = vst.sshfl [vmem:[#allocation1] sm:$0xff pattern:$0x73625140] %v687
    %s715 = scalar_lea.vmem [#allocation1], 2
    %v716 = vld [vmem:[%s715] ss:$4 sm:$0xff]
    %v717 = vrot.slane %v716, 7
    %v718 = vrot.slane %v717, 2
    %720 = vst [vmem:[#allocation2 + $0xa] sm:$0x1] %v718
    %721 = vst.sshfl [vmem:[#allocation1] sm:$0xff pattern:$0x73625140] %v687
    %s722 = scalar_lea.vmem [#allocation1], 3
    %v723 = vld [vmem:[%s722] ss:$4 sm:$0xff]
    %725 = vst [vmem:[#allocation2 + $0xc] sm:$0x1] %v723
    %726 = vst.sshfl [vmem:[#allocation1] sm:$0xff pattern:$0x73625140] %v687
    %s727 = scalar_lea.vmem [#allocation1], 3
    %v728 = vld [vmem:[%s727] ss:$4 sm:$0xff]
    %v729 = vrot.slane %v728, 7
    %v730 = vrot.slane %v729, 2
    %732 = vst [vmem:[#allocation2 + $0xe] sm:$0x1] %v730
    %733 = vst [vmem:[#allocation2 + $0x10] sm:$0x1] %v688
    %v735 = vrot.slane %v688, 7
    %v736 = vrot.slane %v735, 2
    %738 = vst [vmem:[#allocation2 + $0x12] sm:$0x1] %v736
    %739 = vst.sshfl [vmem:[#allocation1] sm:$0xff pattern:$0x73625140] %v688
    %s740 = scalar_lea.vmem [#allocation1], 1
    %v741 = vld [vmem:[%s740] ss:$4 sm:$0xff]
    %743 = vst [vmem:[#allocation2 + $0x14] sm:$0x1] %v741
    %744 = vst.sshfl [vmem:[#allocation1] sm:$0xff pattern:$0x73625140] %v688
    %s745 = scalar_lea.vmem [#allocation1], 1
    %v746 = vld [vmem:[%s745] ss:$4 sm:$0xff]
    %v747 = vrot.slane %v746, 7
    %v748 = vrot.slane %v747, 2
    %750 = vst [vmem:[#allocation2 + $0x16] sm:$0x1] %v748
    %751 = vst.sshfl [vmem:[#allocation1] sm:$0xff pattern:$0x73625140] %v688
    %s752 = scalar_lea.vmem [#allocation1], 2
    %v753 = vld [vmem:[%s752] ss:$4 sm:$0xff]
    %755 = vst [vmem:[#allocation2 + $0x18] sm:$0x1] %v753
    %756 = vst.sshfl [vmem:[#allocation1] sm:$0xff pattern:$0x73625140] %v688
    %s757 = scalar_lea.vmem [#allocation1], 2
    %v758 = vld [vmem:[%s757] ss:$4 sm:$0xff]
    %v759 = vrot.slane %v758, 7
    %v760 = vrot.slane %v759, 2
    %762 = vst [vmem:[#allocation2 + $0x1a] sm:$0x1] %v760
    %763 = vst.sshfl [vmem:[#allocation1] sm:$0xff pattern:$0x73625140] %v688
    %s764 = scalar_lea.vmem [#allocation1], 3
    %v765 = vld [vmem:[%s764] ss:$4 sm:$0xff]
    %767 = vst [vmem:[#allocation2 + $0x1c] sm:$0x1] %v765
    %768 = vst.sshfl [vmem:[#allocation1] sm:$0xff pattern:$0x73625140] %v688
    %s769 = scalar_lea.vmem [#allocation1], 3
    %v770 = vld [vmem:[%s769] ss:$4 sm:$0xff]
    %v771 = vrot.slane %v770, 7
    %v772 = vrot.slane %v771, 2
    %774 = vst [vmem:[#allocation2 + $0x1e] sm:$0x1] %v772
    %775 = vst [vmem:[#allocation2 + $0x20] sm:$0x1] %v689
    %v777 = vrot.slane %v689, 7
    %v778 = vrot.slane %v777, 2
    %780 = vst [vmem:[#allocation2 + $0x22] sm:$0x1] %v778
    %781 = vst.sshfl [vmem:[#allocation1] sm:$0xff pattern:$0x73625140] %v689
    %s782 = scalar_lea.vmem [#allocation1], 1
    %v783 = vld [vmem:[%s782] ss:$4 sm:$0xff]
    %785 = vst [vmem:[#allocation2 + $0x24] sm:$0x1] %v783
    %786 = vst.sshfl [vmem:[#allocation1] sm:$0xff pattern:$0x73625140] %v689
    %s787 = scalar_lea.vmem [#allocation1], 1
    %v788 = vld [vmem:[%s787] ss:$4 sm:$0xff]
    %v789 = vrot.slane %v788, 7
    %v790 = vrot.slane %v789, 2
    %792 = vst [vmem:[#allocation2 + $0x26] sm:$0x1] %v790
    %793 = vst.sshfl [vmem:[#allocation1] sm:$0xff pattern:$0x73625140] %v689
    %s794 = scalar_lea.vmem [#allocation1], 2
    %v795 = vld [vmem:[%s794] ss:$4 sm:$0xff]
    %797 = vst [vmem:[#allocation2 + $0x28] sm:$0x1] %v795
    %798 = vst.sshfl [vmem:[#allocation1] sm:$0xff pattern:$0x73625140] %v689
    %s799 = scalar_lea.vmem [#allocation1], 2
    %v800 = vld [vmem:[%s799] ss:$4 sm:$0xff]
    %v801 = vrot.slane %v800, 7
    %v802 = vrot.slane %v801, 2
    %804 = vst [vmem:[#allocation2 + $0x2a] sm:$0x1] %v802
    %805 = vst.sshfl [vmem:[#allocation1] sm:$0xff pattern:$0x73625140] %v689
    %s806 = scalar_lea.vmem [#allocation1], 3
    %v807 = vld [vmem:[%s806] ss:$4 sm:$0xff]
    %809 = vst [vmem:[#allocation2 + $0x2c] sm:$0x1] %v807
    %810 = vst.sshfl [vmem:[#allocation1] sm:$0xff pattern:$0x73625140] %v689
    %s811 = scalar_lea.vmem [#allocation1], 3
    %v812 = vld [vmem:[%s811] ss:$4 sm:$0xff]
    %v813 = vrot.slane %v812, 7
    %v814 = vrot.slane %v813, 2
    %816 = vst [vmem:[#allocation2 + $0x2e] sm:$0x1] %v814
    %817 = vst [vmem:[#allocation2 + $0x30] sm:$0x1] %v690
    %v819 = vrot.slane %v690, 7
    %v820 = vrot.slane %v819, 2
    %822 = vst [vmem:[#allocation2 + $0x32] sm:$0x1] %v820
    %823 = vst.sshfl [vmem:[#allocation1] sm:$0xff pattern:$0x73625140] %v690
    %s824 = scalar_lea.vmem [#allocation1], 1
    %v825 = vld [vmem:[%s824] ss:$4 sm:$0xff]
    %827 = vst [vmem:[#allocation2 + $0x34] sm:$0x1] %v825
    %828 = vst.sshfl [vmem:[#allocation1] sm:$0xff pattern:$0x73625140] %v690
    %s829 = scalar_lea.vmem [#allocation1], 1
    %v830 = vld [vmem:[%s829] ss:$4 sm:$0xff]
    %v831 = vrot.slane %v830, 7
    %v832 = vrot.slane %v831, 2
    %834 = vst [vmem:[#allocation2 + $0x36] sm:$0x1] %v832
    %835 = vst.sshfl [vmem:[#allocation1] sm:$0xff pattern:$0x73625140] %v690
    %s836 = scalar_lea.vmem [#allocation1], 2
    %v837 = vld [vmem:[%s836] ss:$4 sm:$0xff]
    %839 = vst [vmem:[#allocation2 + $0x38] sm:$0x1] %v837
    %840 = vst.sshfl [vmem:[#allocation1] sm:$0xff pattern:$0x73625140] %v690
    %s841 = scalar_lea.vmem [#allocation1], 2
    %v842 = vld [vmem:[%s841] ss:$4 sm:$0xff]
    %v843 = vrot.slane %v842, 7
    %v844 = vrot.slane %v843, 2
    %846 = vst [vmem:[#allocation2 + $0x3a] sm:$0x1] %v844
    %s847 = scalar_lea.vmem %s0, 32
    %v848 = vld [vmem:[%s847] sm:$0xff]
    %v849 = vld [vmem:[%s847 + $0x8] sm:$0xff]
    %v850 = vld [vmem:[%s847 + $0x10] sm:$0xff]
    %v851 = vld [vmem:[%s847 + $0x18] sm:$0xff]
    %v856 = vrot.slane %v848, 1
    %v857 = vrot.slane %v849, 1
    %v858 = vsel %vm185, %v856, %v857
    %v859 = vrot.slane %v850, 1
    %v860 = vsel %vm185, %v857, %v859
    %v861 = vrot.slane %v851, 1
    %v862 = vsel %vm185, %v859, %v861
    %v863 = vsel %vm193, %v858, 0
    %v865 = vsel %vm193, %v860, 0
    %v867 = vsel %vm193, %v862, 0
    %v869 = vsel %vm193, %v861, 0
    %871 = vmatpush.msra.mxu0 0.0
    %872 = vmatpush.msra.mxu0 0.0
    %873 = vmatpush.msra.mxu0 0.0
    %874 = vmatpush.msra.mxu0 0.0
    %875 = vmatpush.msra.mxu0 0.0
    %876 = vmatpush.msra.mxu0 0.0
    %877 = vmatpush.msra.mxu0 0.0
    %878 = vmatpush.msra.mxu0 0.0
    %879 = vmatpush.msra.mxu0 0.0
    %880 = vmatpush.msra.mxu0 0.0
    %881 = vmatpush.msra.mxu0 0.0
    %882 = vmatpush.msra.mxu0 0.0
    %883 = vmatpush.msra.mxu0 0.0
    %884 = vmatpush.msra.mxu0 0.0
    %885 = vmatpush.msra.mxu0 %v45
    %886 = vmatpush.msra.mxu0 %v43
    %887 = vmatmul.f32.gmra.mxu0 %v863
    %v888 = vpop.f32.mrf.mxu0
    %v889 = vadd.f32 0.0, %v888
    %890 = vmatmul.f32.gmra.mxu0 %v865
    %v891 = vpop.f32.mrf.mxu0
    %v892 = vadd.f32 0.0, %v891
    %893 = vmatmul.f32.gmra.mxu0 %v867
    %v894 = vpop.f32.mrf.mxu0
    %v895 = vadd.f32 0.0, %v894
    %896 = vmatmul.f32.gmra.mxu0 %v869
    %v897 = vpop.f32.mrf.mxu0
    %v898 = vadd.f32 0.0, %v897
    %899 = vdwg.mxu0
    %900 = vmatpush.msra.mxu0 0.0
    %901 = vmatpush.msra.mxu0 0.0
    %902 = vmatpush.msra.mxu0 0.0
    %903 = vmatpush.msra.mxu0 0.0
    %904 = vmatpush.msra.mxu0 0.0
    %905 = vmatpush.msra.mxu0 0.0
    %906 = vmatpush.msra.mxu0 0.0
    %907 = vmatpush.msra.mxu0 0.0
    %908 = vmatpush.msra.mxu0 0.0
    %909 = vmatpush.msra.mxu0 0.0
    %910 = vmatpush.msra.mxu0 0.0
    %911 = vmatpush.msra.mxu0 0.0
    %912 = vmatpush.msra.mxu0 0.0
    %913 = vmatpush.msra.mxu0 0.0
    %914 = vmatpush.msra.mxu0 %v46
    %915 = vmatpush.msra.mxu0 %v44
    %916 = vmatmul.f32.gmra.mxu0 %v863
    %v917 = vpop.f32.mrf.mxu0
    %v918 = vadd.f32 0.0, %v917
    %919 = vmatmul.f32.gmra.mxu0 %v865
    %v920 = vpop.f32.mrf.mxu0
    %v921 = vadd.f32 0.0, %v920
    %922 = vmatmul.f32.gmra.mxu0 %v867
    %v923 = vpop.f32.mrf.mxu0
    %v924 = vadd.f32 0.0, %v923
    %925 = vmatmul.f32.gmra.mxu0 %v869
    %v926 = vpop.f32.mrf.mxu0
    %v927 = vadd.f32 0.0, %v926
    %928 = vdwg.mxu0
    %v929 = vsel %vm193, %v848, 0
    %v931 = vsel %vm193, %v849, 0
    %v933 = vsel %vm193, %v850, 0
    %v935 = vsel %vm193, %v851, 0
    %937 = vmatpush.msra.mxu0 0.0
    %938 = vmatpush.msra.mxu0 0.0
    %939 = vmatpush.msra.mxu0 0.0
    %940 = vmatpush.msra.mxu0 0.0
    %941 = vmatpush.msra.mxu0 0.0
    %942 = vmatpush.msra.mxu0 0.0
    %943 = vmatpush.msra.mxu0 0.0
    %944 = vmatpush.msra.mxu0 0.0
    %945 = vmatpush.msra.mxu0 0.0
    %946 = vmatpush.msra.mxu0 0.0
    %947 = vmatpush.msra.mxu0 0.0
    %948 = vmatpush.msra.mxu0 0.0
    %949 = vmatpush.msra.mxu0 0.0
    %950 = vmatpush.msra.mxu0 0.0
    %951 = vmatpush.msra.mxu0 %v41
    %952 = vmatpush.msra.mxu0 %v39
    %953 = vmatmul.f32.gmra.mxu0 %v929
    %v954 = vpop.f32.mrf.mxu0
    %v955 = vadd.f32 %v889, %v954
    %956 = vmatmul.f32.gmra.mxu0 %v931
    %v957 = vpop.f32.mrf.mxu0
    %v958 = vadd.f32 %v892, %v957
    %959 = vmatmul.f32.gmra.mxu0 %v933
    %v960 = vpop.f32.mrf.mxu0
    %v961 = vadd.f32 %v895, %v960
    %962 = vmatmul.f32.gmra.mxu0 %v935
    %v963 = vpop.f32.mrf.mxu0
    %v964 = vadd.f32 %v898, %v963
    %965 = vdwg.mxu0
    %966 = vmatpush.msra.mxu0 0.0
    %967 = vmatpush.msra.mxu0 0.0
    %968 = vmatpush.msra.mxu0 0.0
    %969 = vmatpush.msra.mxu0 0.0
    %970 = vmatpush.msra.mxu0 0.0
    %971 = vmatpush.msra.mxu0 0.0
    %972 = vmatpush.msra.mxu0 0.0
    %973 = vmatpush.msra.mxu0 0.0
    %974 = vmatpush.msra.mxu0 0.0
    %975 = vmatpush.msra.mxu0 0.0
    %976 = vmatpush.msra.mxu0 0.0
    %977 = vmatpush.msra.mxu0 0.0
    %978 = vmatpush.msra.mxu0 0.0
    %979 = vmatpush.msra.mxu0 0.0
    %980 = vmatpush.msra.mxu0 %v42
    %981 = vmatpush.msra.mxu0 %v40
    %982 = vmatmul.f32.gmra.mxu0 %v929
    %v983 = vpop.f32.mrf.mxu0
    %v984 = vadd.f32 %v918, %v983
    %985 = vmatmul.f32.gmra.mxu0 %v931
    %v986 = vpop.f32.mrf.mxu0
    %v987 = vadd.f32 %v921, %v986
    %988 = vmatmul.f32.gmra.mxu0 %v933
    %v989 = vpop.f32.mrf.mxu0
    %v990 = vadd.f32 %v924, %v989
    %991 = vmatmul.f32.gmra.mxu0 %v935
    %v992 = vpop.f32.mrf.mxu0
    %v993 = vadd.f32 %v927, %v992
    %994 = vdwg.mxu0
    %v995 = vadd.f32 %v955, %v327
    %v996 = vadd.f32 %v984, %v328
    %v997 = vadd.f32 %v958, %v327
    %v998 = vadd.f32 %v987, %v328
    %v999 = vadd.f32 %v961, %v327
    %v1000 = vadd.f32 %v990, %v328
    %v1001 = vadd.f32 %v964, %v327
    %v1002 = vadd.f32 %v993, %v328
    %v1003 = vmax.f32 %v995, 0.0
    %v1004 = vmax.f32 %v996, 0.0
    %v1005 = vmax.f32 %v997, 0.0
    %v1006 = vmax.f32 %v998, 0.0
    %v1007 = vmax.f32 %v999, 0.0
    %v1008 = vmax.f32 %v1000, 0.0
    %v1009 = vmax.f32 %v1001, 0.0
    %v1010 = vmax.f32 %v1002, 0.0
    %v1019 = vrot.slane %v1003, 1
    %v1020 = vrot.slane %v1005, 1
    %v1021 = vsel %vm185, %v1019, %v1020
    %v1022 = vrot.slane %v1004, 1
    %v1023 = vrot.slane %v1006, 1
    %v1024 = vsel %vm185, %v1022, %v1023
    %v1025 = vrot.slane %v1007, 1
    %v1026 = vsel %vm185, %v1020, %v1025
    %v1027 = vrot.slane %v1008, 1
    %v1028 = vsel %vm185, %v1023, %v1027
    %v1029 = vrot.slane %v1009, 1
    %v1030 = vsel %vm185, %v1025, %v1029
    %v1031 = vrot.slane %v1010, 1
    %v1032 = vsel %vm185, %v1027, %v1031
    %1041 = vmatpush.msra.mxu0 %v141
    %1042 = vmatpush.msra.mxu0 %v139
    %1043 = vmatpush.msra.mxu0 %v137
    %1044 = vmatpush.msra.mxu0 %v135
    %1045 = vmatpush.msra.mxu0 %v133
    %1046 = vmatpush.msra.mxu0 %v131
    %1047 = vmatpush.msra.mxu0 %v129
    %1048 = vmatpush.msra.mxu0 %v127
    %1049 = vmatpush.msra.mxu0 %v125
    %1050 = vmatpush.msra.mxu0 %v123
    %1051 = vmatpush.msra.mxu0 %v121
    %1052 = vmatpush.msra.mxu0 %v119
    %1053 = vmatpush.msra.mxu0 %v117
    %1054 = vmatpush.msra.mxu0 %v115
    %1055 = vmatpush.msra.mxu0 %v113
    %1056 = vmatpush.msra.mxu0 %v111
    %1057 = vmatmul.f32.gmra.mxu0 %v1021
    %v1058 = vpop.f32.mrf.mxu0
    %v1059 = vadd.f32 0.0, %v1058
    %1060 = vmatmul.f32.gmra.mxu0 %v1026
    %v1061 = vpop.f32.mrf.mxu0
    %v1062 = vadd.f32 0.0, %v1061
    %1063 = vmatmul.f32.gmra.mxu0 %v1030
    %v1064 = vpop.f32.mrf.mxu0
    %v1065 = vadd.f32 0.0, %v1064
    %1066 = vmatmul.f32.gmra.mxu0 %v1029
    %v1067 = vpop.f32.mrf.mxu0
    %v1068 = vadd.f32 0.0, %v1067
    %1069 = vdwg.mxu0
    %1070 = vmatpush.msra.mxu0 %v173
    %1071 = vmatpush.msra.mxu0 %v171
    %1072 = vmatpush.msra.mxu0 %v169
    %1073 = vmatpush.msra.mxu0 %v167
    %1074 = vmatpush.msra.mxu0 %v165
    %1075 = vmatpush.msra.mxu0 %v163
    %1076 = vmatpush.msra.mxu0 %v161
    %1077 = vmatpush.msra.mxu0 %v159
    %1078 = vmatpush.msra.mxu0 %v157
    %1079 = vmatpush.msra.mxu0 %v155
    %1080 = vmatpush.msra.mxu0 %v153
    %1081 = vmatpush.msra.mxu0 %v151
    %1082 = vmatpush.msra.mxu0 %v149
    %1083 = vmatpush.msra.mxu0 %v147
    %1084 = vmatpush.msra.mxu0 %v145
    %1085 = vmatpush.msra.mxu0 %v143
    %1086 = vmatmul.f32.gmra.mxu0 %v1024
    %v1087 = vpop.f32.mrf.mxu0
    %v1088 = vadd.f32 %v1059, %v1087
    %1089 = vmatmul.f32.gmra.mxu0 %v1028
    %v1090 = vpop.f32.mrf.mxu0
    %v1091 = vadd.f32 %v1062, %v1090
    %1092 = vmatmul.f32.gmra.mxu0 %v1032
    %v1093 = vpop.f32.mrf.mxu0
    %v1094 = vadd.f32 %v1065, %v1093
    %1095 = vmatmul.f32.gmra.mxu0 %v1031
    %v1096 = vpop.f32.mrf.mxu0
    %v1097 = vadd.f32 %v1068, %v1096
    %1098 = vdwg.mxu0
    %1099 = vmatpush.msra.mxu0 %v142
    %1100 = vmatpush.msra.mxu0 %v140
    %1101 = vmatpush.msra.mxu0 %v138
    %1102 = vmatpush.msra.mxu0 %v136
    %1103 = vmatpush.msra.mxu0 %v134
    %1104 = vmatpush.msra.mxu0 %v132
    %1105 = vmatpush.msra.mxu0 %v130
    %1106 = vmatpush.msra.mxu0 %v128
    %1107 = vmatpush.msra.mxu0 %v126
    %1108 = vmatpush.msra.mxu0 %v124
    %1109 = vmatpush.msra.mxu0 %v122
    %1110 = vmatpush.msra.mxu0 %v120
    %1111 = vmatpush.msra.mxu0 %v118
    %1112 = vmatpush.msra.mxu0 %v116
    %1113 = vmatpush.msra.mxu0 %v114
    %1114 = vmatpush.msra.mxu0 %v112
    %1115 = vmatmul.f32.gmra.mxu0 %v1021
    %v1116 = vpop.f32.mrf.mxu0
    %v1117 = vadd.f32 0.0, %v1116
    %1118 = vmatmul.f32.gmra.mxu0 %v1026
    %v1119 = vpop.f32.mrf.mxu0
    %v1120 = vadd.f32 0.0, %v1119
    %1121 = vmatmul.f32.gmra.mxu0 %v1030
    %v1122 = vpop.f32.mrf.mxu0
    %v1123 = vadd.f32 0.0, %v1122
    %1124 = vmatmul.f32.gmra.mxu0 %v1029
    %v1125 = vpop.f32.mrf.mxu0
    %v1126 = vadd.f32 0.0, %v1125
    %1127 = vdwg.mxu0
    %1128 = vmatpush.msra.mxu0 %v174
    %1129 = vmatpush.msra.mxu0 %v172
    %1130 = vmatpush.msra.mxu0 %v170
    %1131 = vmatpush.msra.mxu0 %v168
    %1132 = vmatpush.msra.mxu0 %v166
    %1133 = vmatpush.msra.mxu0 %v164
    %1134 = vmatpush.msra.mxu0 %v162
    %1135 = vmatpush.msra.mxu0 %v160
    %1136 = vmatpush.msra.mxu0 %v158
    %1137 = vmatpush.msra.mxu0 %v156
    %1138 = vmatpush.msra.mxu0 %v154
    %1139 = vmatpush.msra.mxu0 %v152
    %1140 = vmatpush.msra.mxu0 %v150
    %1141 = vmatpush.msra.mxu0 %v148
    %1142 = vmatpush.msra.mxu0 %v146
    %1143 = vmatpush.msra.mxu0 %v144
    %1144 = vmatmul.f32.gmra.mxu0 %v1024
    %v1145 = vpop.f32.mrf.mxu0
    %v1146 = vadd.f32 %v1117, %v1145
    %1147 = vmatmul.f32.gmra.mxu0 %v1028
    %v1148 = vpop.f32.mrf.mxu0
    %v1149 = vadd.f32 %v1120, %v1148
    %1150 = vmatmul.f32.gmra.mxu0 %v1032
    %v1151 = vpop.f32.mrf.mxu0
    %v1152 = vadd.f32 %v1123, %v1151
    %1153 = vmatmul.f32.gmra.mxu0 %v1031
    %v1154 = vpop.f32.mrf.mxu0
    %v1155 = vadd.f32 %v1126, %v1154
    %1156 = vdwg.mxu0
    %1157 = vmatpush.msra.mxu0 %v77
    %1158 = vmatpush.msra.mxu0 %v75
    %1159 = vmatpush.msra.mxu0 %v73
    %1160 = vmatpush.msra.mxu0 %v71
    %1161 = vmatpush.msra.mxu0 %v69
    %1162 = vmatpush.msra.mxu0 %v67
    %1163 = vmatpush.msra.mxu0 %v65
    %1164 = vmatpush.msra.mxu0 %v63
    %1165 = vmatpush.msra.mxu0 %v61
    %1166 = vmatpush.msra.mxu0 %v59
    %1167 = vmatpush.msra.mxu0 %v57
    %1168 = vmatpush.msra.mxu0 %v55
    %1169 = vmatpush.msra.mxu0 %v53
    %1170 = vmatpush.msra.mxu0 %v51
    %1171 = vmatpush.msra.mxu0 %v49
    %1172 = vmatpush.msra.mxu0 %v47
    %1173 = vmatmul.f32.gmra.mxu0 %v1003
    %v1174 = vpop.f32.mrf.mxu0
    %v1175 = vadd.f32 %v1088, %v1174
    %1176 = vmatmul.f32.gmra.mxu0 %v1005
    %v1177 = vpop.f32.mrf.mxu0
    %v1178 = vadd.f32 %v1091, %v1177
    %1179 = vmatmul.f32.gmra.mxu0 %v1007
    %v1180 = vpop.f32.mrf.mxu0
    %v1181 = vadd.f32 %v1094, %v1180
    %1182 = vmatmul.f32.gmra.mxu0 %v1009
    %v1183 = vpop.f32.mrf.mxu0
    %v1184 = vadd.f32 %v1097, %v1183
    %1185 = vdwg.mxu0
    %1186 = vmatpush.msra.mxu0 %v109
    %1187 = vmatpush.msra.mxu0 %v107
    %1188 = vmatpush.msra.mxu0 %v105
    %1189 = vmatpush.msra.mxu0 %v103
    %1190 = vmatpush.msra.mxu0 %v101
    %1191 = vmatpush.msra.mxu0 %v99
    %1192 = vmatpush.msra.mxu0 %v97
    %1193 = vmatpush.msra.mxu0 %v95
    %1194 = vmatpush.msra.mxu0 %v93
    %1195 = vmatpush.msra.mxu0 %v91
    %1196 = vmatpush.msra.mxu0 %v89
    %1197 = vmatpush.msra.mxu0 %v87
    %1198 = vmatpush.msra.mxu0 %v85
    %1199 = vmatpush.msra.mxu0 %v83
    %1200 = vmatpush.msra.mxu0 %v81
    %1201 = vmatpush.msra.mxu0 %v79
    %1202 = vmatmul.f32.gmra.mxu0 %v1004
    %v1203 = vpop.f32.mrf.mxu0
    %v1204 = vadd.f32 %v1175, %v1203
    %1205 = vmatmul.f32.gmra.mxu0 %v1006
    %v1206 = vpop.f32.mrf.mxu0
    %v1207 = vadd.f32 %v1178, %v1206
    %1208 = vmatmul.f32.gmra.mxu0 %v1008
    %v1209 = vpop.f32.mrf.mxu0
    %v1210 = vadd.f32 %v1181, %v1209
    %1211 = vmatmul.f32.gmra.mxu0 %v1010
    %v1212 = vpop.f32.mrf.mxu0
    %v1213 = vadd.f32 %v1184, %v1212
    %1214 = vdwg.mxu0
    %1215 = vmatpush.msra.mxu0 %v78
    %1216 = vmatpush.msra.mxu0 %v76
    %1217 = vmatpush.msra.mxu0 %v74
    %1218 = vmatpush.msra.mxu0 %v72
    %1219 = vmatpush.msra.mxu0 %v70
    %1220 = vmatpush.msra.mxu0 %v68
    %1221 = vmatpush.msra.mxu0 %v66
    %1222 = vmatpush.msra.mxu0 %v64
    %1223 = vmatpush.msra.mxu0 %v62
    %1224 = vmatpush.msra.mxu0 %v60
    %1225 = vmatpush.msra.mxu0 %v58
    %1226 = vmatpush.msra.mxu0 %v56
    %1227 = vmatpush.msra.mxu0 %v54
    %1228 = vmatpush.msra.mxu0 %v52
    %1229 = vmatpush.msra.mxu0 %v50
    %1230 = vmatpush.msra.mxu0 %v48
    %1231 = vmatmul.f32.gmra.mxu0 %v1003
    %v1232 = vpop.f32.mrf.mxu0
    %v1233 = vadd.f32 %v1146, %v1232
    %1234 = vmatmul.f32.gmra.mxu0 %v1005
    %v1235 = vpop.f32.mrf.mxu0
    %v1236 = vadd.f32 %v1149, %v1235
    %1237 = vmatmul.f32.gmra.mxu0 %v1007
    %v1238 = vpop.f32.mrf.mxu0
    %v1239 = vadd.f32 %v1152, %v1238
    %1240 = vmatmul.f32.gmra.mxu0 %v1009
    %v1241 = vpop.f32.mrf.mxu0
    %v1242 = vadd.f32 %v1155, %v1241
    %1243 = vdwg.mxu0
    %1244 = vmatpush.msra.mxu0 %v110
    %1245 = vmatpush.msra.mxu0 %v108
    %1246 = vmatpush.msra.mxu0 %v106
    %1247 = vmatpush.msra.mxu0 %v104
    %1248 = vmatpush.msra.mxu0 %v102
    %1249 = vmatpush.msra.mxu0 %v100
    %1250 = vmatpush.msra.mxu0 %v98
    %1251 = vmatpush.msra.mxu0 %v96
    %1252 = vmatpush.msra.mxu0 %v94
    %1253 = vmatpush.msra.mxu0 %v92
    %1254 = vmatpush.msra.mxu0 %v90
    %1255 = vmatpush.msra.mxu0 %v88
    %1256 = vmatpush.msra.mxu0 %v86
    %1257 = vmatpush.msra.mxu0 %v84
    %1258 = vmatpush.msra.mxu0 %v82
    %1259 = vmatpush.msra.mxu0 %v80
    %1260 = vmatmul.f32.gmra.mxu0 %v1004
    %v1261 = vpop.f32.mrf.mxu0
    %v1262 = vadd.f32 %v1233, %v1261
    %1263 = vmatmul.f32.gmra.mxu0 %v1006
    %v1264 = vpop.f32.mrf.mxu0
    %v1265 = vadd.f32 %v1236, %v1264
    %1266 = vmatmul.f32.gmra.mxu0 %v1008
    %v1267 = vpop.f32.mrf.mxu0
    %v1268 = vadd.f32 %v1239, %v1267
    %1269 = vmatmul.f32.gmra.mxu0 %v1010
    %v1270 = vpop.f32.mrf.mxu0
    %v1271 = vadd.f32 %v1242, %v1270
    %1272 = vdwg.mxu0
    %v1273 = vadd.f32 %v1204, %v610
    %v1274 = vadd.f32 %v1262, %v611
    %v1275 = vadd.f32 %v1207, %v610
    %v1276 = vadd.f32 %v1265, %v611
    %v1277 = vadd.f32 %v1210, %v610
    %v1278 = vadd.f32 %v1268, %v611
    %v1279 = vadd.f32 %v1213, %v610
    %v1280 = vadd.f32 %v1271, %v611
    %v1281 = vmax.f32 %v1273, 0.0
    %v1282 = vmax.f32 %v1274, 0.0
    %v1283 = vmax.f32 %v1275, 0.0
    %v1284 = vmax.f32 %v1276, 0.0
    %v1285 = vmax.f32 %v1277, 0.0
    %v1286 = vmax.f32 %v1278, 0.0
    %v1287 = vmax.f32 %v1279, 0.0
    %v1288 = vmax.f32 %v1280, 0.0
    %1293 = vrot.lane.b32.xlu0 %v1281, 64
    %v1294 = vpop.permute.xlu0 %1293
    %1295 = vrot.lane.b32.xlu0 %v1283, 64
    %v1296 = vpop.permute.xlu0 %1295
    %1297 = vrot.lane.b32.xlu0 %v1285, 64
    %v1298 = vpop.permute.xlu0 %1297
    %1299 = vrot.lane.b32.xlu0 %v1287, 64
    %v1300 = vpop.permute.xlu0 %1299
    %v1305 = vmax.f32 %v1281, %v1294
    %v1306 = vmax.f32 %v1283, %v1296
    %v1307 = vmax.f32 %v1285, %v1298
    %v1308 = vmax.f32 %v1287, %v1300
    %1313 = vrot.lane.b32.xlu0 %v1282, 64
    %v1314 = vpop.permute.xlu0 %1313
    %1315 = vrot.lane.b32.xlu0 %v1284, 64
    %v1316 = vpop.permute.xlu0 %1315
    %1317 = vrot.lane.b32.xlu0 %v1286, 64
    %v1318 = vpop.permute.xlu0 %1317
    %1319 = vrot.lane.b32.xlu0 %v1288, 64
    %v1320 = vpop.permute.xlu0 %1319
    %v1325 = vmax.f32 %v1282, %v1314
    %v1326 = vmax.f32 %v1284, %v1316
    %v1327 = vmax.f32 %v1286, %v1318
    %v1328 = vmax.f32 %v1288, %v1320
    %1333 = vrot.lane.b32.xlu0 %v1325, 64
    %v1334 = vpop.permute.xlu0 %1333
    %1335 = vrot.lane.b32.xlu0 %v1326, 64
    %v1336 = vpop.permute.xlu0 %1335
    %1337 = vrot.lane.b32.xlu0 %v1327, 64
    %v1338 = vpop.permute.xlu0 %1337
    %1339 = vrot.lane.b32.xlu0 %v1328, 64
    %v1340 = vpop.permute.xlu0 %1339
    %v1345 = vsel %vm686, %v1305, %v1334
    %v1346 = vsel %vm686, %v1306, %v1336
    %v1347 = vsel %vm686, %v1307, %v1338
    %v1348 = vsel %vm686, %v1308, %v1340
    %1349 = vst [vmem:[#allocation2 + $0x1] sm:$0x1] %v1345
    %v1351 = vrot.slane %v1345, 7
    %v1352 = vrot.slane %v1351, 2
    %1354 = vst [vmem:[#allocation2 + $0x3] sm:$0x1] %v1352
    %1355 = vst.sshfl [vmem:[#allocation1] sm:$0xff pattern:$0x73625140] %v1345
    %s1356 = scalar_lea.vmem [#allocation1], 1
    %v1357 = vld [vmem:[%s1356] ss:$4 sm:$0xff]
    %1359 = vst [vmem:[#allocation2 + $0x5] sm:$0x1] %v1357
    %1360 = vst.sshfl [vmem:[#allocation1] sm:$0xff pattern:$0x73625140] %v1345
    %s1361 = scalar_lea.vmem [#allocation1], 1
    %v1362 = vld [vmem:[%s1361] ss:$4 sm:$0xff]
    %v1363 = vrot.slane %v1362, 7
    %v1364 = vrot.slane %v1363, 2
    %1366 = vst [vmem:[#allocation2 + $0x7] sm:$0x1] %v1364
    %1367 = vst.sshfl [vmem:[#allocation1] sm:$0xff pattern:$0x73625140] %v1345
    %s1368 = scalar_lea.vmem [#allocation1], 2
    %v1369 = vld [vmem:[%s1368] ss:$4 sm:$0xff]
    %1371 = vst [vmem:[#allocation2 + $0x9] sm:$0x1] %v1369
    %1372 = vst.sshfl [vmem:[#allocation1] sm:$0xff pattern:$0x73625140] %v1345
    %s1373 = scalar_lea.vmem [#allocation1], 2
    %v1374 = vld [vmem:[%s1373] ss:$4 sm:$0xff]
    %v1375 = vrot.slane %v1374, 7
    %v1376 = vrot.slane %v1375, 2
    %1378 = vst [vmem:[#allocation2 + $0xb] sm:$0x1] %v1376
    %1379 = vst.sshfl [vmem:[#allocation1] sm:$0xff pattern:$0x73625140] %v1345
    %s1380 = scalar_lea.vmem [#allocation1], 3
    %v1381 = vld [vmem:[%s1380] ss:$4 sm:$0xff]
    %1383 = vst [vmem:[#allocation2 + $0xd] sm:$0x1] %v1381
    %1384 = vst.sshfl [vmem:[#allocation1] sm:$0xff pattern:$0x73625140] %v1345
    %s1385 = scalar_lea.vmem [#allocation1], 3
    %v1386 = vld [vmem:[%s1385] ss:$4 sm:$0xff]
    %v1387 = vrot.slane %v1386, 7
    %v1388 = vrot.slane %v1387, 2
    %1390 = vst [vmem:[#allocation2 + $0xf] sm:$0x1] %v1388
    %1391 = vst [vmem:[#allocation2 + $0x11] sm:$0x1] %v1346
    %v1393 = vrot.slane %v1346, 7
    %v1394 = vrot.slane %v1393, 2
    %1396 = vst [vmem:[#allocation2 + $0x13] sm:$0x1] %v1394
    %1397 = vst.sshfl [vmem:[#allocation1] sm:$0xff pattern:$0x73625140] %v1346
    %s1398 = scalar_lea.vmem [#allocation1], 1
    %v1399 = vld [vmem:[%s1398] ss:$4 sm:$0xff]
    %1401 = vst [vmem:[#allocation2 + $0x15] sm:$0x1] %v1399
    %1402 = vst.sshfl [vmem:[#allocation1] sm:$0xff pattern:$0x73625140] %v1346
    %s1403 = scalar_lea.vmem [#allocation1], 1
    %v1404 = vld [vmem:[%s1403] ss:$4 sm:$0xff]
    %v1405 = vrot.slane %v1404, 7
    %v1406 = vrot.slane %v1405, 2
    %1408 = vst [vmem:[#allocation2 + $0x17] sm:$0x1] %v1406
    %1409 = vst.sshfl [vmem:[#allocation1] sm:$0xff pattern:$0x73625140] %v1346
    %s1410 = scalar_lea.vmem [#allocation1], 2
    %v1411 = vld [vmem:[%s1410] ss:$4 sm:$0xff]
    %1413 = vst [vmem:[#allocation2 + $0x19] sm:$0x1] %v1411
    %1414 = vst.sshfl [vmem:[#allocation1] sm:$0xff pattern:$0x73625140] %v1346
    %s1415 = scalar_lea.vmem [#allocation1], 2
    %v1416 = vld [vmem:[%s1415] ss:$4 sm:$0xff]
    %v1417 = vrot.slane %v1416, 7
    %v1418 = vrot.slane %v1417, 2
    %1420 = vst [vmem:[#allocation2 + $0x1b] sm:$0x1] %v1418
    %1421 = vst.sshfl [vmem:[#allocation1] sm:$0xff pattern:$0x73625140] %v1346
    %s1422 = scalar_lea.vmem [#allocation1], 3
    %v1423 = vld [vmem:[%s1422] ss:$4 sm:$0xff]
    %1425 = vst [vmem:[#allocation2 + $0x1d] sm:$0x1] %v1423
    %1426 = vst.sshfl [vmem:[#allocation1] sm:$0xff pattern:$0x73625140] %v1346
    %s1427 = scalar_lea.vmem [#allocation1], 3
    %v1428 = vld [vmem:[%s1427] ss:$4 sm:$0xff]
    %v1429 = vrot.slane %v1428, 7
    %v1430 = vrot.slane %v1429, 2
    %1432 = vst [vmem:[#allocation2 + $0x1f] sm:$0x1] %v1430
    %1433 = vst [vmem:[#allocation2 + $0x21] sm:$0x1] %v1347
    %v1435 = vrot.slane %v1347, 7
    %v1436 = vrot.slane %v1435, 2
    %1438 = vst [vmem:[#allocation2 + $0x23] sm:$0x1] %v1436
    %1439 = vst.sshfl [vmem:[#allocation1] sm:$0xff pattern:$0x73625140] %v1347
    %s1440 = scalar_lea.vmem [#allocation1], 1
    %v1441 = vld [vmem:[%s1440] ss:$4 sm:$0xff]
    %1443 = vst [vmem:[#allocation2 + $0x25] sm:$0x1] %v1441
    %1444 = vst.sshfl [vmem:[#allocation1] sm:$0xff pattern:$0x73625140] %v1347
    %s1445 = scalar_lea.vmem [#allocation1], 1
    %v1446 = vld [vmem:[%s1445] ss:$4 sm:$0xff]
    %v1447 = vrot.slane %v1446, 7
    %v1448 = vrot.slane %v1447, 2
    %1450 = vst [vmem:[#allocation2 + $0x27] sm:$0x1] %v1448
    %1451 = vst.sshfl [vmem:[#allocation1] sm:$0xff pattern:$0x73625140] %v1347
    %s1452 = scalar_lea.vmem [#allocation1], 2
    %v1453 = vld [vmem:[%s1452] ss:$4 sm:$0xff]
    %1455 = vst [vmem:[#allocation2 + $0x29] sm:$0x1] %v1453
    %1456 = vst.sshfl [vmem:[#allocation1] sm:$0xff pattern:$0x73625140] %v1347
    %s1457 = scalar_lea.vmem [#allocation1], 2
    %v1458 = vld [vmem:[%s1457] ss:$4 sm:$0xff]
    %v1459 = vrot.slane %v1458, 7
    %v1460 = vrot.slane %v1459, 2
    %1462 = vst [vmem:[#allocation2 + $0x2b] sm:$0x1] %v1460
    %1463 = vst.sshfl [vmem:[#allocation1] sm:$0xff pattern:$0x73625140] %v1347
    %s1464 = scalar_lea.vmem [#allocation1], 3
    %v1465 = vld [vmem:[%s1464] ss:$4 sm:$0xff]
    %1467 = vst [vmem:[#allocation2 + $0x2d] sm:$0x1] %v1465
    %1468 = vst.sshfl [vmem:[#allocation1] sm:$0xff pattern:$0x73625140] %v1347
    %s1469 = scalar_lea.vmem [#allocation1], 3
    %v1470 = vld [vmem:[%s1469] ss:$4 sm:$0xff]
    %v1471 = vrot.slane %v1470, 7
    %v1472 = vrot.slane %v1471, 2
    %1474 = vst [vmem:[#allocation2 + $0x2f] sm:$0x1] %v1472
    %1475 = vst [vmem:[#allocation2 + $0x31] sm:$0x1] %v1348
    %v1477 = vrot.slane %v1348, 7
    %v1478 = vrot.slane %v1477, 2
    %1480 = vst [vmem:[#allocation2 + $0x33] sm:$0x1] %v1478
    %1481 = vst.sshfl [vmem:[#allocation1] sm:$0xff pattern:$0x73625140] %v1348
    %s1482 = scalar_lea.vmem [#allocation1], 1
    %v1483 = vld [vmem:[%s1482] ss:$4 sm:$0xff]
    %1485 = vst [vmem:[#allocation2 + $0x35] sm:$0x1] %v1483
    %1486 = vst.sshfl [vmem:[#allocation1] sm:$0xff pattern:$0x73625140] %v1348
    %s1487 = scalar_lea.vmem [#allocation1], 1
    %v1488 = vld [vmem:[%s1487] ss:$4 sm:$0xff]
    %v1489 = vrot.slane %v1488, 7
    %v1490 = vrot.slane %v1489, 2
    %1492 = vst [vmem:[#allocation2 + $0x37] sm:$0x1] %v1490
    %1493 = vst.sshfl [vmem:[#allocation1] sm:$0xff pattern:$0x73625140] %v1348
    %s1494 = scalar_lea.vmem [#allocation1], 2
    %v1495 = vld [vmem:[%s1494] ss:$4 sm:$0xff]
    %1497 = vst [vmem:[#allocation2 + $0x39] sm:$0x1] %v1495
    %1498 = vst.sshfl [vmem:[#allocation1] sm:$0xff pattern:$0x73625140] %v1348
    %s1499 = scalar_lea.vmem [#allocation1], 2
    %v1500 = vld [vmem:[%s1499] ss:$4 sm:$0xff]
    %v1501 = vrot.slane %v1500, 7
    %v1502 = vrot.slane %v1501, 2
    %1504 = vst [vmem:[#allocation2 + $0x3b] sm:$0x1] %v1502
    %v1505 = vld [vmem:[#allocation2] sm:$0xff]
    %v1506 = vld [vmem:[#allocation2 + $0x8] sm:$0xff]
    %v1507 = vld [vmem:[#allocation2 + $0x10] sm:$0xff]
    %v1508 = vld [vmem:[#allocation2 + $0x18] sm:$0xff]
    %v1509 = vld [vmem:[#allocation2 + $0x20] sm:$0xff]
    %v1510 = vld [vmem:[#allocation2 + $0x28] sm:$0xff]
    %v1511 = vld [vmem:[#allocation2 + $0x30] sm:$0xff]
    %v1512 = vld [vmem:[#allocation2 + $0x38] sm:$0xf]
    %v1513 = vld [vmem:[%s7] sm:$0xff]
    %v1514 = vld [vmem:[%s7 + $0x8] sm:$0xff]
    %v1515 = vld [vmem:[%s7 + $0x10] sm:$0xff]
    %v1516 = vld [vmem:[%s7 + $0x18] sm:$0xff]
    %v1517 = vld [vmem:[%s7 + $0x20] sm:$0xff]
    %v1518 = vld [vmem:[%s7 + $0x28] sm:$0xff]
    %v1519 = vld [vmem:[%s7 + $0x30] sm:$0xff]
    %v1520 = vld [vmem:[%s7 + $0x38] sm:$0xff]
    %v1521 = vld [vmem:[%s7 + $0x40] sm:$0xff]
    %v1522 = vld [vmem:[%s7 + $0x48] sm:$0xff]
    %v1523 = vld [vmem:[%s7 + $0x50] sm:$0xff]
    %v1524 = vld [vmem:[%s7 + $0x58] sm:$0xff]
    %v1525 = vld [vmem:[%s7 + $0x60] sm:$0xff]
    %v1526 = vld [vmem:[%s7 + $0x68] sm:$0xff]
    %v1527 = vld [vmem:[%s7 + $0x70] sm:$0xff]
    %v1528 = vld [vmem:[%s7 + $0x78] sm:$0xff]
    %v1529 = vld [vmem:[%s7 + $0x80] sm:$0xff]
    %v1530 = vld [vmem:[%s7 + $0x88] sm:$0xff]
    %v1531 = vld [vmem:[%s7 + $0x90] sm:$0xff]
    %v1532 = vld [vmem:[%s7 + $0x98] sm:$0xff]
    %v1533 = vld [vmem:[%s7 + $0xa0] sm:$0xff]
    %v1534 = vld [vmem:[%s7 + $0xa8] sm:$0xff]
    %v1535 = vld [vmem:[%s7 + $0xb0] sm:$0xff]
    %v1536 = vld [vmem:[%s7 + $0xb8] sm:$0xff]
    %v1537 = vld [vmem:[%s7 + $0xc0] sm:$0xff]
    %v1538 = vld [vmem:[%s7 + $0xc8] sm:$0xff]
    %v1539 = vld [vmem:[%s7 + $0xd0] sm:$0xff]
    %v1540 = vld [vmem:[%s7 + $0xd8] sm:$0xff]
    %v1541 = vld [vmem:[%s7 + $0xe0] sm:$0xff]
    %v1542 = vld [vmem:[%s7 + $0xe8] sm:$0xff]
    %v1543 = vld [vmem:[%s7 + $0xf0] sm:$0xff]
    %v1544 = vld [vmem:[%s7 + $0xf8] sm:$0xff]
    %v1545 = vld [vmem:[%s7 + $0x100] sm:$0xff]
    %v1546 = vld [vmem:[%s7 + $0x108] sm:$0xff]
    %v1547 = vld [vmem:[%s7 + $0x110] sm:$0xff]
    %v1548 = vld [vmem:[%s7 + $0x118] sm:$0xff]
    %v1549 = vld [vmem:[%s7 + $0x120] sm:$0xff]
    %v1550 = vld [vmem:[%s7 + $0x128] sm:$0xff]
    %v1551 = vld [vmem:[%s7 + $0x130] sm:$0xff]
    %v1552 = vld [vmem:[%s7 + $0x138] sm:$0xff]
    %v1553 = vld [vmem:[%s7 + $0x140] sm:$0xff]
    %v1554 = vld [vmem:[%s7 + $0x148] sm:$0xff]
    %v1555 = vld [vmem:[%s7 + $0x150] sm:$0xff]
    %v1556 = vld [vmem:[%s7 + $0x158] sm:$0xff]
    %v1557 = vld [vmem:[%s7 + $0x160] sm:$0xff]
    %v1558 = vld [vmem:[%s7 + $0x168] sm:$0xff]
    %v1559 = vld [vmem:[%s7 + $0x170] sm:$0xff]
    %v1560 = vld [vmem:[%s7 + $0x178] sm:$0xff]
    %v1561 = vld [vmem:[%s7 + $0x180] sm:$0xff]
    %v1562 = vld [vmem:[%s7 + $0x188] sm:$0xff]
    %v1563 = vld [vmem:[%s7 + $0x190] sm:$0xff]
    %v1564 = vld [vmem:[%s7 + $0x198] sm:$0xff]
    %v1565 = vld [vmem:[%s7 + $0x1a0] sm:$0xff]
    %v1566 = vld [vmem:[%s7 + $0x1a8] sm:$0xff]
    %v1567 = vld [vmem:[%s7 + $0x1b0] sm:$0xff]
    %v1568 = vld [vmem:[%s7 + $0x1b8] sm:$0xff]
    %v1569 = vld [vmem:[%s7 + $0x1c0] sm:$0xff]
    %v1570 = vld [vmem:[%s7 + $0x1c8] sm:$0xff]
    %v1571 = vld [vmem:[%s7 + $0x1d0] sm:$0xff]
    %v1572 = vld [vmem:[%s7 + $0x1d8] sm:$0xff]
    %v1573 = vld [vmem:[%s7 + $0x1e0] sm:$0xff]
    %v1574 = vld [vmem:[%s7 + $0x1e8] sm:$0xff]
    %v1575 = vld [vmem:[%s7 + $0x1f0] sm:$0xff]
    %v1576 = vld [vmem:[%s7 + $0x1f8] sm:$0xff]
    %v1577 = vld [vmem:[%s7 + $0x200] sm:$0xff]
    %v1578 = vld [vmem:[%s7 + $0x208] sm:$0xff]
    %v1579 = vld [vmem:[%s7 + $0x210] sm:$0xff]
    %v1580 = vld [vmem:[%s7 + $0x218] sm:$0xff]
    %v1581 = vld [vmem:[%s7 + $0x220] sm:$0xff]
    %v1582 = vld [vmem:[%s7 + $0x228] sm:$0xff]
    %v1583 = vld [vmem:[%s7 + $0x230] sm:$0xff]
    %v1584 = vld [vmem:[%s7 + $0x238] sm:$0xff]
    %v1585 = vld [vmem:[%s7 + $0x240] sm:$0xff]
    %v1586 = vld [vmem:[%s7 + $0x248] sm:$0xff]
    %v1587 = vld [vmem:[%s7 + $0x250] sm:$0xff]
    %v1588 = vld [vmem:[%s7 + $0x258] sm:$0xff]
    %v1589 = vld [vmem:[%s7 + $0x260] sm:$0xff]
    %v1590 = vld [vmem:[%s7 + $0x268] sm:$0xff]
    %v1591 = vld [vmem:[%s7 + $0x270] sm:$0xff]
    %v1592 = vld [vmem:[%s7 + $0x278] sm:$0xff]
    %v1593 = vld [vmem:[%s7 + $0x280] sm:$0xff]
    %v1594 = vld [vmem:[%s7 + $0x288] sm:$0xff]
    %v1595 = vld [vmem:[%s7 + $0x290] sm:$0xff]
    %v1596 = vld [vmem:[%s7 + $0x298] sm:$0xff]
    %v1597 = vld [vmem:[%s7 + $0x2a0] sm:$0xff]
    %v1598 = vld [vmem:[%s7 + $0x2a8] sm:$0xff]
    %v1599 = vld [vmem:[%s7 + $0x2b0] sm:$0xff]
    %v1600 = vld [vmem:[%s7 + $0x2b8] sm:$0xff]
    %v1601 = vld [vmem:[%s7 + $0x2c0] sm:$0xff]
    %v1602 = vld [vmem:[%s7 + $0x2c8] sm:$0xff]
    %v1603 = vld [vmem:[%s7 + $0x2d0] sm:$0xff]
    %v1604 = vld [vmem:[%s7 + $0x2d8] sm:$0xff]
    %v1605 = vld [vmem:[%s7 + $0x2e0] sm:$0xff]
    %v1606 = vld [vmem:[%s7 + $0x2e8] sm:$0xff]
    %v1607 = vld [vmem:[%s7 + $0x2f0] sm:$0xff]
    %v1608 = vld [vmem:[%s7 + $0x2f8] sm:$0xff]
    %v1609 = vld [vmem:[%s7 + $0x300] sm:$0xff]
    %v1610 = vld [vmem:[%s7 + $0x308] sm:$0xff]
    %v1611 = vld [vmem:[%s7 + $0x310] sm:$0xff]
    %v1612 = vld [vmem:[%s7 + $0x318] sm:$0xff]
    %v1613 = vld [vmem:[%s7 + $0x320] sm:$0xff]
    %v1614 = vld [vmem:[%s7 + $0x328] sm:$0xff]
    %v1615 = vld [vmem:[%s7 + $0x330] sm:$0xff]
    %v1616 = vld [vmem:[%s7 + $0x338] sm:$0xff]
    %v1617 = vld [vmem:[%s7 + $0x340] sm:$0xff]
    %v1618 = vld [vmem:[%s7 + $0x348] sm:$0xff]
    %v1619 = vld [vmem:[%s7 + $0x350] sm:$0xff]
    %v1620 = vld [vmem:[%s7 + $0x358] sm:$0xff]
    %v1621 = vld [vmem:[%s7 + $0x360] sm:$0xff]
    %v1622 = vld [vmem:[%s7 + $0x368] sm:$0xff]
    %v1623 = vld [vmem:[%s7 + $0x370] sm:$0xff]
    %v1624 = vld [vmem:[%s7 + $0x378] sm:$0xff]
    %v1625 = vld [vmem:[%s7 + $0x380] sm:$0xff]
    %v1626 = vld [vmem:[%s7 + $0x388] sm:$0xff]
    %v1627 = vld [vmem:[%s7 + $0x390] sm:$0xff]
    %v1628 = vld [vmem:[%s7 + $0x398] sm:$0xff]
    %v1629 = vld [vmem:[%s7 + $0x3a0] sm:$0xff]
    %v1630 = vld [vmem:[%s7 + $0x3a8] sm:$0xff]
    %v1631 = vld [vmem:[%s7 + $0x3b0] sm:$0xff]
    %v1632 = vld [vmem:[%s7 + $0x3b8] sm:$0xff]
    %v1633 = vld [vmem:[%s7 + $0x3c0] sm:$0xff]
    %v1634 = vld [vmem:[%s7 + $0x3c8] sm:$0xff]
    %v1635 = vld [vmem:[%s7 + $0x3d0] sm:$0xff]
    %v1636 = vld [vmem:[%s7 + $0x3d8] sm:$0xff]
    %v1637 = vld [vmem:[%s7 + $0x3e0] sm:$0xff]
    %v1638 = vld [vmem:[%s7 + $0x3e8] sm:$0xff]
    %v1639 = vld [vmem:[%s7 + $0x3f0] sm:$0xff]
    %v1640 = vld [vmem:[%s7 + $0x3f8] sm:$0xff]
    %v1641 = vld [vmem:[%s7 + $0x400] sm:$0xff]
    %v1642 = vld [vmem:[%s7 + $0x408] sm:$0xff]
    %v1643 = vld [vmem:[%s7 + $0x410] sm:$0xff]
    %v1644 = vld [vmem:[%s7 + $0x418] sm:$0xff]
    %v1645 = vld [vmem:[%s7 + $0x420] sm:$0xff]
    %v1646 = vld [vmem:[%s7 + $0x428] sm:$0xff]
    %v1647 = vld [vmem:[%s7 + $0x430] sm:$0xff]
    %v1648 = vld [vmem:[%s7 + $0x438] sm:$0xff]
    %v1649 = vld [vmem:[%s7 + $0x440] sm:$0xff]
    %v1650 = vld [vmem:[%s7 + $0x448] sm:$0xff]
    %v1651 = vld [vmem:[%s7 + $0x450] sm:$0xff]
    %v1652 = vld [vmem:[%s7 + $0x458] sm:$0xff]
    %v1653 = vld [vmem:[%s7 + $0x460] sm:$0xff]
    %v1654 = vld [vmem:[%s7 + $0x468] sm:$0xff]
    %v1655 = vld [vmem:[%s7 + $0x470] sm:$0xff]
    %v1656 = vld [vmem:[%s7 + $0x478] sm:$0xff]
    %v1657 = vld [vmem:[%s7 + $0x480] sm:$0xff]
    %v1658 = vld [vmem:[%s7 + $0x488] sm:$0xff]
    %v1659 = vld [vmem:[%s7 + $0x490] sm:$0xff]
    %v1660 = vld [vmem:[%s7 + $0x498] sm:$0xff]
    %v1661 = vld [vmem:[%s7 + $0x4a0] sm:$0xff]
    %v1662 = vld [vmem:[%s7 + $0x4a8] sm:$0xff]
    %v1663 = vld [vmem:[%s7 + $0x4b0] sm:$0xff]
    %v1664 = vld [vmem:[%s7 + $0x4b8] sm:$0xff]
    %v1665 = vld [vmem:[%s7 + $0x4c0] sm:$0xff]
    %v1666 = vld [vmem:[%s7 + $0x4c8] sm:$0xff]
    %v1667 = vld [vmem:[%s7 + $0x4d0] sm:$0xff]
    %v1668 = vld [vmem:[%s7 + $0x4d8] sm:$0xff]
    %v1669 = vld [vmem:[%s7 + $0x4e0] sm:$0xff]
    %v1670 = vld [vmem:[%s7 + $0x4e8] sm:$0xff]
    %v1671 = vld [vmem:[%s7 + $0x4f0] sm:$0xff]
    %v1672 = vld [vmem:[%s7 + $0x4f8] sm:$0xff]
    %v1673 = vld [vmem:[%s7 + $0x500] sm:$0xff]
    %v1674 = vld [vmem:[%s7 + $0x508] sm:$0xff]
    %v1675 = vld [vmem:[%s7 + $0x510] sm:$0xff]
    %v1676 = vld [vmem:[%s7 + $0x518] sm:$0xff]
    %v1677 = vld [vmem:[%s7 + $0x520] sm:$0xff]
    %v1678 = vld [vmem:[%s7 + $0x528] sm:$0xff]
    %v1679 = vld [vmem:[%s7 + $0x530] sm:$0xff]
    %v1680 = vld [vmem:[%s7 + $0x538] sm:$0xff]
    %v1681 = vld [vmem:[%s7 + $0x540] sm:$0xff]
    %v1682 = vld [vmem:[%s7 + $0x548] sm:$0xff]
    %v1683 = vld [vmem:[%s7 + $0x550] sm:$0xff]
    %v1684 = vld [vmem:[%s7 + $0x558] sm:$0xff]
    %v1685 = vld [vmem:[%s7 + $0x560] sm:$0xff]
    %v1686 = vld [vmem:[%s7 + $0x568] sm:$0xff]
    %v1687 = vld [vmem:[%s7 + $0x570] sm:$0xff]
    %v1688 = vld [vmem:[%s7 + $0x578] sm:$0xff]
    %v1689 = vld [vmem:[%s7 + $0x580] sm:$0xff]
    %v1690 = vld [vmem:[%s7 + $0x588] sm:$0xff]
    %v1691 = vld [vmem:[%s7 + $0x590] sm:$0xff]
    %v1692 = vld [vmem:[%s7 + $0x598] sm:$0xff]
    %v1693 = vld [vmem:[%s7 + $0x5a0] sm:$0xff]
    %v1694 = vld [vmem:[%s7 + $0x5a8] sm:$0xff]
    %v1695 = vld [vmem:[%s7 + $0x5b0] sm:$0xff]
    %v1696 = vld [vmem:[%s7 + $0x5b8] sm:$0xff]
    %v1697 = vld [vmem:[%s7 + $0x5c0] sm:$0xff]
    %v1698 = vld [vmem:[%s7 + $0x5c8] sm:$0xff]
    %v1699 = vld [vmem:[%s7 + $0x5d0] sm:$0xff]
    %v1700 = vld [vmem:[%s7 + $0x5d8] sm:$0xff]
    %v1701 = vld [vmem:[%s7 + $0x5e0] sm:$0xff]
    %v1702 = vld [vmem:[%s7 + $0x5e8] sm:$0xff]
    %v1703 = vld [vmem:[%s7 + $0x5f0] sm:$0xff]
    %v1704 = vld [vmem:[%s7 + $0x5f8] sm:$0xff]
    %v1705 = vld [vmem:[%s7 + $0x600] sm:$0xff]
    %v1706 = vld [vmem:[%s7 + $0x608] sm:$0xff]
    %v1707 = vld [vmem:[%s7 + $0x610] sm:$0xff]
    %v1708 = vld [vmem:[%s7 + $0x618] sm:$0xff]
    %v1709 = vld [vmem:[%s7 + $0x620] sm:$0xff]
    %v1710 = vld [vmem:[%s7 + $0x628] sm:$0xff]
    %v1711 = vld [vmem:[%s7 + $0x630] sm:$0xff]
    %v1712 = vld [vmem:[%s7 + $0x638] sm:$0xff]
    %v1713 = vld [vmem:[%s7 + $0x640] sm:$0xff]
    %v1714 = vld [vmem:[%s7 + $0x648] sm:$0xff]
    %v1715 = vld [vmem:[%s7 + $0x650] sm:$0xff]
    %v1716 = vld [vmem:[%s7 + $0x658] sm:$0xff]
    %v1717 = vld [vmem:[%s7 + $0x660] sm:$0xff]
    %v1718 = vld [vmem:[%s7 + $0x668] sm:$0xff]
    %v1719 = vld [vmem:[%s7 + $0x670] sm:$0xff]
    %v1720 = vld [vmem:[%s7 + $0x678] sm:$0xff]
    %v1721 = vld [vmem:[%s7 + $0x680] sm:$0xff]
    %v1722 = vld [vmem:[%s7 + $0x688] sm:$0xff]
    %v1723 = vld [vmem:[%s7 + $0x690] sm:$0xff]
    %v1724 = vld [vmem:[%s7 + $0x698] sm:$0xff]
    %v1725 = vld [vmem:[%s7 + $0x6a0] sm:$0xff]
    %v1726 = vld [vmem:[%s7 + $0x6a8] sm:$0xff]
    %v1727 = vld [vmem:[%s7 + $0x6b0] sm:$0xff]
    %v1728 = vld [vmem:[%s7 + $0x6b8] sm:$0xff]
    %v1729 = vld [vmem:[%s7 + $0x6c0] sm:$0xff]
    %v1730 = vld [vmem:[%s7 + $0x6c8] sm:$0xff]
    %v1731 = vld [vmem:[%s7 + $0x6d0] sm:$0xff]
    %v1732 = vld [vmem:[%s7 + $0x6d8] sm:$0xff]
    %v1733 = vld [vmem:[%s7 + $0x6e0] sm:$0xff]
    %v1734 = vld [vmem:[%s7 + $0x6e8] sm:$0xff]
    %v1735 = vld [vmem:[%s7 + $0x6f0] sm:$0xff]
    %v1736 = vld [vmem:[%s7 + $0x6f8] sm:$0xff]
    %v1737 = vld [vmem:[%s7 + $0x700] sm:$0xff]
    %v1738 = vld [vmem:[%s7 + $0x708] sm:$0xff]
    %v1739 = vld [vmem:[%s7 + $0x710] sm:$0xff]
    %v1740 = vld [vmem:[%s7 + $0x718] sm:$0xff]
    %v1741 = vld [vmem:[%s7 + $0x720] sm:$0xff]
    %v1742 = vld [vmem:[%s7 + $0x728] sm:$0xff]
    %v1743 = vld [vmem:[%s7 + $0x730] sm:$0xff]
    %v1744 = vld [vmem:[%s7 + $0x738] sm:$0xff]
    %v1745 = vld [vmem:[%s7 + $0x740] sm:$0xff]
    %v1746 = vld [vmem:[%s7 + $0x748] sm:$0xff]
    %v1747 = vld [vmem:[%s7 + $0x750] sm:$0xff]
    %v1748 = vld [vmem:[%s7 + $0x758] sm:$0xff]
    %v1749 = vld [vmem:[%s7 + $0x760] sm:$0xff]
    %v1750 = vld [vmem:[%s7 + $0x768] sm:$0xff]
    %v1751 = vld [vmem:[%s7 + $0x770] sm:$0xff]
    %v1752 = vld [vmem:[%s7 + $0x778] sm:$0xff]
    %v1753 = vld [vmem:[%s7 + $0x780] sm:$0xff]
    %v1754 = vld [vmem:[%s7 + $0x788] sm:$0xff]
    %v1755 = vld [vmem:[%s7 + $0x790] sm:$0xff]
    %v1756 = vld [vmem:[%s7 + $0x798] sm:$0xff]
    %v1757 = vld [vmem:[%s7 + $0x7a0] sm:$0xff]
    %v1758 = vld [vmem:[%s7 + $0x7a8] sm:$0xff]
    %v1759 = vld [vmem:[%s7 + $0x7b0] sm:$0xff]
    %v1760 = vld [vmem:[%s7 + $0x7b8] sm:$0xff]
    %v1761 = vld [vmem:[%s7 + $0x7c0] sm:$0xff]
    %v1762 = vld [vmem:[%s7 + $0x7c8] sm:$0xff]
    %v1763 = vld [vmem:[%s7 + $0x7d0] sm:$0xff]
    %v1764 = vld [vmem:[%s7 + $0x7d8] sm:$0xff]
    %v1765 = vld [vmem:[%s7 + $0x7e0] sm:$0xff]
    %v1766 = vld [vmem:[%s7 + $0x7e8] sm:$0xff]
    %v1767 = vld [vmem:[%s7 + $0x7f0] sm:$0xff]
    %v1768 = vld [vmem:[%s7 + $0x7f8] sm:$0xff]
    %v1769 = vld [vmem:[%s7 + $0x800] sm:$0xff]
    %v1770 = vld [vmem:[%s7 + $0x808] sm:$0xff]
    %v1771 = vld [vmem:[%s7 + $0x810] sm:$0xff]
    %v1772 = vld [vmem:[%s7 + $0x818] sm:$0xff]
    %v1773 = vld [vmem:[%s7 + $0x820] sm:$0xff]
    %v1774 = vld [vmem:[%s7 + $0x828] sm:$0xff]
    %v1775 = vld [vmem:[%s7 + $0x830] sm:$0xff]
    %v1776 = vld [vmem:[%s7 + $0x838] sm:$0xff]
    %v1777 = vld [vmem:[%s7 + $0x840] sm:$0xff]
    %v1778 = vld [vmem:[%s7 + $0x848] sm:$0xff]
    %v1779 = vld [vmem:[%s7 + $0x850] sm:$0xff]
    %v1780 = vld [vmem:[%s7 + $0x858] sm:$0xff]
    %v1781 = vld [vmem:[%s7 + $0x860] sm:$0xff]
    %v1782 = vld [vmem:[%s7 + $0x868] sm:$0xff]
    %v1783 = vld [vmem:[%s7 + $0x870] sm:$0xff]
    %v1784 = vld [vmem:[%s7 + $0x878] sm:$0xff]
    %v1785 = vld [vmem:[%s7 + $0x880] sm:$0xff]
    %v1786 = vld [vmem:[%s7 + $0x888] sm:$0xff]
    %v1787 = vld [vmem:[%s7 + $0x890] sm:$0xff]
    %v1788 = vld [vmem:[%s7 + $0x898] sm:$0xff]
    %v1789 = vld [vmem:[%s7 + $0x8a0] sm:$0xff]
    %v1790 = vld [vmem:[%s7 + $0x8a8] sm:$0xff]
    %v1791 = vld [vmem:[%s7 + $0x8b0] sm:$0xff]
    %v1792 = vld [vmem:[%s7 + $0x8b8] sm:$0xff]
    %v1793 = vld [vmem:[%s7 + $0x8c0] sm:$0xff]
    %v1794 = vld [vmem:[%s7 + $0x8c8] sm:$0xff]
    %v1795 = vld [vmem:[%s7 + $0x8d0] sm:$0xff]
    %v1796 = vld [vmem:[%s7 + $0x8d8] sm:$0xff]
    %v1797 = vld [vmem:[%s7 + $0x8e0] sm:$0xff]
    %v1798 = vld [vmem:[%s7 + $0x8e8] sm:$0xff]
    %v1799 = vld [vmem:[%s7 + $0x8f0] sm:$0xff]
    %v1800 = vld [vmem:[%s7 + $0x8f8] sm:$0xff]
    %v1801 = vld [vmem:[%s7 + $0x900] sm:$0xff]
    %v1802 = vld [vmem:[%s7 + $0x908] sm:$0xff]
    %v1803 = vld [vmem:[%s7 + $0x910] sm:$0xff]
    %v1804 = vld [vmem:[%s7 + $0x918] sm:$0xff]
    %v1805 = vld [vmem:[%s7 + $0x920] sm:$0xff]
    %v1806 = vld [vmem:[%s7 + $0x928] sm:$0xff]
    %v1807 = vld [vmem:[%s7 + $0x930] sm:$0xff]
    %v1808 = vld [vmem:[%s7 + $0x938] sm:$0xff]
    %v1809 = vld [vmem:[%s7 + $0x940] sm:$0xff]
    %v1810 = vld [vmem:[%s7 + $0x948] sm:$0xff]
    %v1811 = vld [vmem:[%s7 + $0x950] sm:$0xff]
    %v1812 = vld [vmem:[%s7 + $0x958] sm:$0xff]
    %v1813 = vld [vmem:[%s7 + $0x960] sm:$0xff]
    %v1814 = vld [vmem:[%s7 + $0x968] sm:$0xff]
    %v1815 = vld [vmem:[%s7 + $0x970] sm:$0xff]
    %v1816 = vld [vmem:[%s7 + $0x978] sm:$0xff]
    %v1817 = vld [vmem:[%s7 + $0x980] sm:$0xff]
    %v1818 = vld [vmem:[%s7 + $0x988] sm:$0xff]
    %v1819 = vld [vmem:[%s7 + $0x990] sm:$0xff]
    %v1820 = vld [vmem:[%s7 + $0x998] sm:$0xff]
    %v1821 = vld [vmem:[%s7 + $0x9a0] sm:$0xff]
    %v1822 = vld [vmem:[%s7 + $0x9a8] sm:$0xff]
    %v1823 = vld [vmem:[%s7 + $0x9b0] sm:$0xff]
    %v1824 = vld [vmem:[%s7 + $0x9b8] sm:$0xff]
    %v1825 = vld [vmem:[%s7 + $0x9c0] sm:$0xff]
    %v1826 = vld [vmem:[%s7 + $0x9c8] sm:$0xff]
    %v1827 = vld [vmem:[%s7 + $0x9d0] sm:$0xff]
    %v1828 = vld [vmem:[%s7 + $0x9d8] sm:$0xff]
    %v1829 = vld [vmem:[%s7 + $0x9e0] sm:$0xff]
    %v1830 = vld [vmem:[%s7 + $0x9e8] sm:$0xff]
    %v1831 = vld [vmem:[%s7 + $0x9f0] sm:$0xff]
    %v1832 = vld [vmem:[%s7 + $0x9f8] sm:$0xff]
    %v1833 = vld [vmem:[%s7 + $0xa00] sm:$0xff]
    %v1834 = vld [vmem:[%s7 + $0xa08] sm:$0xff]
    %v1835 = vld [vmem:[%s7 + $0xa10] sm:$0xff]
    %v1836 = vld [vmem:[%s7 + $0xa18] sm:$0xff]
    %v1837 = vld [vmem:[%s7 + $0xa20] sm:$0xff]
    %v1838 = vld [vmem:[%s7 + $0xa28] sm:$0xff]
    %v1839 = vld [vmem:[%s7 + $0xa30] sm:$0xff]
    %v1840 = vld [vmem:[%s7 + $0xa38] sm:$0xff]
    %v1841 = vld [vmem:[%s7 + $0xa40] sm:$0xff]
    %v1842 = vld [vmem:[%s7 + $0xa48] sm:$0xff]
    %v1843 = vld [vmem:[%s7 + $0xa50] sm:$0xff]
    %v1844 = vld [vmem:[%s7 + $0xa58] sm:$0xff]
    %v1845 = vld [vmem:[%s7 + $0xa60] sm:$0xff]
    %v1846 = vld [vmem:[%s7 + $0xa68] sm:$0xff]
    %v1847 = vld [vmem:[%s7 + $0xa70] sm:$0xff]
    %v1848 = vld [vmem:[%s7 + $0xa78] sm:$0xff]
    %v1849 = vld [vmem:[%s7 + $0xa80] sm:$0xff]
    %v1850 = vld [vmem:[%s7 + $0xa88] sm:$0xff]
    %v1851 = vld [vmem:[%s7 + $0xa90] sm:$0xff]
    %v1852 = vld [vmem:[%s7 + $0xa98] sm:$0xff]
    %v1853 = vld [vmem:[%s7 + $0xaa0] sm:$0xff]
    %v1854 = vld [vmem:[%s7 + $0xaa8] sm:$0xff]
    %v1855 = vld [vmem:[%s7 + $0xab0] sm:$0xff]
    %v1856 = vld [vmem:[%s7 + $0xab8] sm:$0xff]
    %v1857 = vld [vmem:[%s7 + $0xac0] sm:$0xff]
    %v1858 = vld [vmem:[%s7 + $0xac8] sm:$0xff]
    %v1859 = vld [vmem:[%s7 + $0xad0] sm:$0xff]
    %v1860 = vld [vmem:[%s7 + $0xad8] sm:$0xff]
    %v1861 = vld [vmem:[%s7 + $0xae0] sm:$0xff]
    %v1862 = vld [vmem:[%s7 + $0xae8] sm:$0xff]
    %v1863 = vld [vmem:[%s7 + $0xaf0] sm:$0xff]
    %v1864 = vld [vmem:[%s7 + $0xaf8] sm:$0xff]
    %v1865 = vld [vmem:[%s7 + $0xb00] sm:$0xff]
    %v1866 = vld [vmem:[%s7 + $0xb08] sm:$0xff]
    %v1867 = vld [vmem:[%s7 + $0xb10] sm:$0xff]
    %v1868 = vld [vmem:[%s7 + $0xb18] sm:$0xff]
    %v1869 = vld [vmem:[%s7 + $0xb20] sm:$0xff]
    %v1870 = vld [vmem:[%s7 + $0xb28] sm:$0xff]
    %v1871 = vld [vmem:[%s7 + $0xb30] sm:$0xff]
    %v1872 = vld [vmem:[%s7 + $0xb38] sm:$0xff]
    %v1873 = vld [vmem:[%s7 + $0xb40] sm:$0xff]
    %v1874 = vld [vmem:[%s7 + $0xb48] sm:$0xff]
    %v1875 = vld [vmem:[%s7 + $0xb50] sm:$0xff]
    %v1876 = vld [vmem:[%s7 + $0xb58] sm:$0xff]
    %v1877 = vld [vmem:[%s7 + $0xb60] sm:$0xff]
    %v1878 = vld [vmem:[%s7 + $0xb68] sm:$0xff]
    %v1879 = vld [vmem:[%s7 + $0xb70] sm:$0xff]
    %v1880 = vld [vmem:[%s7 + $0xb78] sm:$0xff]
    %v1881 = vld [vmem:[%s7 + $0xb80] sm:$0xff]
    %v1882 = vld [vmem:[%s7 + $0xb88] sm:$0xff]
    %v1883 = vld [vmem:[%s7 + $0xb90] sm:$0xff]
    %v1884 = vld [vmem:[%s7 + $0xb98] sm:$0xff]
    %v1885 = vld [vmem:[%s7 + $0xba0] sm:$0xff]
    %v1886 = vld [vmem:[%s7 + $0xba8] sm:$0xff]
    %v1887 = vld [vmem:[%s7 + $0xbb0] sm:$0xff]
    %v1888 = vld [vmem:[%s7 + $0xbb8] sm:$0xff]
    %v1889 = vld [vmem:[%s7 + $0xbc0] sm:$0xff]
    %v1890 = vld [vmem:[%s7 + $0xbc8] sm:$0xff]
    %v1891 = vld [vmem:[%s7 + $0xbd0] sm:$0xff]
    %v1892 = vld [vmem:[%s7 + $0xbd8] sm:$0xff]
    %v1893 = vld [vmem:[%s7 + $0xbe0] sm:$0xff]
    %v1894 = vld [vmem:[%s7 + $0xbe8] sm:$0xff]
    %v1895 = vld [vmem:[%s7 + $0xbf0] sm:$0xff]
    %v1896 = vld [vmem:[%s7 + $0xbf8] sm:$0xff]
    %v1897 = vld [vmem:[%s7 + $0xc00] sm:$0xff]
    %v1898 = vld [vmem:[%s7 + $0xc08] sm:$0xff]
    %v1899 = vld [vmem:[%s7 + $0xc10] sm:$0xff]
    %v1900 = vld [vmem:[%s7 + $0xc18] sm:$0xff]
    %v1901 = vld [vmem:[%s7 + $0xc20] sm:$0xff]
    %v1902 = vld [vmem:[%s7 + $0xc28] sm:$0xff]
    %v1903 = vld [vmem:[%s7 + $0xc30] sm:$0xff]
    %v1904 = vld [vmem:[%s7 + $0xc38] sm:$0xff]
    %v1905 = vld [vmem:[%s7 + $0xc40] sm:$0xff]
    %v1906 = vld [vmem:[%s7 + $0xc48] sm:$0xff]
    %v1907 = vld [vmem:[%s7 + $0xc50] sm:$0xff]
    %v1908 = vld [vmem:[%s7 + $0xc58] sm:$0xff]
    %v1909 = vld [vmem:[%s7 + $0xc60] sm:$0xff]
    %v1910 = vld [vmem:[%s7 + $0xc68] sm:$0xff]
    %v1911 = vld [vmem:[%s7 + $0xc70] sm:$0xff]
    %v1912 = vld [vmem:[%s7 + $0xc78] sm:$0xff]
    %v1913 = vld [vmem:[%s7 + $0xc80] sm:$0xff]
    %v1914 = vld [vmem:[%s7 + $0xc88] sm:$0xff]
    %v1915 = vld [vmem:[%s7 + $0xc90] sm:$0xff]
    %v1916 = vld [vmem:[%s7 + $0xc98] sm:$0xff]
    %v1917 = vld [vmem:[%s7 + $0xca0] sm:$0xff]
    %v1918 = vld [vmem:[%s7 + $0xca8] sm:$0xff]
    %v1919 = vld [vmem:[%s7 + $0xcb0] sm:$0xff]
    %v1920 = vld [vmem:[%s7 + $0xcb8] sm:$0xff]
    %v1921 = vld [vmem:[%s7 + $0xcc0] sm:$0xff]
    %v1922 = vld [vmem:[%s7 + $0xcc8] sm:$0xff]
    %v1923 = vld [vmem:[%s7 + $0xcd0] sm:$0xff]
    %v1924 = vld [vmem:[%s7 + $0xcd8] sm:$0xff]
    %v1925 = vld [vmem:[%s7 + $0xce0] sm:$0xff]
    %v1926 = vld [vmem:[%s7 + $0xce8] sm:$0xff]
    %v1927 = vld [vmem:[%s7 + $0xcf0] sm:$0xff]
    %v1928 = vld [vmem:[%s7 + $0xcf8] sm:$0xff]
    %v1929 = vld [vmem:[%s7 + $0xd00] sm:$0xff]
    %v1930 = vld [vmem:[%s7 + $0xd08] sm:$0xff]
    %v1931 = vld [vmem:[%s7 + $0xd10] sm:$0xff]
    %v1932 = vld [vmem:[%s7 + $0xd18] sm:$0xff]
    %v1933 = vld [vmem:[%s7 + $0xd20] sm:$0xff]
    %v1934 = vld [vmem:[%s7 + $0xd28] sm:$0xff]
    %v1935 = vld [vmem:[%s7 + $0xd30] sm:$0xff]
    %v1936 = vld [vmem:[%s7 + $0xd38] sm:$0xff]
    %v1937 = vld [vmem:[%s7 + $0xd40] sm:$0xff]
    %v1938 = vld [vmem:[%s7 + $0xd48] sm:$0xff]
    %v1939 = vld [vmem:[%s7 + $0xd50] sm:$0xff]
    %v1940 = vld [vmem:[%s7 + $0xd58] sm:$0xff]
    %v1941 = vld [vmem:[%s7 + $0xd60] sm:$0xff]
    %v1942 = vld [vmem:[%s7 + $0xd68] sm:$0xff]
    %v1943 = vld [vmem:[%s7 + $0xd70] sm:$0xff]
    %v1944 = vld [vmem:[%s7 + $0xd78] sm:$0xff]
    %v1945 = vld [vmem:[%s7 + $0xd80] sm:$0xff]
    %v1946 = vld [vmem:[%s7 + $0xd88] sm:$0xff]
    %v1947 = vld [vmem:[%s7 + $0xd90] sm:$0xff]
    %v1948 = vld [vmem:[%s7 + $0xd98] sm:$0xff]
    %v1949 = vld [vmem:[%s7 + $0xda0] sm:$0xff]
    %v1950 = vld [vmem:[%s7 + $0xda8] sm:$0xff]
    %v1951 = vld [vmem:[%s7 + $0xdb0] sm:$0xff]
    %v1952 = vld [vmem:[%s7 + $0xdb8] sm:$0xff]
    %v1953 = vld [vmem:[%s7 + $0xdc0] sm:$0xff]
    %v1954 = vld [vmem:[%s7 + $0xdc8] sm:$0xff]
    %v1955 = vld [vmem:[%s7 + $0xdd0] sm:$0xff]
    %v1956 = vld [vmem:[%s7 + $0xdd8] sm:$0xff]
    %v1957 = vld [vmem:[%s7 + $0xde0] sm:$0xff]
    %v1958 = vld [vmem:[%s7 + $0xde8] sm:$0xff]
    %v1959 = vld [vmem:[%s7 + $0xdf0] sm:$0xff]
    %v1960 = vld [vmem:[%s7 + $0xdf8] sm:$0xff]
    %v1961 = vld [vmem:[%s7 + $0xe00] sm:$0xff]
    %v1962 = vld [vmem:[%s7 + $0xe08] sm:$0xff]
    %v1963 = vld [vmem:[%s7 + $0xe10] sm:$0xff]
    %v1964 = vld [vmem:[%s7 + $0xe18] sm:$0xff]
    %v1965 = vld [vmem:[%s7 + $0xe20] sm:$0xff]
    %v1966 = vld [vmem:[%s7 + $0xe28] sm:$0xff]
    %v1967 = vld [vmem:[%s7 + $0xe30] sm:$0xff]
    %v1968 = vld [vmem:[%s7 + $0xe38] sm:$0xff]
    %v1969 = vld [vmem:[%s7 + $0xe40] sm:$0xff]
    %v1970 = vld [vmem:[%s7 + $0xe48] sm:$0xff]
    %v1971 = vld [vmem:[%s7 + $0xe50] sm:$0xff]
    %v1972 = vld [vmem:[%s7 + $0xe58] sm:$0xff]
    %v1973 = vld [vmem:[%s7 + $0xe60] sm:$0xff]
    %v1974 = vld [vmem:[%s7 + $0xe68] sm:$0xff]
    %v1975 = vld [vmem:[%s7 + $0xe70] sm:$0xff]
    %v1976 = vld [vmem:[%s7 + $0xe78] sm:$0xff]
    %v1977 = vld [vmem:[%s7 + $0xe80] sm:$0xff]
    %v1978 = vld [vmem:[%s7 + $0xe88] sm:$0xff]
    %v1979 = vld [vmem:[%s7 + $0xe90] sm:$0xff]
    %v1980 = vld [vmem:[%s7 + $0xe98] sm:$0xff]
    %v1981 = vld [vmem:[%s7 + $0xea0] sm:$0xff]
    %v1982 = vld [vmem:[%s7 + $0xea8] sm:$0xff]
    %v1983 = vld [vmem:[%s7 + $0xeb0] sm:$0xff]
    %v1984 = vld [vmem:[%s7 + $0xeb8] sm:$0xff]
    %v1985 = vld [vmem:[%s7 + $0xec0] sm:$0xff]
    %v1986 = vld [vmem:[%s7 + $0xec8] sm:$0xff]
    %v1987 = vld [vmem:[%s7 + $0xed0] sm:$0xff]
    %v1988 = vld [vmem:[%s7 + $0xed8] sm:$0xff]
    %v1989 = vld [vmem:[%s7 + $0xee0] sm:$0xff]
    %v1990 = vld [vmem:[%s7 + $0xee8] sm:$0xff]
    %v1991 = vld [vmem:[%s7 + $0xef0] sm:$0xff]
    %v1992 = vld [vmem:[%s7 + $0xef8] sm:$0xff]
    %v1993 = vld [vmem:[%s8] sm:$0x1]
    %v1995 = vperm.slane %v1993, 0
    %2005 = vst [vmem:[#allocation1] ss:$4 sm:$0xff] %v1505
    %s2006 = scalar_lea.vmem [#allocation1], 32
    %2007 = vst [vmem:[%s2006] ss:$4 sm:$0xff] %v1506
    %v2008 = vld.sshfl [vmem:[#allocation1] sm:$0xff pattern:$0x73625140]
    %v2009 = vld.sshfl [vmem:[#allocation1 + $0x8] sm:$0xff pattern:$0x73625140]
    %v2010 = vld.sshfl [vmem:[#allocation1 + $0x10] sm:$0xff pattern:$0x73625140]
    %v2011 = vld.sshfl [vmem:[#allocation1 + $0x18] sm:$0xff pattern:$0x73625140]
    %v2012 = vld.sshfl [vmem:[#allocation1 + $0x20] sm:$0xff pattern:$0x73625140]
    %v2013 = vld.sshfl [vmem:[#allocation1 + $0x28] sm:$0xff pattern:$0x73625140]
    %v2014 = vld.sshfl [vmem:[#allocation1 + $0x30] sm:$0xff pattern:$0x73625140]
    %v2015 = vld.sshfl [vmem:[#allocation1 + $0x38] sm:$0xff pattern:$0x73625140]
    %2016 = vst [vmem:[#allocation1] ss:$4 sm:$0xff] %v1507
    %2017 = vst [vmem:[%s2006] ss:$4 sm:$0xff] %v1508
    %v2018 = vld.sshfl [vmem:[#allocation1] sm:$0xff pattern:$0x73625140]
    %v2019 = vld.sshfl [vmem:[#allocation1 + $0x8] sm:$0xff pattern:$0x73625140]
    %v2020 = vld.sshfl [vmem:[#allocation1 + $0x10] sm:$0xff pattern:$0x73625140]
    %v2021 = vld.sshfl [vmem:[#allocation1 + $0x18] sm:$0xff pattern:$0x73625140]
    %v2022 = vld.sshfl [vmem:[#allocation1 + $0x20] sm:$0xff pattern:$0x73625140]
    %v2023 = vld.sshfl [vmem:[#allocation1 + $0x28] sm:$0xff pattern:$0x73625140]
    %v2024 = vld.sshfl [vmem:[#allocation1 + $0x30] sm:$0xff pattern:$0x73625140]
    %v2025 = vld.sshfl [vmem:[#allocation1 + $0x38] sm:$0xff pattern:$0x73625140]
    %2026 = vst [vmem:[#allocation1] ss:$4 sm:$0xff] %v1509
    %2027 = vst [vmem:[%s2006] ss:$4 sm:$0xff] %v1510
    %v2028 = vld.sshfl [vmem:[#allocation1] sm:$0xff pattern:$0x73625140]
    %v2029 = vld.sshfl [vmem:[#allocation1 + $0x8] sm:$0xff pattern:$0x73625140]
    %v2030 = vld.sshfl [vmem:[#allocation1 + $0x10] sm:$0xff pattern:$0x73625140]
    %v2031 = vld.sshfl [vmem:[#allocation1 + $0x18] sm:$0xff pattern:$0x73625140]
    %v2032 = vld.sshfl [vmem:[#allocation1 + $0x20] sm:$0xff pattern:$0x73625140]
    %v2033 = vld.sshfl [vmem:[#allocation1 + $0x28] sm:$0xff pattern:$0x73625140]
    %v2034 = vld.sshfl [vmem:[#allocation1 + $0x30] sm:$0xff pattern:$0x73625140]
    %v2035 = vld.sshfl [vmem:[#allocation1 + $0x38] sm:$0xff pattern:$0x73625140]
    %2036 = vst [vmem:[#allocation1] ss:$4 sm:$0xff] %v1511
    %2037 = vst [vmem:[%s2006] ss:$4 sm:$0xff] %v1512
    %v2038 = vld.sshfl [vmem:[#allocation1] sm:$0xff pattern:$0x73625140]
    %v2039 = vld.sshfl [vmem:[#allocation1 + $0x8] sm:$0xff pattern:$0x73625140]
    %v2040 = vld.sshfl [vmem:[#allocation1 + $0x10] sm:$0xff pattern:$0x73625140]
    %v2041 = vld.sshfl [vmem:[#allocation1 + $0x18] sm:$0xff pattern:$0x73625140]
    %v2042 = vld.sshfl [vmem:[#allocation1 + $0x20] sm:$0xff pattern:$0x73625140]
    %v2043 = vld.sshfl [vmem:[#allocation1 + $0x28] sm:$0xff pattern:$0x73625140]
    %2074 = vmatpush.msra.mxu0 %v1528
    %2075 = vmatpush.msra.mxu0 %v1527
    %2076 = vmatpush.msra.mxu0 %v1526
    %2077 = vmatpush.msra.mxu0 %v1525
    %2078 = vmatpush.msra.mxu0 %v1524
    %2079 = vmatpush.msra.mxu0 %v1523
    %2080 = vmatpush.msra.mxu0 %v1522
    %2081 = vmatpush.msra.mxu0 %v1521
    %2082 = vmatpush.msra.mxu0 %v1520
    %2083 = vmatpush.msra.mxu0 %v1519
    %2084 = vmatpush.msra.mxu0 %v1518
    %2085 = vmatpush.msra.mxu0 %v1517
    %2086 = vmatpush.msra.mxu0 %v1516
    %2087 = vmatpush.msra.mxu0 %v1515
    %2088 = vmatpush.msra.mxu0 %v1514
    %2089 = vmatpush.msra.mxu0 %v1513
    %2090 = vmatmul.f32.gmra.mxu0 %v2008
    %v2091 = vpop.f32.mrf.mxu0
    %v2092 = vadd.f32 %v1995, %v2091
    %2093 = vdwg.mxu0
    %2094 = vmatpush.msra.mxu0 %v1544
    %2095 = vmatpush.msra.mxu0 %v1543
    %2096 = vmatpush.msra.mxu0 %v1542
    %2097 = vmatpush.msra.mxu0 %v1541
    %2098 = vmatpush.msra.mxu0 %v1540
    %2099 = vmatpush.msra.mxu0 %v1539
    %2100 = vmatpush.msra.mxu0 %v1538
    %2101 = vmatpush.msra.mxu0 %v1537
    %2102 = vmatpush.msra.mxu0 %v1536
    %2103 = vmatpush.msra.mxu0 %v1535
    %2104 = vmatpush.msra.mxu0 %v1534
    %2105 = vmatpush.msra.mxu0 %v1533
    %2106 = vmatpush.msra.mxu0 %v1532
    %2107 = vmatpush.msra.mxu0 %v1531
    %2108 = vmatpush.msra.mxu0 %v1530
    %2109 = vmatpush.msra.mxu0 %v1529
    %2110 = vmatmul.f32.gmra.mxu0 %v2009
    %v2111 = vpop.f32.mrf.mxu0
    %v2112 = vadd.f32 %v2092, %v2111
    %2113 = vdwg.mxu0
    %2114 = vmatpush.msra.mxu0 %v1560
    %2115 = vmatpush.msra.mxu0 %v1559
    %2116 = vmatpush.msra.mxu0 %v1558
    %2117 = vmatpush.msra.mxu0 %v1557
    %2118 = vmatpush.msra.mxu0 %v1556
    %2119 = vmatpush.msra.mxu0 %v1555
    %2120 = vmatpush.msra.mxu0 %v1554
    %2121 = vmatpush.msra.mxu0 %v1553
    %2122 = vmatpush.msra.mxu0 %v1552
    %2123 = vmatpush.msra.mxu0 %v1551
    %2124 = vmatpush.msra.mxu0 %v1550
    %2125 = vmatpush.msra.mxu0 %v1549
    %2126 = vmatpush.msra.mxu0 %v1548
    %2127 = vmatpush.msra.mxu0 %v1547
    %2128 = vmatpush.msra.mxu0 %v1546
    %2129 = vmatpush.msra.mxu0 %v1545
    %2130 = vmatmul.f32.gmra.mxu0 %v2010
    %v2131 = vpop.f32.mrf.mxu0
    %v2132 = vadd.f32 %v2112, %v2131
    %2133 = vdwg.mxu0
    %2134 = vmatpush.msra.mxu0 %v1576
    %2135 = vmatpush.msra.mxu0 %v1575
    %2136 = vmatpush.msra.mxu0 %v1574
    %2137 = vmatpush.msra.mxu0 %v1573
    %2138 = vmatpush.msra.mxu0 %v1572
    %2139 = vmatpush.msra.mxu0 %v1571
    %2140 = vmatpush.msra.mxu0 %v1570
    %2141 = vmatpush.msra.mxu0 %v1569
    %2142 = vmatpush.msra.mxu0 %v1568
    %2143 = vmatpush.msra.mxu0 %v1567
    %2144 = vmatpush.msra.mxu0 %v1566
    %2145 = vmatpush.msra.mxu0 %v1565
    %2146 = vmatpush.msra.mxu0 %v1564
    %2147 = vmatpush.msra.mxu0 %v1563
    %2148 = vmatpush.msra.mxu0 %v1562
    %2149 = vmatpush.msra.mxu0 %v1561
    %2150 = vmatmul.f32.gmra.mxu0 %v2011
    %v2151 = vpop.f32.mrf.mxu0
    %v2152 = vadd.f32 %v2132, %v2151
    %2153 = vdwg.mxu0
    %2154 = vmatpush.msra.mxu0 %v1592
    %2155 = vmatpush.msra.mxu0 %v1591
    %2156 = vmatpush.msra.mxu0 %v1590
    %2157 = vmatpush.msra.mxu0 %v1589
    %2158 = vmatpush.msra.mxu0 %v1588
    %2159 = vmatpush.msra.mxu0 %v1587
    %2160 = vmatpush.msra.mxu0 %v1586
    %2161 = vmatpush.msra.mxu0 %v1585
    %2162 = vmatpush.msra.mxu0 %v1584
    %2163 = vmatpush.msra.mxu0 %v1583
    %2164 = vmatpush.msra.mxu0 %v1582
    %2165 = vmatpush.msra.mxu0 %v1581
    %2166 = vmatpush.msra.mxu0 %v1580
    %2167 = vmatpush.msra.mxu0 %v1579
    %2168 = vmatpush.msra.mxu0 %v1578
    %2169 = vmatpush.msra.mxu0 %v1577
    %2170 = vmatmul.f32.gmra.mxu0 %v2012
    %v2171 = vpop.f32.mrf.mxu0
    %v2172 = vadd.f32 %v2152, %v2171
    %2173 = vdwg.mxu0
    %2174 = vmatpush.msra.mxu0 %v1608
    %2175 = vmatpush.msra.mxu0 %v1607
    %2176 = vmatpush.msra.mxu0 %v1606
    %2177 = vmatpush.msra.mxu0 %v1605
    %2178 = vmatpush.msra.mxu0 %v1604
    %2179 = vmatpush.msra.mxu0 %v1603
    %2180 = vmatpush.msra.mxu0 %v1602
    %2181 = vmatpush.msra.mxu0 %v1601
    %2182 = vmatpush.msra.mxu0 %v1600
    %2183 = vmatpush.msra.mxu0 %v1599
    %2184 = vmatpush.msra.mxu0 %v1598
    %2185 = vmatpush.msra.mxu0 %v1597
    %2186 = vmatpush.msra.mxu0 %v1596
    %2187 = vmatpush.msra.mxu0 %v1595
    %2188 = vmatpush.msra.mxu0 %v1594
    %2189 = vmatpush.msra.mxu0 %v1593
    %2190 = vmatmul.f32.gmra.mxu0 %v2013
    %v2191 = vpop.f32.mrf.mxu0
    %v2192 = vadd.f32 %v2172, %v2191
    %2193 = vdwg.mxu0
    %2194 = vmatpush.msra.mxu0 %v1624
    %2195 = vmatpush.msra.mxu0 %v1623
    %2196 = vmatpush.msra.mxu0 %v1622
    %2197 = vmatpush.msra.mxu0 %v1621
    %2198 = vmatpush.msra.mxu0 %v1620
    %2199 = vmatpush.msra.mxu0 %v1619
    %2200 = vmatpush.msra.mxu0 %v1618
    %2201 = vmatpush.msra.mxu0 %v1617
    %2202 = vmatpush.msra.mxu0 %v1616
    %2203 = vmatpush.msra.mxu0 %v1615
    %2204 = vmatpush.msra.mxu0 %v1614
    %2205 = vmatpush.msra.mxu0 %v1613
    %2206 = vmatpush.msra.mxu0 %v1612
    %2207 = vmatpush.msra.mxu0 %v1611
    %2208 = vmatpush.msra.mxu0 %v1610
    %2209 = vmatpush.msra.mxu0 %v1609
    %2210 = vmatmul.f32.gmra.mxu0 %v2014
    %v2211 = vpop.f32.mrf.mxu0
    %v2212 = vadd.f32 %v2192, %v2211
    %2213 = vdwg.mxu0
    %2214 = vmatpush.msra.mxu0 %v1640
    %2215 = vmatpush.msra.mxu0 %v1639
    %2216 = vmatpush.msra.mxu0 %v1638
    %2217 = vmatpush.msra.mxu0 %v1637
    %2218 = vmatpush.msra.mxu0 %v1636
    %2219 = vmatpush.msra.mxu0 %v1635
    %2220 = vmatpush.msra.mxu0 %v1634
    %2221 = vmatpush.msra.mxu0 %v1633
    %2222 = vmatpush.msra.mxu0 %v1632
    %2223 = vmatpush.msra.mxu0 %v1631
    %2224 = vmatpush.msra.mxu0 %v1630
    %2225 = vmatpush.msra.mxu0 %v1629
    %2226 = vmatpush.msra.mxu0 %v1628
    %2227 = vmatpush.msra.mxu0 %v1627
    %2228 = vmatpush.msra.mxu0 %v1626
    %2229 = vmatpush.msra.mxu0 %v1625
    %2230 = vmatmul.f32.gmra.mxu0 %v2015
    %v2231 = vpop.f32.mrf.mxu0
    %v2232 = vadd.f32 %v2212, %v2231
    %2233 = vdwg.mxu0
    %2234 = vmatpush.msra.mxu0 %v1656
    %2235 = vmatpush.msra.mxu0 %v1655
    %2236 = vmatpush.msra.mxu0 %v1654
    %2237 = vmatpush.msra.mxu0 %v1653
    %2238 = vmatpush.msra.mxu0 %v1652
    %2239 = vmatpush.msra.mxu0 %v1651
    %2240 = vmatpush.msra.mxu0 %v1650
    %2241 = vmatpush.msra.mxu0 %v1649
    %2242 = vmatpush.msra.mxu0 %v1648
    %2243 = vmatpush.msra.mxu0 %v1647
    %2244 = vmatpush.msra.mxu0 %v1646
    %2245 = vmatpush.msra.mxu0 %v1645
    %2246 = vmatpush.msra.mxu0 %v1644
    %2247 = vmatpush.msra.mxu0 %v1643
    %2248 = vmatpush.msra.mxu0 %v1642
    %2249 = vmatpush.msra.mxu0 %v1641
    %2250 = vmatmul.f32.gmra.mxu0 %v2018
    %v2251 = vpop.f32.mrf.mxu0
    %v2252 = vadd.f32 %v2232, %v2251
    %2253 = vdwg.mxu0
    %2254 = vmatpush.msra.mxu0 %v1672
    %2255 = vmatpush.msra.mxu0 %v1671
    %2256 = vmatpush.msra.mxu0 %v1670
    %2257 = vmatpush.msra.mxu0 %v1669
    %2258 = vmatpush.msra.mxu0 %v1668
    %2259 = vmatpush.msra.mxu0 %v1667
    %2260 = vmatpush.msra.mxu0 %v1666
    %2261 = vmatpush.msra.mxu0 %v1665
    %2262 = vmatpush.msra.mxu0 %v1664
    %2263 = vmatpush.msra.mxu0 %v1663
    %2264 = vmatpush.msra.mxu0 %v1662
    %2265 = vmatpush.msra.mxu0 %v1661
    %2266 = vmatpush.msra.mxu0 %v1660
    %2267 = vmatpush.msra.mxu0 %v1659
    %2268 = vmatpush.msra.mxu0 %v1658
    %2269 = vmatpush.msra.mxu0 %v1657
    %2270 = vmatmul.f32.gmra.mxu0 %v2019
    %v2271 = vpop.f32.mrf.mxu0
    %v2272 = vadd.f32 %v2252, %v2271
    %2273 = vdwg.mxu0
    %2274 = vmatpush.msra.mxu0 %v1688
    %2275 = vmatpush.msra.mxu0 %v1687
    %2276 = vmatpush.msra.mxu0 %v1686
    %2277 = vmatpush.msra.mxu0 %v1685
    %2278 = vmatpush.msra.mxu0 %v1684
    %2279 = vmatpush.msra.mxu0 %v1683
    %2280 = vmatpush.msra.mxu0 %v1682
    %2281 = vmatpush.msra.mxu0 %v1681
    %2282 = vmatpush.msra.mxu0 %v1680
    %2283 = vmatpush.msra.mxu0 %v1679
    %2284 = vmatpush.msra.mxu0 %v1678
    %2285 = vmatpush.msra.mxu0 %v1677
    %2286 = vmatpush.msra.mxu0 %v1676
    %2287 = vmatpush.msra.mxu0 %v1675
    %2288 = vmatpush.msra.mxu0 %v1674
    %2289 = vmatpush.msra.mxu0 %v1673
    %2290 = vmatmul.f32.gmra.mxu0 %v2020
    %v2291 = vpop.f32.mrf.mxu0
    %v2292 = vadd.f32 %v2272, %v2291
    %2293 = vdwg.mxu0
    %2294 = vmatpush.msra.mxu0 %v1704
    %2295 = vmatpush.msra.mxu0 %v1703
    %2296 = vmatpush.msra.mxu0 %v1702
    %2297 = vmatpush.msra.mxu0 %v1701
    %2298 = vmatpush.msra.mxu0 %v1700
    %2299 = vmatpush.msra.mxu0 %v1699
    %2300 = vmatpush.msra.mxu0 %v1698
    %2301 = vmatpush.msra.mxu0 %v1697
    %2302 = vmatpush.msra.mxu0 %v1696
    %2303 = vmatpush.msra.mxu0 %v1695
    %2304 = vmatpush.msra.mxu0 %v1694
    %2305 = vmatpush.msra.mxu0 %v1693
    %2306 = vmatpush.msra.mxu0 %v1692
    %2307 = vmatpush.msra.mxu0 %v1691
    %2308 = vmatpush.msra.mxu0 %v1690
    %2309 = vmatpush.msra.mxu0 %v1689
    %2310 = vmatmul.f32.gmra.mxu0 %v2021
    %v2311 = vpop.f32.mrf.mxu0
    %v2312 = vadd.f32 %v2292, %v2311
    %2313 = vdwg.mxu0
    %2314 = vmatpush.msra.mxu0 %v1720
    %2315 = vmatpush.msra.mxu0 %v1719
    %2316 = vmatpush.msra.mxu0 %v1718
    %2317 = vmatpush.msra.mxu0 %v1717
    %2318 = vmatpush.msra.mxu0 %v1716
    %2319 = vmatpush.msra.mxu0 %v1715
    %2320 = vmatpush.msra.mxu0 %v1714
    %2321 = vmatpush.msra.mxu0 %v1713
    %2322 = vmatpush.msra.mxu0 %v1712
    %2323 = vmatpush.msra.mxu0 %v1711
    %2324 = vmatpush.msra.mxu0 %v1710
    %2325 = vmatpush.msra.mxu0 %v1709
    %2326 = vmatpush.msra.mxu0 %v1708
    %2327 = vmatpush.msra.mxu0 %v1707
    %2328 = vmatpush.msra.mxu0 %v1706
    %2329 = vmatpush.msra.mxu0 %v1705
    %2330 = vmatmul.f32.gmra.mxu0 %v2022
    %v2331 = vpop.f32.mrf.mxu0
    %v2332 = vadd.f32 %v2312, %v2331
    %2333 = vdwg.mxu0
    %2334 = vmatpush.msra.mxu0 %v1736
    %2335 = vmatpush.msra.mxu0 %v1735
    %2336 = vmatpush.msra.mxu0 %v1734
    %2337 = vmatpush.msra.mxu0 %v1733
    %2338 = vmatpush.msra.mxu0 %v1732
    %2339 = vmatpush.msra.mxu0 %v1731
    %2340 = vmatpush.msra.mxu0 %v1730
    %2341 = vmatpush.msra.mxu0 %v1729
    %2342 = vmatpush.msra.mxu0 %v1728
    %2343 = vmatpush.msra.mxu0 %v1727
    %2344 = vmatpush.msra.mxu0 %v1726
    %2345 = vmatpush.msra.mxu0 %v1725
    %2346 = vmatpush.msra.mxu0 %v1724
    %2347 = vmatpush.msra.mxu0 %v1723
    %2348 = vmatpush.msra.mxu0 %v1722
    %2349 = vmatpush.msra.mxu0 %v1721
    %2350 = vmatmul.f32.gmra.mxu0 %v2023
    %v2351 = vpop.f32.mrf.mxu0
    %v2352 = vadd.f32 %v2332, %v2351
    %2353 = vdwg.mxu0
    %2354 = vmatpush.msra.mxu0 %v1752
    %2355 = vmatpush.msra.mxu0 %v1751
    %2356 = vmatpush.msra.mxu0 %v1750
    %2357 = vmatpush.msra.mxu0 %v1749
    %2358 = vmatpush.msra.mxu0 %v1748
    %2359 = vmatpush.msra.mxu0 %v1747
    %2360 = vmatpush.msra.mxu0 %v1746
    %2361 = vmatpush.msra.mxu0 %v1745
    %2362 = vmatpush.msra.mxu0 %v1744
    %2363 = vmatpush.msra.mxu0 %v1743
    %2364 = vmatpush.msra.mxu0 %v1742
    %2365 = vmatpush.msra.mxu0 %v1741
    %2366 = vmatpush.msra.mxu0 %v1740
    %2367 = vmatpush.msra.mxu0 %v1739
    %2368 = vmatpush.msra.mxu0 %v1738
    %2369 = vmatpush.msra.mxu0 %v1737
    %2370 = vmatmul.f32.gmra.mxu0 %v2024
    %v2371 = vpop.f32.mrf.mxu0
    %v2372 = vadd.f32 %v2352, %v2371
    %2373 = vdwg.mxu0
    %2374 = vmatpush.msra.mxu0 %v1768
    %2375 = vmatpush.msra.mxu0 %v1767
    %2376 = vmatpush.msra.mxu0 %v1766
    %2377 = vmatpush.msra.mxu0 %v1765
    %2378 = vmatpush.msra.mxu0 %v1764
    %2379 = vmatpush.msra.mxu0 %v1763
    %2380 = vmatpush.msra.mxu0 %v1762
    %2381 = vmatpush.msra.mxu0 %v1761
    %2382 = vmatpush.msra.mxu0 %v1760
    %2383 = vmatpush.msra.mxu0 %v1759
    %2384 = vmatpush.msra.mxu0 %v1758
    %2385 = vmatpush.msra.mxu0 %v1757
    %2386 = vmatpush.msra.mxu0 %v1756
    %2387 = vmatpush.msra.mxu0 %v1755
    %2388 = vmatpush.msra.mxu0 %v1754
    %2389 = vmatpush.msra.mxu0 %v1753
    %2390 = vmatmul.f32.gmra.mxu0 %v2025
    %v2391 = vpop.f32.mrf.mxu0
    %v2392 = vadd.f32 %v2372, %v2391
    %2393 = vdwg.mxu0
    %2394 = vmatpush.msra.mxu0 %v1784
    %2395 = vmatpush.msra.mxu0 %v1783
    %2396 = vmatpush.msra.mxu0 %v1782
    %2397 = vmatpush.msra.mxu0 %v1781
    %2398 = vmatpush.msra.mxu0 %v1780
    %2399 = vmatpush.msra.mxu0 %v1779
    %2400 = vmatpush.msra.mxu0 %v1778
    %2401 = vmatpush.msra.mxu0 %v1777
    %2402 = vmatpush.msra.mxu0 %v1776
    %2403 = vmatpush.msra.mxu0 %v1775
    %2404 = vmatpush.msra.mxu0 %v1774
    %2405 = vmatpush.msra.mxu0 %v1773
    %2406 = vmatpush.msra.mxu0 %v1772
    %2407 = vmatpush.msra.mxu0 %v1771
    %2408 = vmatpush.msra.mxu0 %v1770
    %2409 = vmatpush.msra.mxu0 %v1769
    %2410 = vmatmul.f32.gmra.mxu0 %v2028
    %v2411 = vpop.f32.mrf.mxu0
    %v2412 = vadd.f32 %v2392, %v2411
    %2413 = vdwg.mxu0
    %2414 = vmatpush.msra.mxu0 %v1800
    %2415 = vmatpush.msra.mxu0 %v1799
    %2416 = vmatpush.msra.mxu0 %v1798
    %2417 = vmatpush.msra.mxu0 %v1797
    %2418 = vmatpush.msra.mxu0 %v1796
    %2419 = vmatpush.msra.mxu0 %v1795
    %2420 = vmatpush.msra.mxu0 %v1794
    %2421 = vmatpush.msra.mxu0 %v1793
    %2422 = vmatpush.msra.mxu0 %v1792
    %2423 = vmatpush.msra.mxu0 %v1791
    %2424 = vmatpush.msra.mxu0 %v1790
    %2425 = vmatpush.msra.mxu0 %v1789
    %2426 = vmatpush.msra.mxu0 %v1788
    %2427 = vmatpush.msra.mxu0 %v1787
    %2428 = vmatpush.msra.mxu0 %v1786
    %2429 = vmatpush.msra.mxu0 %v1785
    %2430 = vmatmul.f32.gmra.mxu0 %v2029
    %v2431 = vpop.f32.mrf.mxu0
    %v2432 = vadd.f32 %v2412, %v2431
    %2433 = vdwg.mxu0
    %2434 = vmatpush.msra.mxu0 %v1816
    %2435 = vmatpush.msra.mxu0 %v1815
    %2436 = vmatpush.msra.mxu0 %v1814
    %2437 = vmatpush.msra.mxu0 %v1813
    %2438 = vmatpush.msra.mxu0 %v1812
    %2439 = vmatpush.msra.mxu0 %v1811
    %2440 = vmatpush.msra.mxu0 %v1810
    %2441 = vmatpush.msra.mxu0 %v1809
    %2442 = vmatpush.msra.mxu0 %v1808
    %2443 = vmatpush.msra.mxu0 %v1807
    %2444 = vmatpush.msra.mxu0 %v1806
    %2445 = vmatpush.msra.mxu0 %v1805
    %2446 = vmatpush.msra.mxu0 %v1804
    %2447 = vmatpush.msra.mxu0 %v1803
    %2448 = vmatpush.msra.mxu0 %v1802
    %2449 = vmatpush.msra.mxu0 %v1801
    %2450 = vmatmul.f32.gmra.mxu0 %v2030
    %v2451 = vpop.f32.mrf.mxu0
    %v2452 = vadd.f32 %v2432, %v2451
    %2453 = vdwg.mxu0
    %2454 = vmatpush.msra.mxu0 %v1832
    %2455 = vmatpush.msra.mxu0 %v1831
    %2456 = vmatpush.msra.mxu0 %v1830
    %2457 = vmatpush.msra.mxu0 %v1829
    %2458 = vmatpush.msra.mxu0 %v1828
    %2459 = vmatpush.msra.mxu0 %v1827
    %2460 = vmatpush.msra.mxu0 %v1826
    %2461 = vmatpush.msra.mxu0 %v1825
    %2462 = vmatpush.msra.mxu0 %v1824
    %2463 = vmatpush.msra.mxu0 %v1823
    %2464 = vmatpush.msra.mxu0 %v1822
    %2465 = vmatpush.msra.mxu0 %v1821
    %2466 = vmatpush.msra.mxu0 %v1820
    %2467 = vmatpush.msra.mxu0 %v1819
    %2468 = vmatpush.msra.mxu0 %v1818
    %2469 = vmatpush.msra.mxu0 %v1817
    %2470 = vmatmul.f32.gmra.mxu0 %v2031
    %v2471 = vpop.f32.mrf.mxu0
    %v2472 = vadd.f32 %v2452, %v2471
    %2473 = vdwg.mxu0
    %2474 = vmatpush.msra.mxu0 %v1848
    %2475 = vmatpush.msra.mxu0 %v1847
    %2476 = vmatpush.msra.mxu0 %v1846
    %2477 = vmatpush.msra.mxu0 %v1845
    %2478 = vmatpush.msra.mxu0 %v1844
    %2479 = vmatpush.msra.mxu0 %v1843
    %2480 = vmatpush.msra.mxu0 %v1842
    %2481 = vmatpush.msra.mxu0 %v1841
    %2482 = vmatpush.msra.mxu0 %v1840
    %2483 = vmatpush.msra.mxu0 %v1839
    %2484 = vmatpush.msra.mxu0 %v1838
    %2485 = vmatpush.msra.mxu0 %v1837
    %2486 = vmatpush.msra.mxu0 %v1836
    %2487 = vmatpush.msra.mxu0 %v1835
    %2488 = vmatpush.msra.mxu0 %v1834
    %2489 = vmatpush.msra.mxu0 %v1833
    %2490 = vmatmul.f32.gmra.mxu0 %v2032
    %v2491 = vpop.f32.mrf.mxu0
    %v2492 = vadd.f32 %v2472, %v2491
    %2493 = vdwg.mxu0
    %2494 = vmatpush.msra.mxu0 %v1864
    %2495 = vmatpush.msra.mxu0 %v1863
    %2496 = vmatpush.msra.mxu0 %v1862
    %2497 = vmatpush.msra.mxu0 %v1861
    %2498 = vmatpush.msra.mxu0 %v1860
    %2499 = vmatpush.msra.mxu0 %v1859
    %2500 = vmatpush.msra.mxu0 %v1858
    %2501 = vmatpush.msra.mxu0 %v1857
    %2502 = vmatpush.msra.mxu0 %v1856
    %2503 = vmatpush.msra.mxu0 %v1855
    %2504 = vmatpush.msra.mxu0 %v1854
    %2505 = vmatpush.msra.mxu0 %v1853
    %2506 = vmatpush.msra.mxu0 %v1852
    %2507 = vmatpush.msra.mxu0 %v1851
    %2508 = vmatpush.msra.mxu0 %v1850
    %2509 = vmatpush.msra.mxu0 %v1849
    %2510 = vmatmul.f32.gmra.mxu0 %v2033
    %v2511 = vpop.f32.mrf.mxu0
    %v2512 = vadd.f32 %v2492, %v2511
    %2513 = vdwg.mxu0
    %2514 = vmatpush.msra.mxu0 %v1880
    %2515 = vmatpush.msra.mxu0 %v1879
    %2516 = vmatpush.msra.mxu0 %v1878
    %2517 = vmatpush.msra.mxu0 %v1877
    %2518 = vmatpush.msra.mxu0 %v1876
    %2519 = vmatpush.msra.mxu0 %v1875
    %2520 = vmatpush.msra.mxu0 %v1874
    %2521 = vmatpush.msra.mxu0 %v1873
    %2522 = vmatpush.msra.mxu0 %v1872
    %2523 = vmatpush.msra.mxu0 %v1871
    %2524 = vmatpush.msra.mxu0 %v1870
    %2525 = vmatpush.msra.mxu0 %v1869
    %2526 = vmatpush.msra.mxu0 %v1868
    %2527 = vmatpush.msra.mxu0 %v1867
    %2528 = vmatpush.msra.mxu0 %v1866
    %2529 = vmatpush.msra.mxu0 %v1865
    %2530 = vmatmul.f32.gmra.mxu0 %v2034
    %v2531 = vpop.f32.mrf.mxu0
    %v2532 = vadd.f32 %v2512, %v2531
    %2533 = vdwg.mxu0
    %2534 = vmatpush.msra.mxu0 %v1896
    %2535 = vmatpush.msra.mxu0 %v1895
    %2536 = vmatpush.msra.mxu0 %v1894
    %2537 = vmatpush.msra.mxu0 %v1893
    %2538 = vmatpush.msra.mxu0 %v1892
    %2539 = vmatpush.msra.mxu0 %v1891
    %2540 = vmatpush.msra.mxu0 %v1890
    %2541 = vmatpush.msra.mxu0 %v1889
    %2542 = vmatpush.msra.mxu0 %v1888
    %2543 = vmatpush.msra.mxu0 %v1887
    %2544 = vmatpush.msra.mxu0 %v1886
    %2545 = vmatpush.msra.mxu0 %v1885
    %2546 = vmatpush.msra.mxu0 %v1884
    %2547 = vmatpush.msra.mxu0 %v1883
    %2548 = vmatpush.msra.mxu0 %v1882
    %2549 = vmatpush.msra.mxu0 %v1881
    %2550 = vmatmul.f32.gmra.mxu0 %v2035
    %v2551 = vpop.f32.mrf.mxu0
    %v2552 = vadd.f32 %v2532, %v2551
    %2553 = vdwg.mxu0
    %2554 = vmatpush.msra.mxu0 %v1912
    %2555 = vmatpush.msra.mxu0 %v1911
    %2556 = vmatpush.msra.mxu0 %v1910
    %2557 = vmatpush.msra.mxu0 %v1909
    %2558 = vmatpush.msra.mxu0 %v1908
    %2559 = vmatpush.msra.mxu0 %v1907
    %2560 = vmatpush.msra.mxu0 %v1906
    %2561 = vmatpush.msra.mxu0 %v1905
    %2562 = vmatpush.msra.mxu0 %v1904
    %2563 = vmatpush.msra.mxu0 %v1903
    %2564 = vmatpush.msra.mxu0 %v1902
    %2565 = vmatpush.msra.mxu0 %v1901
    %2566 = vmatpush.msra.mxu0 %v1900
    %2567 = vmatpush.msra.mxu0 %v1899
    %2568 = vmatpush.msra.mxu0 %v1898
    %2569 = vmatpush.msra.mxu0 %v1897
    %2570 = vmatmul.f32.gmra.mxu0 %v2038
    %v2571 = vpop.f32.mrf.mxu0
    %v2572 = vadd.f32 %v2552, %v2571
    %2573 = vdwg.mxu0
    %2574 = vmatpush.msra.mxu0 %v1928
    %2575 = vmatpush.msra.mxu0 %v1927
    %2576 = vmatpush.msra.mxu0 %v1926
    %2577 = vmatpush.msra.mxu0 %v1925
    %2578 = vmatpush.msra.mxu0 %v1924
    %2579 = vmatpush.msra.mxu0 %v1923
    %2580 = vmatpush.msra.mxu0 %v1922
    %2581 = vmatpush.msra.mxu0 %v1921
    %2582 = vmatpush.msra.mxu0 %v1920
    %2583 = vmatpush.msra.mxu0 %v1919
    %2584 = vmatpush.msra.mxu0 %v1918
    %2585 = vmatpush.msra.mxu0 %v1917
    %2586 = vmatpush.msra.mxu0 %v1916
    %2587 = vmatpush.msra.mxu0 %v1915
    %2588 = vmatpush.msra.mxu0 %v1914
    %2589 = vmatpush.msra.mxu0 %v1913
    %2590 = vmatmul.f32.gmra.mxu0 %v2039
    %v2591 = vpop.f32.mrf.mxu0
    %v2592 = vadd.f32 %v2572, %v2591
    %2593 = vdwg.mxu0
    %2594 = vmatpush.msra.mxu0 %v1944
    %2595 = vmatpush.msra.mxu0 %v1943
    %2596 = vmatpush.msra.mxu0 %v1942
    %2597 = vmatpush.msra.mxu0 %v1941
    %2598 = vmatpush.msra.mxu0 %v1940
    %2599 = vmatpush.msra.mxu0 %v1939
    %2600 = vmatpush.msra.mxu0 %v1938
    %2601 = vmatpush.msra.mxu0 %v1937
    %2602 = vmatpush.msra.mxu0 %v1936
    %2603 = vmatpush.msra.mxu0 %v1935
    %2604 = vmatpush.msra.mxu0 %v1934
    %2605 = vmatpush.msra.mxu0 %v1933
    %2606 = vmatpush.msra.mxu0 %v1932
    %2607 = vmatpush.msra.mxu0 %v1931
    %2608 = vmatpush.msra.mxu0 %v1930
    %2609 = vmatpush.msra.mxu0 %v1929
    %2610 = vmatmul.f32.gmra.mxu0 %v2040
    %v2611 = vpop.f32.mrf.mxu0
    %v2612 = vadd.f32 %v2592, %v2611
    %2613 = vdwg.mxu0
    %2614 = vmatpush.msra.mxu0 %v1960
    %2615 = vmatpush.msra.mxu0 %v1959
    %2616 = vmatpush.msra.mxu0 %v1958
    %2617 = vmatpush.msra.mxu0 %v1957
    %2618 = vmatpush.msra.mxu0 %v1956
    %2619 = vmatpush.msra.mxu0 %v1955
    %2620 = vmatpush.msra.mxu0 %v1954
    %2621 = vmatpush.msra.mxu0 %v1953
    %2622 = vmatpush.msra.mxu0 %v1952
    %2623 = vmatpush.msra.mxu0 %v1951
    %2624 = vmatpush.msra.mxu0 %v1950
    %2625 = vmatpush.msra.mxu0 %v1949
    %2626 = vmatpush.msra.mxu0 %v1948
    %2627 = vmatpush.msra.mxu0 %v1947
    %2628 = vmatpush.msra.mxu0 %v1946
    %2629 = vmatpush.msra.mxu0 %v1945
    %2630 = vmatmul.f32.gmra.mxu0 %v2041
    %v2631 = vpop.f32.mrf.mxu0
    %v2632 = vadd.f32 %v2612, %v2631
    %2633 = vdwg.mxu0
    %2634 = vmatpush.msra.mxu0 %v1976
    %2635 = vmatpush.msra.mxu0 %v1975
    %2636 = vmatpush.msra.mxu0 %v1974
    %2637 = vmatpush.msra.mxu0 %v1973
    %2638 = vmatpush.msra.mxu0 %v1972
    %2639 = vmatpush.msra.mxu0 %v1971
    %2640 = vmatpush.msra.mxu0 %v1970
    %2641 = vmatpush.msra.mxu0 %v1969
    %2642 = vmatpush.msra.mxu0 %v1968
    %2643 = vmatpush.msra.mxu0 %v1967
    %2644 = vmatpush.msra.mxu0 %v1966
    %2645 = vmatpush.msra.mxu0 %v1965
    %2646 = vmatpush.msra.mxu0 %v1964
    %2647 = vmatpush.msra.mxu0 %v1963
    %2648 = vmatpush.msra.mxu0 %v1962
    %2649 = vmatpush.msra.mxu0 %v1961
    %2650 = vmatmul.f32.gmra.mxu0 %v2042
    %v2651 = vpop.f32.mrf.mxu0
    %v2652 = vadd.f32 %v2632, %v2651
    %2653 = vdwg.mxu0
    %2654 = vmatpush.msra.mxu0 %v1992
    %2655 = vmatpush.msra.mxu0 %v1991
    %2656 = vmatpush.msra.mxu0 %v1990
    %2657 = vmatpush.msra.mxu0 %v1989
    %2658 = vmatpush.msra.mxu0 %v1988
    %2659 = vmatpush.msra.mxu0 %v1987
    %2660 = vmatpush.msra.mxu0 %v1986
    %2661 = vmatpush.msra.mxu0 %v1985
    %2662 = vmatpush.msra.mxu0 %v1984
    %2663 = vmatpush.msra.mxu0 %v1983
    %2664 = vmatpush.msra.mxu0 %v1982
    %2665 = vmatpush.msra.mxu0 %v1981
    %2666 = vmatpush.msra.mxu0 %v1980
    %2667 = vmatpush.msra.mxu0 %v1979
    %2668 = vmatpush.msra.mxu0 %v1978
    %2669 = vmatpush.msra.mxu0 %v1977
    %2670 = vmatmul.f32.gmra.mxu0 %v2043
    %v2671 = vpop.f32.mrf.mxu0
    %v2672 = vadd.f32 %v2652, %v2671
    %2673 = vdwg.mxu0
    %v2674 = vmax.f32 %v2672, 0.0
    %v2675 = vld [vmem:[%s9] sm:$0xff]
    %v2676 = vld [vmem:[%s9 + $0x8] sm:$0xff]
    %v2677 = vld [vmem:[%s9 + $0x10] sm:$0xff]
    %v2678 = vld [vmem:[%s9 + $0x18] sm:$0xff]
    %v2679 = vld [vmem:[%s9 + $0x20] sm:$0xff]
    %v2680 = vld [vmem:[%s9 + $0x28] sm:$0xff]
    %v2681 = vld [vmem:[%s9 + $0x30] sm:$0xff]
    %v2682 = vld [vmem:[%s9 + $0x38] sm:$0xff]
    %v2683 = vld [vmem:[%s9 + $0x40] sm:$0xff]
    %v2684 = vld [vmem:[%s9 + $0x48] sm:$0xff]
    %v2685 = vld [vmem:[%s9 + $0x50] sm:$0xff]
    %v2686 = vld [vmem:[%s9 + $0x58] sm:$0xff]
    %v2687 = vld [vmem:[%s9 + $0x60] sm:$0xff]
    %v2688 = vld [vmem:[%s9 + $0x68] sm:$0xff]
    %v2689 = vld [vmem:[%s9 + $0x70] sm:$0xff]
    %v2690 = vld [vmem:[%s9 + $0x78] sm:$0xff]
    %v2691 = vld [vmem:[%s10] sm:$0x1]
    %v2693 = vperm.slane %v2691, 0
    %2695 = vmatpush.msra.mxu0 %v2690
    %2696 = vmatpush.msra.mxu0 %v2689
    %2697 = vmatpush.msra.mxu0 %v2688
    %2698 = vmatpush.msra.mxu0 %v2687
    %2699 = vmatpush.msra.mxu0 %v2686
    %2700 = vmatpush.msra.mxu0 %v2685
    %2701 = vmatpush.msra.mxu0 %v2684
    %2702 = vmatpush.msra.mxu0 %v2683
    %2703 = vmatpush.msra.mxu0 %v2682
    %2704 = vmatpush.msra.mxu0 %v2681
    %2705 = vmatpush.msra.mxu0 %v2680
    %2706 = vmatpush.msra.mxu0 %v2679
    %2707 = vmatpush.msra.mxu0 %v2678
    %2708 = vmatpush.msra.mxu0 %v2677
    %2709 = vmatpush.msra.mxu0 %v2676
    %2710 = vmatpush.msra.mxu0 %v2675
    %2711 = vmatmul.f32.gmra.mxu0 %v2674
    %v2712 = vpop.f32.mrf.mxu0
    %v2713 = vadd.f32 %v2693, %v2712
    %2714 = vdwg.mxu0
    %v2715 = vmax.f32 %v2713, 0.0
    %vm2716 = vcmask 41984
    %2717 = vst.msk [vmem:[#allocation3] sm:$0x3] %vm2716, %v2715
    // Predicated region
    $region46: #{cnn2_forward.1} parent=1 // pred_check
      _
    $region47: #{cnn2_forward.1} parent=1 // pred_check_branch
      %2719 = sbr.rel (0) target = $region49
    $region48: #{cnn2_forward.1} parent=1 // pred_region
      %2721 = vsyncadd [#allocation4], 0
      %s2723 = sshll.u32 [#allocation3], 4
      %s2724 = int_to_ptr.vmem [resolvable:$true] %s2723
      %s2725 = sshll.u32 %s11, 4
      %s2726 = int_to_ptr.hbm [resolvable:$true] %s2725
      %2728 = dma.vmem_to_hbm [thread:$0]  %s2724, 32, %s2726, [#allocation4]
    $region49: #{cnn2_forward.1} parent=1 // pred_fallthru
      _
    // Predicated region
    $region50: #{cnn2_forward.1} parent=1 // pred_check
      _
    $region51: #{cnn2_forward.1} parent=1 // pred_check_branch
      %2730 = sbr.rel (0) target = $region53
    $region52: #{cnn2_forward.1} parent=1 // pred_region
      %2732 = dma.done [#allocation4], 32
    $region53: #{cnn2_forward.1} parent=1 // pred_fallthru
      _
    %2733 = vsyncpa [#allocation4], 1

</llo_original>
